<compile_context>
chip_gen: v7x
topology: tpu7x:2x2x1
jax: 0.10.0
libtpu: 0.0.40
codegen_flags: <defaults>
</compile_context>

<pallas_src>
import math

import jax
import jax.numpy as jnp
from jax.experimental import pallas as pl
from jax.experimental.pallas import tpu as pltpu


def _seq_att_kernel(q_ref, k_ref, klen_ref, w1q_ref, w1k_ref, w1p_ref, b1_ref,
                    w2_ref, b2_ref, o_ref):
    Bb, T, H = k_ref.shape          # T here is the (possibly padded) history block

    q = q_ref[...]                  # [Bb, H]
    k = k_ref[...]                  # [Bb, T, H]

    # Layer-1 query term, hoisted out of T (q identical for every position):
    #   qh = q @ (W1_q + W1_diff) + b1                     -> [Bb, D1]
    qh = jnp.dot(q, w1q_ref[...], preferred_element_type=jnp.float32) + b1_ref[...]

    # Layer-1 key terms merged into ONE batched matmul:
    #   k @ (W1_k - W1_diff) + (q*k) @ W1_prod
    #     == k @ ((W1_k - W1_diff) + diag(q) @ W1_prod)    (per-batch RHS)
    w_b = w1k_ref[...] + q[:, :, None] * w1p_ref[...]      # [Bb, H, D1]  (tiny VPU work)
    kh = jnp.einsum("bth,bhd->btd", k, w_b,
                    preferred_element_type=jnp.float32)    # [Bb, T, D1]

    h = jax.nn.sigmoid(qh[:, None, :] + kh)                # [Bb, T, D1]

    # Dense [D1 -> 1] as VPU multiply + lane reduce; w2/b2 already carry 1/sqrt(H).
    s = jnp.sum(h * w2_ref[...], axis=-1) + b2_ref[0, 0]   # [Bb, T]

    # Mask positions >= keys_length with 0.0 (softmax_stag=False default).
    # TODO(synk): if T is ever tiled, offset the iota by program_id(t_axis) * T_block.
    pos = jax.lax.broadcasted_iota(jnp.int32, (Bb, T), 1)
    s = jnp.where(pos >= klen_ref[...], 0.0, s)

    o_ref[...] = s.astype(o_ref.dtype)                     # lane-dense [Bb, T]


def _step_bytes(bb, tp, h, d1):
    # keys tile + layer-1 activations + scores + per-batch folded weights (f32)
    return 4 * bb * (tp * (h + 2 * d1 + 1) + h * d1)


def _pick_batch_block(B, Tp, H, D1, budget_bytes=12 * 1024 * 1024):
    """Largest batch block that (a) divides B, (b) is sublane-friendly
    (multiple of 8, or the whole batch), and (c) fits the VMEM budget with
    room for double buffering on every generation (v7x 64 MiB, v5e 16 MiB default)."""
    cands = [d for d in range(B, 0, -1) if B % d == 0 and (d % 8 == 0 or d == B)]
    for bb in cands:
        if _step_bytes(bb, Tp, H, D1) <= budget_bytes:
            return bb
    return cands[-1]


def sequence_att_layer(queries, keys, keys_length, params, *, batch_block=None):
    """Pallas implementation of SequenceAttLayer.forward (default flags)."""
    B, T, H = keys.shape
    w1, b1, w2, b2 = params["w1"], params["b1"], params["w2"], params["b2"]
    D1 = w1.shape[1]
    assert w1.shape[0] == 4 * H, "att_hidden_size[0] must equal 4 * embedding_size"

    # Lane-dense history axis: pad T to a multiple of 128. Padded columns are
    # zero keys, get masked to exactly 0.0 in-kernel, and are sliced off below.
    Tp = ((T + 127) // 128) * 128
    keys_p = jnp.pad(keys, ((0, 0), (0, Tp - T), (0, 0))) if Tp != T else keys
    keys_p = keys_p.astype(jnp.float32)
    queries = queries.astype(jnp.float32)
    klen = keys_length.astype(jnp.int32).reshape(B, 1)

    # --- wrapper-side constant folds (all on tiny weight tensors) ---
    w1q, w1k, w1d, w1p = w1[0:H], w1[H:2 * H], w1[2 * H:3 * H], w1[3 * H:4 * H]
    inv = 1.0 / math.sqrt(H)
    w1q_f = (w1q + w1d).astype(jnp.float32)                 # q-term (folds q and q-k)
    w1k_f = (w1k - w1d).astype(jnp.float32)                 # k-term (folds q-k)
    w1p_f = w1p.astype(jnp.float32)                         # (q*k)-term
    b1_2 = b1.reshape(1, D1).astype(jnp.float32)
    w2_s = (w2.reshape(1, D1) * inv).astype(jnp.float32)    # fold 1/sqrt(H) into dense
    b2_s = (b2.reshape(1, 1) * inv).astype(jnp.float32)

    # --- batch tiling ---
    if batch_block is None:
        batch_block = _pick_batch_block(B, Tp, H, D1)
    Bb = batch_block
    assert B % Bb == 0 and (Bb % 8 == 0 or Bb == B), "bad batch block"
    grid = (B // Bb,)

    vmem_limit = int(min(48 * 1024 * 1024,
                         max(16 * 1024 * 1024,
                             3 * _step_bytes(Bb, Tp, H, D1) + (2 << 20))))

    bmap2 = lambda i: (i, 0)
    bmap3 = lambda i: (i, 0, 0)
    wmap2 = lambda i: (0, 0)        # weights/biases: resident across the grid

    out = pl.pallas_call(
        _seq_att_kernel,
        out_shape=jax.ShapeDtypeStruct((B, Tp), jnp.float32),
        grid=grid,
        in_specs=[
            pl.BlockSpec((Bb, H), bmap2),                   # queries
            pl.BlockSpec((Bb, Tp, H), bmap3),               # keys (padded T)
            pl.BlockSpec((Bb, 1), bmap2),                   # keys_length
            pl.BlockSpec((H, D1), wmap2),                   # W1 q-block (folded)
            pl.BlockSpec((H, D1), wmap2),                   # W1 k-block (folded)
            pl.BlockSpec((H, D1), wmap2),                   # W1 prod-block
            pl.BlockSpec((1, D1), wmap2),                   # b1
            pl.BlockSpec((1, D1), wmap2),                   # w2 row (pre-scaled)
            pl.BlockSpec((1, 1), wmap2,
                         memory_space=pltpu.MemorySpace.SMEM),  # b2 scalar (pre-scaled)
        ],
        out_specs=pl.BlockSpec((Bb, Tp), bmap2),
        compiler_params=pltpu.CompilerParams(
            dimension_semantics=("parallel",),
            vmem_limit_bytes=vmem_limit,
        ),
    )(queries, keys_p, klen, w1q_f, w1k_f, w1p_f, b1_2, w2_s, b2_s)

    return out[:, :T][:, None, :]                           # [B, 1, T]


def _reference(queries, keys, keys_length, params):
    """Pure-JAX reference mirroring the PyTorch forward (default flags)."""
    B, T, H = keys.shape
    qb = jnp.broadcast_to(queries[:, None, :], (B, T, H))
    feat = jnp.concatenate([qb, keys, qb - keys, qb * keys], axis=-1)
    h = jax.nn.sigmoid(feat @ params["w1"] + params["b1"])
    s = (h @ params["w2"] + params["b2"])[..., 0]           # [B, T]
    mask = jnp.arange(T)[None, :] >= keys_length[:, None]
    s = jnp.where(mask, 0.0, s)
    s = s / math.sqrt(H)
    return s[:, None, :]


if __name__ == "__main__":
    # module defaults: att_hidden_size = (80, 40) => 4 * embedding_size = 80 => H = 20
    B, T, H = 16, 50, 20
    D0, D1 = 4 * H, 40

    key = jax.random.PRNGKey(0)
    kq, kk, kl, kw1, kb1, kw2, kb2 = jax.random.split(key, 7)

    queries = jax.random.normal(kq, (B, H), dtype=jnp.float32)
    keys = jax.random.normal(kk, (B, T, H), dtype=jnp.float32)
    keys_length = jax.random.randint(kl, (B,), 1, T + 1, dtype=jnp.int32)

    # deterministic synthetic parameters (pre-transposed Linear weights: [in, out])
    params = {
        "w1": 0.05 * jax.random.normal(kw1, (D0, D1), dtype=jnp.float32),
        "b1": 0.01 * jax.random.normal(kb1, (D1,), dtype=jnp.float32),
        "w2": 0.05 * jax.random.normal(kw2, (D1, 1), dtype=jnp.float32),
        "b2": 0.01 * jax.random.normal(kb2, (1,), dtype=jnp.float32),
    }

    # batch_block=8 -> grid=(2,), so the batch pipeline is actually exercised.
    out = sequence_att_layer(queries, keys, keys_length, params, batch_block=8)
    out = jax.block_until_ready(out)

    ref = _reference(queries, keys, keys_length, params)
    assert out.shape == (B, 1, T)
    assert jnp.allclose(out, ref, atol=3e-5, rtol=3e-5), "mismatch vs reference"

    print("KERNEL_OK")
</pallas_src>

<mosaic_0001>
module attributes {stable_mosaic.version = 11 : i64} {
  func.func @_seq_att_kernel(%arg0: i32, %arg1: memref<8x20xf32, #tpu.memory_space<vmem>>, %arg2: memref<8x128x20xf32, #tpu.memory_space<vmem>>, %arg3: memref<8x1xi32, #tpu.memory_space<vmem>>, %arg4: memref<20x40xf32, #tpu.memory_space<vmem>>, %arg5: memref<20x40xf32, #tpu.memory_space<vmem>>, %arg6: memref<20x40xf32, #tpu.memory_space<vmem>>, %arg7: memref<1x40xf32, #tpu.memory_space<vmem>>, %arg8: memref<1x40xf32, #tpu.memory_space<vmem>>, %arg9: memref<1x1xf32, #tpu.memory_space<smem>>, %arg10: memref<8x128xf32, #tpu.memory_space<vmem>>) attributes {dimension_semantics = [#tpu.dimension_semantics<parallel>], iteration_bounds = array<i64: 2>, scalar_prefetch = 0 : i64, scratch_operands = 0 : i64, tpu.core_type = #tpu.core_type<tc>, window_params = [{transform_indices = @transform_0, window_bounds = array<i64: 8, 20>}, {transform_indices = @transform_1, window_bounds = array<i64: 8, 128, 20>}, {transform_indices = @transform_2, window_bounds = array<i64: 8, 1>}, {pipeline_mode = #tpu.pipeline_mode<synchronous>, transform_indices = @transform_3, window_bounds = array<i64: 20, 40>}, {pipeline_mode = #tpu.pipeline_mode<synchronous>, transform_indices = @transform_4, window_bounds = array<i64: 20, 40>}, {pipeline_mode = #tpu.pipeline_mode<synchronous>, transform_indices = @transform_5, window_bounds = array<i64: 20, 40>}, {pipeline_mode = #tpu.pipeline_mode<synchronous>, transform_indices = @transform_6, window_bounds = array<i64: 1, 40>}, {pipeline_mode = #tpu.pipeline_mode<synchronous>, transform_indices = @transform_7, window_bounds = array<i64: 1, 40>}, {transform_indices = @transform_8, window_bounds = array<i64: 1, 1>}, {transform_indices = @transform_9, window_bounds = array<i64: 8, 128>}]} {
    %c0 = arith.constant 0 : index
    %c0_0 = arith.constant 0 : index
    %0 = vector.load %arg1[%c0, %c0_0] : memref<8x20xf32, #tpu.memory_space<vmem>>, vector<8x20xf32>
    %c0_1 = arith.constant 0 : index
    %c0_2 = arith.constant 0 : index
    %c0_3 = arith.constant 0 : index
    %1 = vector.load %arg2[%c0_1, %c0_2, %c0_3] : memref<8x128x20xf32, #tpu.memory_space<vmem>>, vector<8x128x20xf32>
    %c0_4 = arith.constant 0 : index
    %c0_5 = arith.constant 0 : index
    %2 = vector.load %arg4[%c0_4, %c0_5] : memref<20x40xf32, #tpu.memory_space<vmem>>, vector<20x40xf32>
    %cst = arith.constant dense<0.000000e+00> : vector<8x40xf32>
    %3 = tpu.matmul %0, %2, %cst {dimension_numbers = #tpu.dot_dimension_numbers<[1], [0], [0], [1], [0, 0, 1, 1], [], []>} : vector<8x20xf32>, vector<20x40xf32>, vector<8x40xf32> -> vector<8x40xf32>
    %c0_6 = arith.constant 0 : index
    %c0_7 = arith.constant 0 : index
    %4 = vector.load %arg7[%c0_6, %c0_7] : memref<1x40xf32, #tpu.memory_space<vmem>>, vector<1x40xf32>
    %5 = vector.broadcast %4 : vector<1x40xf32> to vector<8x40xf32>
    %6 = arith.addf %3, %5 : vector<8x40xf32>
    %c0_8 = arith.constant 0 : index
    %c0_9 = arith.constant 0 : index
    %7 = vector.load %arg5[%c0_8, %c0_9] : memref<20x40xf32, #tpu.memory_space<vmem>>, vector<20x40xf32>
    %8 = vector.shape_cast %0 : vector<8x20xf32> to vector<8x20x1xf32>
    %c0_10 = arith.constant 0 : index
    %c0_11 = arith.constant 0 : index
    %9 = vector.load %arg6[%c0_10, %c0_11] : memref<20x40xf32, #tpu.memory_space<vmem>>, vector<20x40xf32>
    %10 = vector.shape_cast %9 : vector<20x40xf32> to vector<1x20x40xf32>
    %11 = vector.broadcast %8 : vector<8x20x1xf32> to vector<8x20x40xf32>
    %12 = vector.broadcast %10 : vector<1x20x40xf32> to vector<8x20x40xf32>
    %13 = arith.mulf %11, %12 : vector<8x20x40xf32>
    %14 = vector.shape_cast %7 : vector<20x40xf32> to vector<1x20x40xf32>
    %15 = vector.broadcast %14 : vector<1x20x40xf32> to vector<8x20x40xf32>
    %16 = arith.addf %15, %13 : vector<8x20x40xf32>
    "tpu.trace_start"() <{level = 10 : i32, message = "bth,bhd->btd"}> : () -> ()
    %cst_12 = arith.constant dense<0.000000e+00> : vector<8x128x40xf32>
    %17 = tpu.matmul %1, %16, %cst_12 {dimension_numbers = #tpu.dot_dimension_numbers<[2], [1], [1], [2], [0, 0, 0, 1, 1, 2], [0], [0]>} : vector<8x128x20xf32>, vector<8x20x40xf32>, vector<8x128x40xf32> -> vector<8x128x40xf32>
    "tpu.trace_stop"() : () -> ()
    %18 = vector.shape_cast %6 : vector<8x40xf32> to vector<8x1x40xf32>
    %19 = vector.broadcast %18 : vector<8x1x40xf32> to vector<8x128x40xf32>
    %20 = arith.addf %19, %17 : vector<8x128x40xf32>
    %21 = arith.negf %20 : vector<8x128x40xf32>
    %22 = math.exp %21 : vector<8x128x40xf32>
    %cst_13 = arith.constant 1.000000e+00 : f32
    %23 = vector.broadcast %cst_13 : f32 to vector<8x128x40xf32>
    %24 = arith.addf %23, %22 : vector<8x128x40xf32>
    %25 = arith.divf %23, %24 : vector<8x128x40xf32>
    %c0_14 = arith.constant 0 : index
    %c0_15 = arith.constant 0 : index
    %26 = vector.load %arg8[%c0_14, %c0_15] : memref<1x40xf32, #tpu.memory_space<vmem>>, vector<1x40xf32>
    %27 = vector.shape_cast %26 : vector<1x40xf32> to vector<1x1x40xf32>
    %28 = vector.broadcast %27 : vector<1x1x40xf32> to vector<8x128x40xf32>
    %29 = arith.mulf %25, %28 : vector<8x128x40xf32>
    %cst_16 = arith.constant dense<0.000000e+00> : vector<8x128xf32>
    %30 = vector.multi_reduction <add>, %29, %cst_16 [2] : vector<8x128x40xf32> to vector<8x128xf32>
    %c0_17 = arith.constant 0 : index
    %c0_18 = arith.constant 0 : index
    %31 = memref.load %arg9[%c0_17, %c0_18] : memref<1x1xf32, #tpu.memory_space<smem>>
    %32 = vector.broadcast %31 : f32 to vector<8x128xf32>
    %33 = arith.addf %30, %32 : vector<8x128xf32>
    %34 = tpu.iota {dimensions = array<i32: 1>} : vector<8x128xi32>
    %c0_19 = arith.constant 0 : index
    %c0_20 = arith.constant 0 : index
    %35 = vector.load %arg3[%c0_19, %c0_20] : memref<8x1xi32, #tpu.memory_space<vmem>>, vector<8x1xi32>
    %36 = vector.broadcast %35 : vector<8x1xi32> to vector<8x128xi32>
    %37 = arith.cmpi sge, %34, %36 : vector<8x128xi32>
    %cst_21 = arith.constant 0.000000e+00 : f32
    %38 = vector.broadcast %cst_21 : f32 to vector<8x128xf32>
    %39 = arith.select %37, %38, %33 : vector<8x128xi1>, vector<8x128xf32>
    %c0_22 = arith.constant 0 : index
    %c0_23 = arith.constant 0 : index
    %40 = vector.load %arg10[%c0_22, %c0_23] : memref<8x128xf32, #tpu.memory_space<vmem>>, vector<8x128xf32>
    tpu.vector_store %arg10[%c0_22, %c0_23], %39 {strides = array<i32>} : memref<8x128xf32, #tpu.memory_space<vmem>>, vector<8x128xf32>,
    return
  }
  func.func @transform_0(%arg0: i32) -> (i32, i32) {
    %c0_i32 = arith.constant 0 : i32
    %c0_i32_0 = arith.constant 0 : i32
    return %arg0, %c0_i32 : i32, i32
  }
  func.func @transform_1(%arg0: i32) -> (i32, i32, i32) {
    %c0_i32 = arith.constant 0 : i32
    %c0_i32_0 = arith.constant 0 : i32
    %c0_i32_1 = arith.constant 0 : i32
    return %arg0, %c0_i32, %c0_i32_0 : i32, i32, i32
  }
  func.func @transform_2(%arg0: i32) -> (i32, i32) {
    %c0_i32 = arith.constant 0 : i32
    %c0_i32_0 = arith.constant 0 : i32
    return %arg0, %c0_i32 : i32, i32
  }
  func.func @transform_3(%arg0: i32) -> (i32, i32) {
    %c0_i32 = arith.constant 0 : i32
    %c0_i32_0 = arith.constant 0 : i32
    %c0_i32_1 = arith.constant 0 : i32
    return %c0_i32, %c0_i32_0 : i32, i32
  }
  func.func @transform_4(%arg0: i32) -> (i32, i32) {
    %c0_i32 = arith.constant 0 : i32
    %c0_i32_0 = arith.constant 0 : i32
    %c0_i32_1 = arith.constant 0 : i32
    return %c0_i32, %c0_i32_0 : i32, i32
  }
  func.func @transform_5(%arg0: i32) -> (i32, i32) {
    %c0_i32 = arith.constant 0 : i32
    %c0_i32_0 = arith.constant 0 : i32
    %c0_i32_1 = arith.constant 0 : i32
    return %c0_i32, %c0_i32_0 : i32, i32
  }
  func.func @transform_6(%arg0: i32) -> (i32, i32) {
    %c0_i32 = arith.constant 0 : i32
    %c0_i32_0 = arith.constant 0 : i32
    %c0_i32_1 = arith.constant 0 : i32
    return %c0_i32, %c0_i32_0 : i32, i32
  }
  func.func @transform_7(%arg0: i32) -> (i32, i32) {
    %c0_i32 = arith.constant 0 : i32
    %c0_i32_0 = arith.constant 0 : i32
    %c0_i32_1 = arith.constant 0 : i32
    return %c0_i32, %c0_i32_0 : i32, i32
  }
  func.func @transform_8(%arg0: i32) -> (i32, i32) {
    %c0_i32 = arith.constant 0 : i32
    %c0_i32_0 = arith.constant 0 : i32
    %c0_i32_1 = arith.constant 0 : i32
    return %c0_i32, %c0_i32_0 : i32, i32
  }
  func.func @transform_9(%arg0: i32) -> (i32, i32) {
    %c0_i32 = arith.constant 0 : i32
    %c0_i32_0 = arith.constant 0 : i32
    return %arg0, %c0_i32 : i32, i32
  }
}

</mosaic_0001>

<llo_original>
// kernel: tpu_custom_call.1
$region0: #{tpu_custom_call.1}
  #allocation0 [shape = 'u32[]', space=smem, size = 0x4, offset = 0x4, fixed_abs, tag = 'smem constant byte address 0x4 - core index']
  #allocation1 [shape = 'u32[144,128]{1,0:T(1,128)}', space=vmem, size = 0x12000, scoped, tag = 'internal scratch']
  #allocation2 [shape = 'f32[1,1]{1,0:T(1,128)S(6)}', space=smem, size = 0x200, scoped, tag = 'scoped memory for tpu_custom_call.1']
  %s0 = inlined_call_operand.vmem [shape: f32[16,20], index: 0, kind: input, shape index: {}]
  %s1 = inlined_call_operand.vmem [shape: f32[16,128,20], index: 1, kind: input, shape index: {}]
  %s2 = inlined_call_operand.vmem [shape: s32[16,1], index: 2, kind: input, shape index: {}]
  %s3 = inlined_call_operand.vmem [shape: f32[20,40], index: 3, kind: input, shape index: {}]
  %s4 = inlined_call_operand.vmem [shape: f32[20,40], index: 4, kind: input, shape index: {}]
  %s5 = inlined_call_operand.vmem [shape: f32[20,40], index: 5, kind: input, shape index: {}]
  %s6 = inlined_call_operand.vmem [shape: f32[1,40], index: 6, kind: input, shape index: {}]
  %s7 = inlined_call_operand.vmem [shape: f32[1,40], index: 7, kind: input, shape index: {}]
  %s8 = inlined_call_operand.<no memory space> [shape: f32[1,1], index: 8, kind: input, shape index: {}]
  %s9 = inlined_call_operand.hbm [shape: f32[16,128], index: 9, kind: output, shape index: {}]
  %s10 = sld [smem:[#allocation0]]
  $region69: #{tpu_custom_call.1} parent=0
    _
  %s12 = ssub.s32 1, %s10
  %s13 = scalar_select 0, %s12, %s10
  %14 = sst [smem:[#allocation2]] %s8
  $region1: #{tpu_custom_call.1} parent=0
    #allocation3 [shape = 'u8[8192]{0}', space=vmem, size = 0x2000, scoped, tag = 'output window, operand 0']
    #allocation4 [shape = 's32[2]{0}', space=sflag, size = 0x8, scoped, tag = 'scoped memory for tpu_custom_call.1']
    %15 = vsyncpa [#allocation4], 0
    %s16 = scalar_lea.sflag [#allocation4], 1
    %17 = vsyncpa %s16, 0
    loop: start=0, step=1, limit=4
    $region2: #{tpu_custom_call.1} parent=1 // loop_pre_header
      _
    $region3: #{tpu_custom_call.1} parent=1 // loop_header
      %s19 = sphi 0, %s23
      %p20 = scmp.ge.s32.totalorder %s19, 4
      %s29 = sphi 0, %s31
      %s32 = sphi 0, %s29
      %s33 = sphi 0, %s32
      %s49 = sphi 0, %s33
      %s55 = sphi 0, %s57
      %s58 = sphi 0, %s55
      %s59 = sphi 0, %s58
      %s75 = sphi 0, %s59
      %s81 = sphi 0, %s83
      %s84 = sphi 0, %s81
      %s85 = sphi 0, %s84
      %s101 = sphi 0, %s85
      %s105 = sphi 0, %s105
      %s107 = sphi 0, %s105
      %s108 = sphi 0, %s107
      %s122 = sphi 0, %s108
      %s126 = sphi 0, %s126
      %s128 = sphi 0, %s126
      %s129 = sphi 0, %s128
      %s143 = sphi 0, %s129
      %s147 = sphi 0, %s147
      %s149 = sphi 0, %s147
      %s150 = sphi 0, %s149
      %s164 = sphi 0, %s150
      %s168 = sphi 0, %s168
      %s170 = sphi 0, %s168
      %s171 = sphi 0, %s170
      %s185 = sphi 0, %s171
      %s189 = sphi 0, %s189
      %s191 = sphi 0, %s189
      %s192 = sphi 0, %s191
      %s206 = sphi 0, %s192
      %s210 = sphi 0, %s210
      %s212 = sphi 0, %s210
      %s213 = sphi 0, %s212
      %s227 = sphi 0, %s213
      %s233 = sphi 0, %s235
      %s236 = sphi 0, %s233
      %s237 = sphi 0, %s236
      %s253 = sphi 0, %s237
    $region4: #{tpu_custom_call.1} parent=1 // loop_header_branch
      %22 = sbr.rel (%p20) target = $region8
    $region5: #{tpu_custom_call.1} parent=1 // loop_body
      %s24 = ssub.s32 %s19, 1
      %s25 = ssub.s32 %s19, 2
      %s26 = sadd.s32 %s19, 1
      %s27 = ssub.s32 %s19, %s26
      %p28 = scmp.eq.s32.totalorder %s27, 0
      %s30 = sadd.s32 %s29, 1
      %s31 = scalar_select %p28, %s29, %s30
      %p34 = pneg %p28
      %p35 = scmp.eq.s32.totalorder %s19, 1
      %p36 = por %p34, %p35
      %p37 = scmp.ne.s32.totalorder %s29, %s32
      %p38 = scmp.eq.s32.totalorder %s19, 0
      %p39 = por %p37, %p38
      %p40 = scmp.ne.s32.totalorder %s29, %s32
      %p41 = scmp.eq.s32.totalorder %s24, 1
      %p42 = por %p40, %p41
      %p43 = scmp.ne.s32.totalorder %s32, %s33
      %p44 = scmp.eq.s32.totalorder %s24, 0
      %p45 = por %p43, %p44
      %p46 = scmp.ne.s32.totalorder %s32, %s33
      %p47 = scmp.eq.s32.totalorder %s25, 1
      %p48 = por %p46, %p47
      %p50 = scmp.ne.s32.totalorder %s33, %s49
      %p51 = scmp.eq.s32.totalorder %s25, 0
      %p52 = por %p50, %p51
      %s53 = ssub.s32 %s19, %s26
      %p54 = scmp.eq.s32.totalorder %s53, 0
      %s56 = sadd.s32 %s55, 1
      %s57 = scalar_select %p54, %s55, %s56
      %p60 = pneg %p54
      %p61 = scmp.eq.s32.totalorder %s19, 1
      %p62 = por %p60, %p61
      %p63 = scmp.ne.s32.totalorder %s55, %s58
      %p64 = scmp.eq.s32.totalorder %s19, 0
      %p65 = por %p63, %p64
      %p66 = scmp.ne.s32.totalorder %s55, %s58
      %p67 = scmp.eq.s32.totalorder %s24, 1
      %p68 = por %p66, %p67
      %p69 = scmp.ne.s32.totalorder %s58, %s59
      %p70 = scmp.eq.s32.totalorder %s24, 0
      %p71 = por %p69, %p70
      %p72 = scmp.ne.s32.totalorder %s58, %s59
      %p73 = scmp.eq.s32.totalorder %s25, 1
      %p74 = por %p72, %p73
      %p76 = scmp.ne.s32.totalorder %s59, %s75
      %p77 = scmp.eq.s32.totalorder %s25, 0
      %p78 = por %p76, %p77
      %s79 = ssub.s32 %s19, %s26
      %p80 = scmp.eq.s32.totalorder %s79, 0
      %s82 = sadd.s32 %s81, 1
      %s83 = scalar_select %p80, %s81, %s82
      %p86 = pneg %p80
      %p87 = scmp.eq.s32.totalorder %s19, 1
      %p88 = por %p86, %p87
      %p89 = scmp.ne.s32.totalorder %s81, %s84
      %p90 = scmp.eq.s32.totalorder %s19, 0
      %p91 = por %p89, %p90
      %p92 = scmp.ne.s32.totalorder %s81, %s84
      %p93 = scmp.eq.s32.totalorder %s24, 1
      %p94 = por %p92, %p93
      %p95 = scmp.ne.s32.totalorder %s84, %s85
      %p96 = scmp.eq.s32.totalorder %s24, 0
      %p97 = por %p95, %p96
      %p98 = scmp.ne.s32.totalorder %s84, %s85
      %p99 = scmp.eq.s32.totalorder %s25, 1
      %p100 = por %p98, %p99
      %p102 = scmp.ne.s32.totalorder %s85, %s101
      %p103 = scmp.eq.s32.totalorder %s25, 0
      %p104 = por %p102, %p103
      %s106 = sadd.s32 %s105, 1
      %p109 = scmp.eq.s32.totalorder %s19, 1
      %p110 = scmp.ne.s32.totalorder %s105, %s107
      %p111 = scmp.eq.s32.totalorder %s19, 0
      %p112 = por %p110, %p111
      %p113 = scmp.ne.s32.totalorder %s105, %s107
      %p114 = scmp.eq.s32.totalorder %s24, 1
      %p115 = por %p113, %p114
      %p116 = scmp.ne.s32.totalorder %s107, %s108
      %p117 = scmp.eq.s32.totalorder %s24, 0
      %p118 = por %p116, %p117
      %p119 = scmp.ne.s32.totalorder %s107, %s108
      %p120 = scmp.eq.s32.totalorder %s25, 1
      %p121 = por %p119, %p120
      %p123 = scmp.ne.s32.totalorder %s108, %s122
      %p124 = scmp.eq.s32.totalorder %s25, 0
      %p125 = por %p123, %p124
      %s127 = sadd.s32 %s126, 1
      %p130 = scmp.eq.s32.totalorder %s19, 1
      %p131 = scmp.ne.s32.totalorder %s126, %s128
      %p132 = scmp.eq.s32.totalorder %s19, 0
      %p133 = por %p131, %p132
      %p134 = scmp.ne.s32.totalorder %s126, %s128
      %p135 = scmp.eq.s32.totalorder %s24, 1
      %p136 = por %p134, %p135
      %p137 = scmp.ne.s32.totalorder %s128, %s129
      %p138 = scmp.eq.s32.totalorder %s24, 0
      %p139 = por %p137, %p138
      %p140 = scmp.ne.s32.totalorder %s128, %s129
      %p141 = scmp.eq.s32.totalorder %s25, 1
      %p142 = por %p140, %p141
      %p144 = scmp.ne.s32.totalorder %s129, %s143
      %p145 = scmp.eq.s32.totalorder %s25, 0
      %p146 = por %p144, %p145
      %s148 = sadd.s32 %s147, 1
      %p151 = scmp.eq.s32.totalorder %s19, 1
      %p152 = scmp.ne.s32.totalorder %s147, %s149
      %p153 = scmp.eq.s32.totalorder %s19, 0
      %p154 = por %p152, %p153
      %p155 = scmp.ne.s32.totalorder %s147, %s149
      %p156 = scmp.eq.s32.totalorder %s24, 1
      %p157 = por %p155, %p156
      %p158 = scmp.ne.s32.totalorder %s149, %s150
      %p159 = scmp.eq.s32.totalorder %s24, 0
      %p160 = por %p158, %p159
      %p161 = scmp.ne.s32.totalorder %s149, %s150
      %p162 = scmp.eq.s32.totalorder %s25, 1
      %p163 = por %p161, %p162
      %p165 = scmp.ne.s32.totalorder %s150, %s164
      %p166 = scmp.eq.s32.totalorder %s25, 0
      %p167 = por %p165, %p166
      %s169 = sadd.s32 %s168, 1
      %p172 = scmp.eq.s32.totalorder %s19, 1
      %p173 = scmp.ne.s32.totalorder %s168, %s170
      %p174 = scmp.eq.s32.totalorder %s19, 0
      %p175 = por %p173, %p174
      %p176 = scmp.ne.s32.totalorder %s168, %s170
      %p177 = scmp.eq.s32.totalorder %s24, 1
      %p178 = por %p176, %p177
      %p179 = scmp.ne.s32.totalorder %s170, %s171
      %p180 = scmp.eq.s32.totalorder %s24, 0
      %p181 = por %p179, %p180
      %p182 = scmp.ne.s32.totalorder %s170, %s171
      %p183 = scmp.eq.s32.totalorder %s25, 1
      %p184 = por %p182, %p183
      %p186 = scmp.ne.s32.totalorder %s171, %s185
      %p187 = scmp.eq.s32.totalorder %s25, 0
      %p188 = por %p186, %p187
      %s190 = sadd.s32 %s189, 1
      %p193 = scmp.eq.s32.totalorder %s19, 1
      %p194 = scmp.ne.s32.totalorder %s189, %s191
      %p195 = scmp.eq.s32.totalorder %s19, 0
      %p196 = por %p194, %p195
      %p197 = scmp.ne.s32.totalorder %s189, %s191
      %p198 = scmp.eq.s32.totalorder %s24, 1
      %p199 = por %p197, %p198
      %p200 = scmp.ne.s32.totalorder %s191, %s192
      %p201 = scmp.eq.s32.totalorder %s24, 0
      %p202 = por %p200, %p201
      %p203 = scmp.ne.s32.totalorder %s191, %s192
      %p204 = scmp.eq.s32.totalorder %s25, 1
      %p205 = por %p203, %p204
      %p207 = scmp.ne.s32.totalorder %s192, %s206
      %p208 = scmp.eq.s32.totalorder %s25, 0
      %p209 = por %p207, %p208
      %s211 = sadd.s32 %s210, 1
      %p214 = scmp.eq.s32.totalorder %s19, 1
      %p215 = scmp.ne.s32.totalorder %s210, %s212
      %p216 = scmp.eq.s32.totalorder %s19, 0
      %p217 = por %p215, %p216
      %p218 = scmp.ne.s32.totalorder %s210, %s212
      %p219 = scmp.eq.s32.totalorder %s24, 1
      %p220 = por %p218, %p219
      %p221 = scmp.ne.s32.totalorder %s212, %s213
      %p222 = scmp.eq.s32.totalorder %s24, 0
      %p223 = por %p221, %p222
      %p224 = scmp.ne.s32.totalorder %s212, %s213
      %p225 = scmp.eq.s32.totalorder %s25, 1
      %p226 = por %p224, %p225
      %p228 = scmp.ne.s32.totalorder %s213, %s227
      %p229 = scmp.eq.s32.totalorder %s25, 0
      %p230 = por %p228, %p229
      %s231 = ssub.s32 %s19, %s26
      %p232 = scmp.eq.s32.totalorder %s231, 0
      %s234 = sadd.s32 %s233, 1
      %s235 = scalar_select %p232, %s233, %s234
      %p238 = pneg %p232
      %p239 = scmp.eq.s32.totalorder %s19, 1
      %p240 = por %p238, %p239
      %p241 = scmp.ne.s32.totalorder %s233, %s236
      %p242 = scmp.eq.s32.totalorder %s19, 0
      %p243 = por %p241, %p242
      %p244 = scmp.ne.s32.totalorder %s233, %s236
      %p245 = scmp.eq.s32.totalorder %s24, 1
      %p246 = por %p244, %p245
      %p247 = scmp.ne.s32.totalorder %s236, %s237
      %p248 = scmp.eq.s32.totalorder %s24, 0
      %p249 = por %p247, %p248
      %p250 = scmp.ne.s32.totalorder %s236, %s237
      %p251 = scmp.eq.s32.totalorder %s25, 1
      %p252 = por %p250, %p251
      %p254 = scmp.ne.s32.totalorder %s237, %s253
      %p255 = scmp.eq.s32.totalorder %s25, 0
      %p256 = por %p254, %p255
      %p257 = scmp.le.s32.totalorder 1, %s19
      %p258 = scmp.lt.s32.totalorder %s19, 3
      %p259 = pnand %p257, %p258
      %p260 = pneg %p259
      // Predicated region
      $region9: #{tpu_custom_call.1} parent=5 // pred_check
        _
      $region10: #{tpu_custom_call.1} parent=5 // pred_check_branch
        %262 = sbr.rel (%p259) target = $region12
      $region11: #{tpu_custom_call.1} parent=5 // pred_region
        %s263 = ssub.s32 %s19, 1
        // Predicated region
        $region13: #{tpu_custom_call.1} parent=11 // pred_check
          %p264 = pneg %p118
        $region14: #{tpu_custom_call.1} parent=11 // pred_check_branch
          %266 = sbr.rel (%p264) target = $region16
        $region15: #{tpu_custom_call.1} parent=11 // pred_region
          _
        $region16: #{tpu_custom_call.1} parent=11 // pred_fallthru
          _
        // Predicated region
        $region17: #{tpu_custom_call.1} parent=11 // pred_check
          %p267 = pneg %p139
        $region18: #{tpu_custom_call.1} parent=11 // pred_check_branch
          %269 = sbr.rel (%p267) target = $region20
        $region19: #{tpu_custom_call.1} parent=11 // pred_region
          _
        $region20: #{tpu_custom_call.1} parent=11 // pred_fallthru
          _
        // Predicated region
        $region21: #{tpu_custom_call.1} parent=11 // pred_check
          %p270 = pneg %p160
        $region22: #{tpu_custom_call.1} parent=11 // pred_check_branch
          %272 = sbr.rel (%p270) target = $region24
        $region23: #{tpu_custom_call.1} parent=11 // pred_region
          _
        $region24: #{tpu_custom_call.1} parent=11 // pred_fallthru
          _
        // Predicated region
        $region25: #{tpu_custom_call.1} parent=11 // pred_check
          %p273 = pneg %p181
        $region26: #{tpu_custom_call.1} parent=11 // pred_check_branch
          %275 = sbr.rel (%p273) target = $region28
        $region27: #{tpu_custom_call.1} parent=11 // pred_region
          _
        $region28: #{tpu_custom_call.1} parent=11 // pred_fallthru
          _
        // Predicated region
        $region29: #{tpu_custom_call.1} parent=11 // pred_check
          %p276 = pneg %p202
        $region30: #{tpu_custom_call.1} parent=11 // pred_check_branch
          %278 = sbr.rel (%p276) target = $region32
        $region31: #{tpu_custom_call.1} parent=11 // pred_region
          _
        $region32: #{tpu_custom_call.1} parent=11 // pred_fallthru
          _
        // Predicated region
        $region33: #{tpu_custom_call.1} parent=11 // pred_check
          %p279 = pneg %p223
        $region34: #{tpu_custom_call.1} parent=11 // pred_check_branch
          %281 = sbr.rel (%p279) target = $region36
        $region35: #{tpu_custom_call.1} parent=11 // pred_region
          _
        $region36: #{tpu_custom_call.1} parent=11 // pred_fallthru
          _
      $region12: #{tpu_custom_call.1} parent=5 // pred_fallthru
        _
      %p282 = scmp.lt.s32.totalorder %s19, 2
      // Predicated region
      $region37: #{tpu_custom_call.1} parent=5 // pred_check
        %p283 = pneg %p282
      $region38: #{tpu_custom_call.1} parent=5 // pred_check_branch
        %285 = sbr.rel (%p283) target = $region40
      $region39: #{tpu_custom_call.1} parent=5 // pred_region
        // Predicated region
        $region41: #{tpu_custom_call.1} parent=39 // pred_check
          %p286 = pneg %p39
        $region42: #{tpu_custom_call.1} parent=39 // pred_check_branch
          %288 = sbr.rel (%p286) target = $region44
        $region43: #{tpu_custom_call.1} parent=39 // pred_region
          %p289 = scmp.lt.s32.totalorder %s19, 1
          %s290 = scalar_select %p289, %s19, 1
          %s291 = smul.addr %s290, 8
          %s292 = scalar_lea.vmem %s0, %s291
        $region44: #{tpu_custom_call.1} parent=39 // pred_fallthru
          _
        // Predicated region
        $region45: #{tpu_custom_call.1} parent=39 // pred_check
          %p293 = pneg %p65
        $region46: #{tpu_custom_call.1} parent=39 // pred_check_branch
          %295 = sbr.rel (%p293) target = $region48
        $region47: #{tpu_custom_call.1} parent=39 // pred_region
          %s296 = smul.u32 8, %s19
          %p297 = scmp.lt.s32.totalorder %s296, 15
          %s298 = scalar_select %p297, %s296, 15
          %s299 = smul.addr %s298, 16
          %s300 = smul.addr %s299, 8
          %s301 = scalar_lea.vmem %s1, %s300
          %s302 = smul.u32 8, %s19
        $region48: #{tpu_custom_call.1} parent=39 // pred_fallthru
          _
        // Predicated region
        $region49: #{tpu_custom_call.1} parent=39 // pred_check
          %p303 = pneg %p91
        $region50: #{tpu_custom_call.1} parent=39 // pred_check_branch
          %305 = sbr.rel (%p303) target = $region52
        $region51: #{tpu_custom_call.1} parent=39 // pred_region
          %p306 = scmp.lt.s32.totalorder %s19, 1
          %s307 = scalar_select %p306, %s19, 1
          %s308 = smul.addr %s307, 8
          %s309 = scalar_lea.vmem %s2, %s308
        $region52: #{tpu_custom_call.1} parent=39 // pred_fallthru
          _
      $region40: #{tpu_custom_call.1} parent=5 // pred_fallthru
        _
      %p310 = scmp.le.s32.totalorder 1, %s19
      %p311 = scmp.lt.s32.totalorder %s19, 3
      %p312 = pnand %p310, %p311
      %p313 = pneg %p312
      // Predicated region
      $region53: #{tpu_custom_call.1} parent=5 // pred_check
        _
      $region54: #{tpu_custom_call.1} parent=5 // pred_check_branch
        %315 = sbr.rel (%p312) target = $region56
      $region55: #{tpu_custom_call.1} parent=5 // pred_region
        %s316 = ssub.s32 %s19, 1
        %p317 = scmp.lt.s32.totalorder %s24, 1
        %s318 = scalar_select %p317, %s24, 1
        %s319 = smul.addr %s318, 8
        %s320 = scalar_lea.vmem %s0, %s319
        %p321 = pneg %p45
        %p322 = pneg %p42
        %s323 = smul.u32 8, %s24
        %p324 = scmp.lt.s32.totalorder %s323, 15
        %s325 = scalar_select %p324, %s323, 15
        %s326 = smul.addr %s325, 16
        %s327 = smul.addr %s326, 8
        %s328 = scalar_lea.vmem %s1, %s327
        %p329 = pneg %p71
        %p330 = pneg %p68
        %p331 = scmp.lt.s32.totalorder %s24, 1
        %s332 = scalar_select %p331, %s24, 1
        %s333 = smul.addr %s332, 8
        %s334 = scalar_lea.vmem %s2, %s333
        %p335 = pneg %p97
        %p336 = pneg %p94
        %p337 = pneg %p118
        %p338 = pneg %p115
        %p339 = pneg %p139
        %p340 = pneg %p136
        %p341 = pneg %p160
        %p342 = pneg %p157
        %p343 = pneg %p181
        %p344 = pneg %p178
        %p345 = pneg %p202
        %p346 = pneg %p199
        %p347 = pneg %p223
        %p348 = pneg %p220
        %p349 = pneg %p249
        %p350 = pneg %p246
        %s351 = sand.u32 %s236, 1
        %s352 = scalar_lea.sflag [#allocation4], %s351
        %s353 = sand.u32 %s236, 1
        %s354 = smul.addr %s353, 8
        %s355 = scalar_lea.vmem [#allocation3], %s354
        %p356 = scmp.lt.s32.totalorder %s24, 1
        %s357 = scalar_select %p356, %s24, 1
        %s358 = smul.addr %s357, 8
        %s359 = scalar_lea.vmem %s0, %s358
        %s360 = smul.u32 8, %s24
        %p361 = scmp.lt.s32.totalorder %s360, 15
        %s362 = scalar_select %p361, %s360, 15
        %s363 = smul.addr %s362, 16
        %s364 = smul.addr %s363, 8
        %s365 = scalar_lea.vmem %s1, %s364
        %s366 = smul.u32 8, %s24
        %p367 = scmp.lt.s32.totalorder %s24, 1
        %s368 = scalar_select %p367, %s24, 1
        %s369 = smul.addr %s368, 8
        %s370 = scalar_lea.vmem %s2, %s369
        %v371 = vld [vmem:[%s359] sm:$0xff]
        %v372 = vld [vmem:[%s365] sm:$0xff]
        %v373 = vld [vmem:[%s365 + $0x8] sm:$0xff]
        %v374 = vld [vmem:[%s365 + $0x10] sm:$0xff]
        %v375 = vld [vmem:[%s365 + $0x18] sm:$0xff]
        %v376 = vld [vmem:[%s365 + $0x20] sm:$0xff]
        %v377 = vld [vmem:[%s365 + $0x28] sm:$0xff]
        %v378 = vld [vmem:[%s365 + $0x30] sm:$0xff]
        %v379 = vld [vmem:[%s365 + $0x38] sm:$0xff]
        %v380 = vld [vmem:[%s365 + $0x40] sm:$0xff]
        %v381 = vld [vmem:[%s365 + $0x48] sm:$0xff]
        %v382 = vld [vmem:[%s365 + $0x50] sm:$0xff]
        %v383 = vld [vmem:[%s365 + $0x58] sm:$0xff]
        %v384 = vld [vmem:[%s365 + $0x60] sm:$0xff]
        %v385 = vld [vmem:[%s365 + $0x68] sm:$0xff]
        %v386 = vld [vmem:[%s365 + $0x70] sm:$0xff]
        %v387 = vld [vmem:[%s365 + $0x78] sm:$0xff]
        %v388 = vld [vmem:[%s365 + $0x80] sm:$0xff]
        %v389 = vld [vmem:[%s365 + $0x88] sm:$0xff]
        %v390 = vld [vmem:[%s365 + $0x90] sm:$0xff]
        %v391 = vld [vmem:[%s365 + $0x98] sm:$0xff]
        %v392 = vld [vmem:[%s365 + $0xa0] sm:$0xff]
        %v393 = vld [vmem:[%s365 + $0xa8] sm:$0xff]
        %v394 = vld [vmem:[%s365 + $0xb0] sm:$0xff]
        %v395 = vld [vmem:[%s365 + $0xb8] sm:$0xff]
        %v396 = vld [vmem:[%s365 + $0xc0] sm:$0xff]
        %v397 = vld [vmem:[%s365 + $0xc8] sm:$0xff]
        %v398 = vld [vmem:[%s365 + $0xd0] sm:$0xff]
        %v399 = vld [vmem:[%s365 + $0xd8] sm:$0xff]
        %v400 = vld [vmem:[%s365 + $0xe0] sm:$0xff]
        %v401 = vld [vmem:[%s365 + $0xe8] sm:$0xff]
        %v402 = vld [vmem:[%s365 + $0xf0] sm:$0xff]
        %v403 = vld [vmem:[%s365 + $0xf8] sm:$0xff]
        %v404 = vld [vmem:[%s365 + $0x100] sm:$0xff]
        %v405 = vld [vmem:[%s365 + $0x108] sm:$0xff]
        %v406 = vld [vmem:[%s365 + $0x110] sm:$0xff]
        %v407 = vld [vmem:[%s365 + $0x118] sm:$0xff]
        %v408 = vld [vmem:[%s365 + $0x120] sm:$0xff]
        %v409 = vld [vmem:[%s365 + $0x128] sm:$0xff]
        %v410 = vld [vmem:[%s365 + $0x130] sm:$0xff]
        %v411 = vld [vmem:[%s365 + $0x138] sm:$0xff]
        %v412 = vld [vmem:[%s365 + $0x140] sm:$0xff]
        %v413 = vld [vmem:[%s365 + $0x148] sm:$0xff]
        %v414 = vld [vmem:[%s365 + $0x150] sm:$0xff]
        %v415 = vld [vmem:[%s365 + $0x158] sm:$0xff]
        %v416 = vld [vmem:[%s365 + $0x160] sm:$0xff]
        %v417 = vld [vmem:[%s365 + $0x168] sm:$0xff]
        %v418 = vld [vmem:[%s365 + $0x170] sm:$0xff]
        %v419 = vld [vmem:[%s365 + $0x178] sm:$0xff]
        %v420 = vld [vmem:[%s365 + $0x180] sm:$0xff]
        %v421 = vld [vmem:[%s365 + $0x188] sm:$0xff]
        %v422 = vld [vmem:[%s365 + $0x190] sm:$0xff]
        %v423 = vld [vmem:[%s365 + $0x198] sm:$0xff]
        %v424 = vld [vmem:[%s365 + $0x1a0] sm:$0xff]
        %v425 = vld [vmem:[%s365 + $0x1a8] sm:$0xff]
        %v426 = vld [vmem:[%s365 + $0x1b0] sm:$0xff]
        %v427 = vld [vmem:[%s365 + $0x1b8] sm:$0xff]
        %v428 = vld [vmem:[%s365 + $0x1c0] sm:$0xff]
        %v429 = vld [vmem:[%s365 + $0x1c8] sm:$0xff]
        %v430 = vld [vmem:[%s365 + $0x1d0] sm:$0xff]
        %v431 = vld [vmem:[%s365 + $0x1d8] sm:$0xff]
        %v432 = vld [vmem:[%s365 + $0x1e0] sm:$0xff]
        %v433 = vld [vmem:[%s365 + $0x1e8] sm:$0xff]
        %v434 = vld [vmem:[%s365 + $0x1f0] sm:$0xff]
        %v435 = vld [vmem:[%s365 + $0x1f8] sm:$0xff]
        %v436 = vld [vmem:[%s365 + $0x200] sm:$0xff]
        %v437 = vld [vmem:[%s365 + $0x208] sm:$0xff]
        %v438 = vld [vmem:[%s365 + $0x210] sm:$0xff]
        %v439 = vld [vmem:[%s365 + $0x218] sm:$0xff]
        %v440 = vld [vmem:[%s365 + $0x220] sm:$0xff]
        %v441 = vld [vmem:[%s365 + $0x228] sm:$0xff]
        %v442 = vld [vmem:[%s365 + $0x230] sm:$0xff]
        %v443 = vld [vmem:[%s365 + $0x238] sm:$0xff]
        %v444 = vld [vmem:[%s365 + $0x240] sm:$0xff]
        %v445 = vld [vmem:[%s365 + $0x248] sm:$0xff]
        %v446 = vld [vmem:[%s365 + $0x250] sm:$0xff]
        %v447 = vld [vmem:[%s365 + $0x258] sm:$0xff]
        %v448 = vld [vmem:[%s365 + $0x260] sm:$0xff]
        %v449 = vld [vmem:[%s365 + $0x268] sm:$0xff]
        %v450 = vld [vmem:[%s365 + $0x270] sm:$0xff]
        %v451 = vld [vmem:[%s365 + $0x278] sm:$0xff]
        %v452 = vld [vmem:[%s365 + $0x280] sm:$0xff]
        %v453 = vld [vmem:[%s365 + $0x288] sm:$0xff]
        %v454 = vld [vmem:[%s365 + $0x290] sm:$0xff]
        %v455 = vld [vmem:[%s365 + $0x298] sm:$0xff]
        %v456 = vld [vmem:[%s365 + $0x2a0] sm:$0xff]
        %v457 = vld [vmem:[%s365 + $0x2a8] sm:$0xff]
        %v458 = vld [vmem:[%s365 + $0x2b0] sm:$0xff]
        %v459 = vld [vmem:[%s365 + $0x2b8] sm:$0xff]
        %v460 = vld [vmem:[%s365 + $0x2c0] sm:$0xff]
        %v461 = vld [vmem:[%s365 + $0x2c8] sm:$0xff]
        %v462 = vld [vmem:[%s365 + $0x2d0] sm:$0xff]
        %v463 = vld [vmem:[%s365 + $0x2d8] sm:$0xff]
        %v464 = vld [vmem:[%s365 + $0x2e0] sm:$0xff]
        %v465 = vld [vmem:[%s365 + $0x2e8] sm:$0xff]
        %v466 = vld [vmem:[%s365 + $0x2f0] sm:$0xff]
        %v467 = vld [vmem:[%s365 + $0x2f8] sm:$0xff]
        %v468 = vld [vmem:[%s365 + $0x300] sm:$0xff]
        %v469 = vld [vmem:[%s365 + $0x308] sm:$0xff]
        %v470 = vld [vmem:[%s365 + $0x310] sm:$0xff]
        %v471 = vld [vmem:[%s365 + $0x318] sm:$0xff]
        %v472 = vld [vmem:[%s365 + $0x320] sm:$0xff]
        %v473 = vld [vmem:[%s365 + $0x328] sm:$0xff]
        %v474 = vld [vmem:[%s365 + $0x330] sm:$0xff]
        %v475 = vld [vmem:[%s365 + $0x338] sm:$0xff]
        %v476 = vld [vmem:[%s365 + $0x340] sm:$0xff]
        %v477 = vld [vmem:[%s365 + $0x348] sm:$0xff]
        %v478 = vld [vmem:[%s365 + $0x350] sm:$0xff]
        %v479 = vld [vmem:[%s365 + $0x358] sm:$0xff]
        %v480 = vld [vmem:[%s365 + $0x360] sm:$0xff]
        %v481 = vld [vmem:[%s365 + $0x368] sm:$0xff]
        %v482 = vld [vmem:[%s365 + $0x370] sm:$0xff]
        %v483 = vld [vmem:[%s365 + $0x378] sm:$0xff]
        %v484 = vld [vmem:[%s365 + $0x380] sm:$0xff]
        %v485 = vld [vmem:[%s365 + $0x388] sm:$0xff]
        %v486 = vld [vmem:[%s365 + $0x390] sm:$0xff]
        %v487 = vld [vmem:[%s365 + $0x398] sm:$0xff]
        %v488 = vld [vmem:[%s365 + $0x3a0] sm:$0xff]
        %v489 = vld [vmem:[%s365 + $0x3a8] sm:$0xff]
        %v490 = vld [vmem:[%s365 + $0x3b0] sm:$0xff]
        %v491 = vld [vmem:[%s365 + $0x3b8] sm:$0xff]
        %v492 = vld [vmem:[%s365 + $0x3c0] sm:$0xff]
        %v493 = vld [vmem:[%s365 + $0x3c8] sm:$0xff]
        %v494 = vld [vmem:[%s365 + $0x3d0] sm:$0xff]
        %v495 = vld [vmem:[%s365 + $0x3d8] sm:$0xff]
        %v496 = vld [vmem:[%s365 + $0x3e0] sm:$0xff]
        %v497 = vld [vmem:[%s365 + $0x3e8] sm:$0xff]
        %v498 = vld [vmem:[%s365 + $0x3f0] sm:$0xff]
        %v499 = vld [vmem:[%s365 + $0x3f8] sm:$0xff]
        %v500 = vld [vmem:[%s3] sm:$0xff]
        %v501 = vld [vmem:[%s3 + $0x8] sm:$0xff]
        %v502 = vld [vmem:[%s3 + $0x10] sm:$0xf]
        %v503 = vld [vmem:[%s6] sm:$0x1]
        %v505 = vlaneseq
        %v506 = vshrl.u32 %v505, 7
        %v507 = vsub.s32 0, %v506
        %v508 = vrot.slane %v503, %v507
        %vm510 = vcmask 162816
        %v512 = vsel %vm510, %v371, 0
        %vm514 = vcmask 1043456
        %v516 = vsel %vm514, %v502, 0
        %518 = vmatprep.subr.mxu0 0.0
        %519 = vmatpush1.msra.mxu0 %v500
        %520 = vmatprep.subr.mxu0 0.0
        %521 = vmatpush1.msra.mxu0 %v501
        %522 = vmatprep.subr.mxu0 0.0
        %523 = vmatpush1.msra.mxu0 %v516
        %524 = vmatprep.subr.mxu0 0.0
        %525 = vmatpush1.msra.mxu0 0.0
        %526 = vmatprep.subr.mxu0 0.0
        %527 = vmatpush1.msra.mxu0 0.0
        %528 = vmatprep.subr.mxu0 0.0
        %529 = vmatpush1.msra.mxu0 0.0
        %530 = vmatprep.subr.mxu0 0.0
        %531 = vmatpush1.msra.mxu0 0.0
        %532 = vmatprep.subr.mxu0 0.0
        %533 = vmatpush1.msra.mxu0 0.0
        %534 = vmatprep.subr.mxu0 0.0
        %535 = vmatpush1.msra.mxu0 0.0
        %536 = vmatprep.subr.mxu0 0.0
        %537 = vmatpush1.msra.mxu0 0.0
        %538 = vmatprep.subr.mxu0 0.0
        %539 = vmatpush1.msra.mxu0 0.0
        %540 = vmatprep.subr.mxu0 0.0
        %541 = vmatpush1.msra.mxu0 0.0
        %542 = vmatprep.subr.mxu0 0.0
        %543 = vmatpush1.msra.mxu0 0.0
        %544 = vmatprep.subr.mxu0 0.0
        %545 = vmatpush1.msra.mxu0 0.0
        %546 = vmatprep.subr.mxu0 0.0
        %547 = vmatpush1.msra.mxu0 0.0
        %548 = vmatprep.subr.mxu0 0.0
        %549 = vmatpush1.msra.mxu0 0.0
        %550 = vmatprep.subr.mxu0 0.0
        %551 = vmatpush1.msra.mxu0 0.0
        %552 = vmatprep.subr.mxu0 0.0
        %553 = vmatpush1.msra.mxu0 0.0
        %554 = vmatprep.subr.mxu0 0.0
        %555 = vmatpush1.msra.mxu0 0.0
        %556 = vmatprep.subr.mxu0 0.0
        %557 = vmatpush1.msra.mxu0 0.0
        %558 = vmatprep.subr.mxu0 0.0
        %559 = vmatpush1.msra.mxu0 0.0
        %560 = vmatprep.subr.mxu0 0.0
        %561 = vmatpush1.msra.mxu0 0.0
        %562 = vmatprep.subr.mxu0 0.0
        %563 = vmatpush1.msra.mxu0 0.0
        %564 = vmatprep.subr.mxu0 0.0
        %565 = vmatpush1.msra.mxu0 0.0
        %566 = vmatprep.subr.mxu0 0.0
        %567 = vmatpush1.msra.mxu0 0.0
        %568 = vmatprep.subr.mxu0 0.0
        %569 = vmatpush1.msra.mxu0 0.0
        %570 = vmatprep.subr.mxu0 0.0
        %571 = vmatpush1.msra.mxu0 0.0
        %572 = vmatprep.subr.mxu0 0.0
        %573 = vmatpush1.msra.mxu0 0.0
        %574 = vmatprep.subr.mxu0 0.0
        %575 = vmatpush1.msra.mxu0 0.0
        %576 = vmatprep.subr.mxu0 0.0
        %577 = vmatpush1.msra.mxu0 0.0
        %578 = vmatprep.subr.mxu0 0.0
        %579 = vmatpush1.msra.mxu0 0.0
        %580 = vmatprep.subr.mxu0 0.0
        %581 = vmatpush1.msra.mxu0 0.0
        %582 = vmatprep.mubr.f32.mxu0 0.0
        %583 = vmatmul.mubr.f32.gmra.mrb[0].mxu0 %v512
        %v584 = vpop.f32.mrb[0].mxu0
        %v585 = vadd.f32 %v508, %v584
        %v586 = vpop.f32.mrb[0].mxu0
        %587 = vdwg.mxu0
        %v588 = vld [vmem:[%s4] sm:$0xff]
        %v589 = vld [vmem:[%s4 + $0x8] sm:$0xff]
        %v590 = vld [vmem:[%s4 + $0x10] sm:$0xf]
        %v591 = vlaneseq
        %v592 = vshrl.u32 %v591, 7
        %v593 = vsub.s32 0, %v592
        %v594 = vrot.slane %v371, %v593
        %596 = vbcast.lane.b32.xlu0 %v594, 256
        %v597 = vpop.permute.xlu0 %596
        %s599 = sor.u32 256, 8
        %600 = vbcast.lane.b32.xlu0 %v594, %s599
        %v601 = vpop.permute.xlu0 %600
        %s603 = sor.u32 256, 16
        %604 = vbcast.lane.b32.xlu0 %v594, %s603
        %v605 = vpop.permute.xlu0 %604
        %v606 = vlaneseq
        %v607 = vshrl.u32 %v606, 7
        %v608 = vsub.s32 1, %v607
        %v609 = vrot.slane %v371, %v608
        %611 = vbcast.lane.b32.xlu0 %v609, 256
        %v612 = vpop.permute.xlu0 %611
        %s614 = sor.u32 256, 8
        %615 = vbcast.lane.b32.xlu0 %v609, %s614
        %v616 = vpop.permute.xlu0 %615
        %s618 = sor.u32 256, 16
        %619 = vbcast.lane.b32.xlu0 %v609, %s618
        %v620 = vpop.permute.xlu0 %619
        %v621 = vlaneseq
        %v622 = vshrl.u32 %v621, 7
        %v623 = vsub.s32 2, %v622
        %v624 = vrot.slane %v371, %v623
        %626 = vbcast.lane.b32.xlu0 %v624, 256
        %v627 = vpop.permute.xlu0 %626
        %s629 = sor.u32 256, 8
        %630 = vbcast.lane.b32.xlu0 %v624, %s629
        %v631 = vpop.permute.xlu0 %630
        %s633 = sor.u32 256, 16
        %634 = vbcast.lane.b32.xlu0 %v624, %s633
        %v635 = vpop.permute.xlu0 %634
        %v636 = vlaneseq
        %v637 = vshrl.u32 %v636, 7
        %v638 = vsub.s32 3, %v637
        %v639 = vrot.slane %v371, %v638
        %641 = vbcast.lane.b32.xlu0 %v639, 256
        %v642 = vpop.permute.xlu0 %641
        %s644 = sor.u32 256, 8
        %645 = vbcast.lane.b32.xlu0 %v639, %s644
        %v646 = vpop.permute.xlu0 %645
        %s648 = sor.u32 256, 16
        %649 = vbcast.lane.b32.xlu0 %v639, %s648
        %v650 = vpop.permute.xlu0 %649
        %v651 = vlaneseq
        %v652 = vshrl.u32 %v651, 7
        %v653 = vsub.s32 4, %v652
        %v654 = vrot.slane %v371, %v653
        %656 = vbcast.lane.b32.xlu0 %v654, 256
        %v657 = vpop.permute.xlu0 %656
        %s659 = sor.u32 256, 8
        %660 = vbcast.lane.b32.xlu0 %v654, %s659
        %v661 = vpop.permute.xlu0 %660
        %s663 = sor.u32 256, 16
        %664 = vbcast.lane.b32.xlu0 %v654, %s663
        %v665 = vpop.permute.xlu0 %664
        %v666 = vlaneseq
        %v667 = vshrl.u32 %v666, 7
        %v668 = vsub.s32 5, %v667
        %v669 = vrot.slane %v371, %v668
        %671 = vbcast.lane.b32.xlu0 %v669, 256
        %v672 = vpop.permute.xlu0 %671
        %s674 = sor.u32 256, 8
        %675 = vbcast.lane.b32.xlu0 %v669, %s674
        %v676 = vpop.permute.xlu0 %675
        %s678 = sor.u32 256, 16
        %679 = vbcast.lane.b32.xlu0 %v669, %s678
        %v680 = vpop.permute.xlu0 %679
        %v681 = vlaneseq
        %v682 = vshrl.u32 %v681, 7
        %v683 = vsub.s32 6, %v682
        %v684 = vrot.slane %v371, %v683
        %686 = vbcast.lane.b32.xlu0 %v684, 256
        %v687 = vpop.permute.xlu0 %686
        %s689 = sor.u32 256, 8
        %690 = vbcast.lane.b32.xlu0 %v684, %s689
        %v691 = vpop.permute.xlu0 %690
        %s693 = sor.u32 256, 16
        %694 = vbcast.lane.b32.xlu0 %v684, %s693
        %v695 = vpop.permute.xlu0 %694
        %v696 = vlaneseq
        %v697 = vshrl.u32 %v696, 7
        %v698 = vsub.s32 7, %v697
        %v699 = vrot.slane %v371, %v698
        %701 = vbcast.lane.b32.xlu0 %v699, 256
        %v702 = vpop.permute.xlu0 %701
        %s704 = sor.u32 256, 8
        %705 = vbcast.lane.b32.xlu0 %v699, %s704
        %v706 = vpop.permute.xlu0 %705
        %s708 = sor.u32 256, 16
        %709 = vbcast.lane.b32.xlu0 %v699, %s708
        %v710 = vpop.permute.xlu0 %709
        %v711 = vld [vmem:[%s5] sm:$0xff]
        %v712 = vld [vmem:[%s5 + $0x8] sm:$0xff]
        %v713 = vld [vmem:[%s5 + $0x10] sm:$0xf]
        %v714 = vmul.f32 %v597, %v711
        %v715 = vmul.f32 %v601, %v712
        %v716 = vmul.f32 %v605, %v713
        %v717 = vmul.f32 %v612, %v711
        %v718 = vmul.f32 %v616, %v712
        %v719 = vmul.f32 %v620, %v713
        %v720 = vmul.f32 %v627, %v711
        %v721 = vmul.f32 %v631, %v712
        %v722 = vmul.f32 %v635, %v713
        %v723 = vmul.f32 %v642, %v711
        %v724 = vmul.f32 %v646, %v712
        %v725 = vmul.f32 %v650, %v713
        %v726 = vmul.f32 %v657, %v711
        %v727 = vmul.f32 %v661, %v712
        %v728 = vmul.f32 %v665, %v713
        %v729 = vmul.f32 %v672, %v711
        %v730 = vmul.f32 %v676, %v712
        %v731 = vmul.f32 %v680, %v713
        %v732 = vmul.f32 %v687, %v711
        %v733 = vmul.f32 %v691, %v712
        %v734 = vmul.f32 %v695, %v713
        %v735 = vmul.f32 %v702, %v711
        %v736 = vmul.f32 %v706, %v712
        %v737 = vmul.f32 %v710, %v713
        %v738 = vadd.f32 %v588, %v714
        %v739 = vadd.f32 %v589, %v715
        %v740 = vadd.f32 %v590, %v716
        %v741 = vadd.f32 %v588, %v717
        %v742 = vadd.f32 %v589, %v718
        %v743 = vadd.f32 %v590, %v719
        %v744 = vadd.f32 %v588, %v720
        %v745 = vadd.f32 %v589, %v721
        %v746 = vadd.f32 %v590, %v722
        %v747 = vadd.f32 %v588, %v723
        %v748 = vadd.f32 %v589, %v724
        %v749 = vadd.f32 %v590, %v725
        %v750 = vadd.f32 %v588, %v726
        %v751 = vadd.f32 %v589, %v727
        %v752 = vadd.f32 %v590, %v728
        %v753 = vadd.f32 %v588, %v729
        %v754 = vadd.f32 %v589, %v730
        %v755 = vadd.f32 %v590, %v731
        %v756 = vadd.f32 %v588, %v732
        %v757 = vadd.f32 %v589, %v733
        %v758 = vadd.f32 %v590, %v734
        %v759 = vadd.f32 %v588, %v735
        %v760 = vadd.f32 %v589, %v736
        %v761 = vadd.f32 %v590, %v737
        %v763 = vsel %vm510, %v372, 0
        %v766 = vsel %vm510, %v373, 0
        %v769 = vsel %vm510, %v374, 0
        %v772 = vsel %vm510, %v375, 0
        %v775 = vsel %vm510, %v376, 0
        %v778 = vsel %vm510, %v377, 0
        %v781 = vsel %vm510, %v378, 0
        %v784 = vsel %vm510, %v379, 0
        %v787 = vsel %vm510, %v380, 0
        %v790 = vsel %vm510, %v381, 0
        %v793 = vsel %vm510, %v382, 0
        %v796 = vsel %vm510, %v383, 0
        %v799 = vsel %vm510, %v384, 0
        %v802 = vsel %vm510, %v385, 0
        %v805 = vsel %vm510, %v386, 0
        %v808 = vsel %vm510, %v387, 0
        %v811 = vsel %vm514, %v740, 0
        %813 = vmatprep.subr.mxu0 0.0
        %814 = vmatpush1.msra.mxu0 %v738
        %815 = vmatprep.subr.mxu0 0.0
        %816 = vmatpush1.msra.mxu0 %v739
        %817 = vmatprep.subr.mxu0 0.0
        %818 = vmatpush1.msra.mxu0 %v811
        %819 = vmatprep.subr.mxu0 0.0
        %820 = vmatpush1.msra.mxu0 0.0
        %821 = vmatprep.subr.mxu0 0.0
        %822 = vmatpush1.msra.mxu0 0.0
        %823 = vmatprep.subr.mxu0 0.0
        %824 = vmatpush1.msra.mxu0 0.0
        %825 = vmatprep.subr.mxu0 0.0
        %826 = vmatpush1.msra.mxu0 0.0
        %827 = vmatprep.subr.mxu0 0.0
        %828 = vmatpush1.msra.mxu0 0.0
        %829 = vmatprep.subr.mxu0 0.0
        %830 = vmatpush1.msra.mxu0 0.0
        %831 = vmatprep.subr.mxu0 0.0
        %832 = vmatpush1.msra.mxu0 0.0
        %833 = vmatprep.subr.mxu0 0.0
        %834 = vmatpush1.msra.mxu0 0.0
        %835 = vmatprep.subr.mxu0 0.0
        %836 = vmatpush1.msra.mxu0 0.0
        %837 = vmatprep.subr.mxu0 0.0
        %838 = vmatpush1.msra.mxu0 0.0
        %839 = vmatprep.subr.mxu0 0.0
        %840 = vmatpush1.msra.mxu0 0.0
        %841 = vmatprep.subr.mxu0 0.0
        %842 = vmatpush1.msra.mxu0 0.0
        %843 = vmatprep.subr.mxu0 0.0
        %844 = vmatpush1.msra.mxu0 0.0
        %845 = vmatprep.subr.mxu0 0.0
        %846 = vmatpush1.msra.mxu0 0.0
        %847 = vmatprep.subr.mxu0 0.0
        %848 = vmatpush1.msra.mxu0 0.0
        %849 = vmatprep.subr.mxu0 0.0
        %850 = vmatpush1.msra.mxu0 0.0
        %851 = vmatprep.subr.mxu0 0.0
        %852 = vmatpush1.msra.mxu0 0.0
        %853 = vmatprep.subr.mxu0 0.0
        %854 = vmatpush1.msra.mxu0 0.0
        %855 = vmatprep.subr.mxu0 0.0
        %856 = vmatpush1.msra.mxu0 0.0
        %857 = vmatprep.subr.mxu0 0.0
        %858 = vmatpush1.msra.mxu0 0.0
        %859 = vmatprep.subr.mxu0 0.0
        %860 = vmatpush1.msra.mxu0 0.0
        %861 = vmatprep.subr.mxu0 0.0
        %862 = vmatpush1.msra.mxu0 0.0
        %863 = vmatprep.subr.mxu0 0.0
        %864 = vmatpush1.msra.mxu0 0.0
        %865 = vmatprep.subr.mxu0 0.0
        %866 = vmatpush1.msra.mxu0 0.0
        %867 = vmatprep.subr.mxu0 0.0
        %868 = vmatpush1.msra.mxu0 0.0
        %869 = vmatprep.subr.mxu0 0.0
        %870 = vmatpush1.msra.mxu0 0.0
        %871 = vmatprep.subr.mxu0 0.0
        %872 = vmatpush1.msra.mxu0 0.0
        %873 = vmatprep.subr.mxu0 0.0
        %874 = vmatpush1.msra.mxu0 0.0
        %875 = vmatprep.subr.mxu0 0.0
        %876 = vmatpush1.msra.mxu0 0.0
        %877 = vmatprep.mubr.f32.mxu0 0.0
        %878 = vmatmul.mubr.f32.gmra.mrb[0].mxu0 %v763
        %v879 = vpop.f32.mrb[0].mxu0
        %v880 = vadd.f32 0.0, %v879
        %v881 = vpop.f32.mrb[0].mxu0
        %882 = vmatprep.mubr.f32.mxu0 0.0
        %883 = vmatmul.mubr.f32.gmra.mrb[0].mxu0 %v766
        %v884 = vpop.f32.mrb[0].mxu0
        %v885 = vadd.f32 0.0, %v884
        %v886 = vpop.f32.mrb[0].mxu0
        %887 = vmatprep.mubr.f32.mxu0 0.0
        %888 = vmatmul.mubr.f32.gmra.mrb[0].mxu0 %v769
        %v889 = vpop.f32.mrb[0].mxu0
        %v890 = vadd.f32 0.0, %v889
        %v891 = vpop.f32.mrb[0].mxu0
        %892 = vmatprep.mubr.f32.mxu0 0.0
        %893 = vmatmul.mubr.f32.gmra.mrb[0].mxu0 %v772
        %v894 = vpop.f32.mrb[0].mxu0
        %v895 = vadd.f32 0.0, %v894
        %v896 = vpop.f32.mrb[0].mxu0
        %897 = vmatprep.mubr.f32.mxu0 0.0
        %898 = vmatmul.mubr.f32.gmra.mrb[0].mxu0 %v775
        %v899 = vpop.f32.mrb[0].mxu0
        %v900 = vadd.f32 0.0, %v899
        %v901 = vpop.f32.mrb[0].mxu0
        %902 = vmatprep.mubr.f32.mxu0 0.0
        %903 = vmatmul.mubr.f32.gmra.mrb[0].mxu0 %v778
        %v904 = vpop.f32.mrb[0].mxu0
        %v905 = vadd.f32 0.0, %v904
        %v906 = vpop.f32.mrb[0].mxu0
        %907 = vmatprep.mubr.f32.mxu0 0.0
        %908 = vmatmul.mubr.f32.gmra.mrb[0].mxu0 %v781
        %v909 = vpop.f32.mrb[0].mxu0
        %v910 = vadd.f32 0.0, %v909
        %v911 = vpop.f32.mrb[0].mxu0
        %912 = vmatprep.mubr.f32.mxu0 0.0
        %913 = vmatmul.mubr.f32.gmra.mrb[0].mxu0 %v784
        %v914 = vpop.f32.mrb[0].mxu0
        %v915 = vadd.f32 0.0, %v914
        %v916 = vpop.f32.mrb[0].mxu0
        %917 = vmatprep.mubr.f32.mxu0 0.0
        %918 = vmatmul.mubr.f32.gmra.mrb[0].mxu0 %v787
        %v919 = vpop.f32.mrb[0].mxu0
        %v920 = vadd.f32 0.0, %v919
        %v921 = vpop.f32.mrb[0].mxu0
        %922 = vmatprep.mubr.f32.mxu0 0.0
        %923 = vmatmul.mubr.f32.gmra.mrb[0].mxu0 %v790
        %v924 = vpop.f32.mrb[0].mxu0
        %v925 = vadd.f32 0.0, %v924
        %v926 = vpop.f32.mrb[0].mxu0
        %927 = vmatprep.mubr.f32.mxu0 0.0
        %928 = vmatmul.mubr.f32.gmra.mrb[0].mxu0 %v793
        %v929 = vpop.f32.mrb[0].mxu0
        %v930 = vadd.f32 0.0, %v929
        %v931 = vpop.f32.mrb[0].mxu0
        %932 = vmatprep.mubr.f32.mxu0 0.0
        %933 = vmatmul.mubr.f32.gmra.mrb[0].mxu0 %v796
        %v934 = vpop.f32.mrb[0].mxu0
        %v935 = vadd.f32 0.0, %v934
        %v936 = vpop.f32.mrb[0].mxu0
        %937 = vmatprep.mubr.f32.mxu0 0.0
        %938 = vmatmul.mubr.f32.gmra.mrb[0].mxu0 %v799
        %v939 = vpop.f32.mrb[0].mxu0
        %v940 = vadd.f32 0.0, %v939
        %v941 = vpop.f32.mrb[0].mxu0
        %942 = vmatprep.mubr.f32.mxu0 0.0
        %943 = vmatmul.mubr.f32.gmra.mrb[0].mxu0 %v802
        %v944 = vpop.f32.mrb[0].mxu0
        %v945 = vadd.f32 0.0, %v944
        %v946 = vpop.f32.mrb[0].mxu0
        %947 = vmatprep.mubr.f32.mxu0 0.0
        %948 = vmatmul.mubr.f32.gmra.mrb[0].mxu0 %v805
        %v949 = vpop.f32.mrb[0].mxu0
        %v950 = vadd.f32 0.0, %v949
        %v951 = vpop.f32.mrb[0].mxu0
        %952 = vmatprep.mubr.f32.mxu0 0.0
        %953 = vmatmul.mubr.f32.gmra.mrb[0].mxu0 %v808
        %v954 = vpop.f32.mrb[0].mxu0
        %v955 = vadd.f32 0.0, %v954
        %v956 = vpop.f32.mrb[0].mxu0
        %957 = vdwg.mxu0
        %v959 = vsel %vm510, %v388, 0
        %v962 = vsel %vm510, %v389, 0
        %v965 = vsel %vm510, %v390, 0
        %v968 = vsel %vm510, %v391, 0
        %v971 = vsel %vm510, %v392, 0
        %v974 = vsel %vm510, %v393, 0
        %v977 = vsel %vm510, %v394, 0
        %v980 = vsel %vm510, %v395, 0
        %v983 = vsel %vm510, %v396, 0
        %v986 = vsel %vm510, %v397, 0
        %v989 = vsel %vm510, %v398, 0
        %v992 = vsel %vm510, %v399, 0
        %v995 = vsel %vm510, %v400, 0
        %v998 = vsel %vm510, %v401, 0
        %v1001 = vsel %vm510, %v402, 0
        %v1004 = vsel %vm510, %v403, 0
        %v1007 = vsel %vm514, %v743, 0
        %1009 = vmatprep.subr.mxu0 0.0
        %1010 = vmatpush1.msra.mxu0 %v741
        %1011 = vmatprep.subr.mxu0 0.0
        %1012 = vmatpush1.msra.mxu0 %v742
        %1013 = vmatprep.subr.mxu0 0.0
        %1014 = vmatpush1.msra.mxu0 %v1007
        %1015 = vmatprep.subr.mxu0 0.0
        %1016 = vmatpush1.msra.mxu0 0.0
        %1017 = vmatprep.subr.mxu0 0.0
        %1018 = vmatpush1.msra.mxu0 0.0
        %1019 = vmatprep.subr.mxu0 0.0
        %1020 = vmatpush1.msra.mxu0 0.0
        %1021 = vmatprep.subr.mxu0 0.0
        %1022 = vmatpush1.msra.mxu0 0.0
        %1023 = vmatprep.subr.mxu0 0.0
        %1024 = vmatpush1.msra.mxu0 0.0
        %1025 = vmatprep.subr.mxu0 0.0
        %1026 = vmatpush1.msra.mxu0 0.0
        %1027 = vmatprep.subr.mxu0 0.0
        %1028 = vmatpush1.msra.mxu0 0.0
        %1029 = vmatprep.subr.mxu0 0.0
        %1030 = vmatpush1.msra.mxu0 0.0
        %1031 = vmatprep.subr.mxu0 0.0
        %1032 = vmatpush1.msra.mxu0 0.0
        %1033 = vmatprep.subr.mxu0 0.0
        %1034 = vmatpush1.msra.mxu0 0.0
        %1035 = vmatprep.subr.mxu0 0.0
        %1036 = vmatpush1.msra.mxu0 0.0
        %1037 = vmatprep.subr.mxu0 0.0
        %1038 = vmatpush1.msra.mxu0 0.0
        %1039 = vmatprep.subr.mxu0 0.0
        %1040 = vmatpush1.msra.mxu0 0.0
        %1041 = vmatprep.subr.mxu0 0.0
        %1042 = vmatpush1.msra.mxu0 0.0
        %1043 = vmatprep.subr.mxu0 0.0
        %1044 = vmatpush1.msra.mxu0 0.0
        %1045 = vmatprep.subr.mxu0 0.0
        %1046 = vmatpush1.msra.mxu0 0.0
        %1047 = vmatprep.subr.mxu0 0.0
        %1048 = vmatpush1.msra.mxu0 0.0
        %1049 = vmatprep.subr.mxu0 0.0
        %1050 = vmatpush1.msra.mxu0 0.0
        %1051 = vmatprep.subr.mxu0 0.0
        %1052 = vmatpush1.msra.mxu0 0.0
        %1053 = vmatprep.subr.mxu0 0.0
        %1054 = vmatpush1.msra.mxu0 0.0
        %1055 = vmatprep.subr.mxu0 0.0
        %1056 = vmatpush1.msra.mxu0 0.0
        %1057 = vmatprep.subr.mxu0 0.0
        %1058 = vmatpush1.msra.mxu0 0.0
        %1059 = vmatprep.subr.mxu0 0.0
        %1060 = vmatpush1.msra.mxu0 0.0
        %1061 = vmatprep.subr.mxu0 0.0
        %1062 = vmatpush1.msra.mxu0 0.0
        %1063 = vmatprep.subr.mxu0 0.0
        %1064 = vmatpush1.msra.mxu0 0.0
        %1065 = vmatprep.subr.mxu0 0.0
        %1066 = vmatpush1.msra.mxu0 0.0
        %1067 = vmatprep.subr.mxu0 0.0
        %1068 = vmatpush1.msra.mxu0 0.0
        %1069 = vmatprep.subr.mxu0 0.0
        %1070 = vmatpush1.msra.mxu0 0.0
        %1071 = vmatprep.subr.mxu0 0.0
        %1072 = vmatpush1.msra.mxu0 0.0
        %1073 = vmatprep.mubr.f32.mxu0 0.0
        %1074 = vmatmul.mubr.f32.gmra.mrb[0].mxu0 %v959
        %v1075 = vpop.f32.mrb[0].mxu0
        %v1076 = vadd.f32 0.0, %v1075
        %v1077 = vpop.f32.mrb[0].mxu0
        %1078 = vmatprep.mubr.f32.mxu0 0.0
        %1079 = vmatmul.mubr.f32.gmra.mrb[0].mxu0 %v962
        %v1080 = vpop.f32.mrb[0].mxu0
        %v1081 = vadd.f32 0.0, %v1080
        %v1082 = vpop.f32.mrb[0].mxu0
        %1083 = vmatprep.mubr.f32.mxu0 0.0
        %1084 = vmatmul.mubr.f32.gmra.mrb[0].mxu0 %v965
        %v1085 = vpop.f32.mrb[0].mxu0
        %v1086 = vadd.f32 0.0, %v1085
        %v1087 = vpop.f32.mrb[0].mxu0
        %1088 = vmatprep.mubr.f32.mxu0 0.0
        %1089 = vmatmul.mubr.f32.gmra.mrb[0].mxu0 %v968
        %v1090 = vpop.f32.mrb[0].mxu0
        %v1091 = vadd.f32 0.0, %v1090
        %v1092 = vpop.f32.mrb[0].mxu0
        %1093 = vmatprep.mubr.f32.mxu0 0.0
        %1094 = vmatmul.mubr.f32.gmra.mrb[0].mxu0 %v971
        %v1095 = vpop.f32.mrb[0].mxu0
        %v1096 = vadd.f32 0.0, %v1095
        %v1097 = vpop.f32.mrb[0].mxu0
        %1098 = vmatprep.mubr.f32.mxu0 0.0
        %1099 = vmatmul.mubr.f32.gmra.mrb[0].mxu0 %v974
        %v1100 = vpop.f32.mrb[0].mxu0
        %v1101 = vadd.f32 0.0, %v1100
        %v1102 = vpop.f32.mrb[0].mxu0
        %1103 = vmatprep.mubr.f32.mxu0 0.0
        %1104 = vmatmul.mubr.f32.gmra.mrb[0].mxu0 %v977
        %v1105 = vpop.f32.mrb[0].mxu0
        %v1106 = vadd.f32 0.0, %v1105
        %v1107 = vpop.f32.mrb[0].mxu0
        %1108 = vmatprep.mubr.f32.mxu0 0.0
        %1109 = vmatmul.mubr.f32.gmra.mrb[0].mxu0 %v980
        %v1110 = vpop.f32.mrb[0].mxu0
        %v1111 = vadd.f32 0.0, %v1110
        %v1112 = vpop.f32.mrb[0].mxu0
        %1113 = vmatprep.mubr.f32.mxu0 0.0
        %1114 = vmatmul.mubr.f32.gmra.mrb[0].mxu0 %v983
        %v1115 = vpop.f32.mrb[0].mxu0
        %v1116 = vadd.f32 0.0, %v1115
        %v1117 = vpop.f32.mrb[0].mxu0
        %1118 = vmatprep.mubr.f32.mxu0 0.0
        %1119 = vmatmul.mubr.f32.gmra.mrb[0].mxu0 %v986
        %v1120 = vpop.f32.mrb[0].mxu0
        %v1121 = vadd.f32 0.0, %v1120
        %v1122 = vpop.f32.mrb[0].mxu0
        %1123 = vmatprep.mubr.f32.mxu0 0.0
        %1124 = vmatmul.mubr.f32.gmra.mrb[0].mxu0 %v989
        %v1125 = vpop.f32.mrb[0].mxu0
        %v1126 = vadd.f32 0.0, %v1125
        %v1127 = vpop.f32.mrb[0].mxu0
        %1128 = vmatprep.mubr.f32.mxu0 0.0
        %1129 = vmatmul.mubr.f32.gmra.mrb[0].mxu0 %v992
        %v1130 = vpop.f32.mrb[0].mxu0
        %v1131 = vadd.f32 0.0, %v1130
        %v1132 = vpop.f32.mrb[0].mxu0
        %1133 = vmatprep.mubr.f32.mxu0 0.0
        %1134 = vmatmul.mubr.f32.gmra.mrb[0].mxu0 %v995
        %v1135 = vpop.f32.mrb[0].mxu0
        %v1136 = vadd.f32 0.0, %v1135
        %v1137 = vpop.f32.mrb[0].mxu0
        %1138 = vmatprep.mubr.f32.mxu0 0.0
        %1139 = vmatmul.mubr.f32.gmra.mrb[0].mxu0 %v998
        %v1140 = vpop.f32.mrb[0].mxu0
        %v1141 = vadd.f32 0.0, %v1140
        %v1142 = vpop.f32.mrb[0].mxu0
        %1143 = vmatprep.mubr.f32.mxu0 0.0
        %1144 = vmatmul.mubr.f32.gmra.mrb[0].mxu0 %v1001
        %v1145 = vpop.f32.mrb[0].mxu0
        %v1146 = vadd.f32 0.0, %v1145
        %v1147 = vpop.f32.mrb[0].mxu0
        %1148 = vmatprep.mubr.f32.mxu0 0.0
        %1149 = vmatmul.mubr.f32.gmra.mrb[0].mxu0 %v1004
        %v1150 = vpop.f32.mrb[0].mxu0
        %v1151 = vadd.f32 0.0, %v1150
        %v1152 = vpop.f32.mrb[0].mxu0
        %1153 = vdwg.mxu0
        %v1155 = vsel %vm510, %v404, 0
        %v1158 = vsel %vm510, %v405, 0
        %v1161 = vsel %vm510, %v406, 0
        %v1164 = vsel %vm510, %v407, 0
        %v1167 = vsel %vm510, %v408, 0
        %v1170 = vsel %vm510, %v409, 0
        %v1173 = vsel %vm510, %v410, 0
        %v1176 = vsel %vm510, %v411, 0
        %v1179 = vsel %vm510, %v412, 0
        %v1182 = vsel %vm510, %v413, 0
        %v1185 = vsel %vm510, %v414, 0
        %v1188 = vsel %vm510, %v415, 0
        %v1191 = vsel %vm510, %v416, 0
        %v1194 = vsel %vm510, %v417, 0
        %v1197 = vsel %vm510, %v418, 0
        %v1200 = vsel %vm510, %v419, 0
        %v1203 = vsel %vm514, %v746, 0
        %1205 = vmatprep.subr.mxu0 0.0
        %1206 = vmatpush1.msra.mxu0 %v744
        %1207 = vmatprep.subr.mxu0 0.0
        %1208 = vmatpush1.msra.mxu0 %v745
        %1209 = vmatprep.subr.mxu0 0.0
        %1210 = vmatpush1.msra.mxu0 %v1203
        %1211 = vmatprep.subr.mxu0 0.0
        %1212 = vmatpush1.msra.mxu0 0.0
        %1213 = vmatprep.subr.mxu0 0.0
        %1214 = vmatpush1.msra.mxu0 0.0
        %1215 = vmatprep.subr.mxu0 0.0
        %1216 = vmatpush1.msra.mxu0 0.0
        %1217 = vmatprep.subr.mxu0 0.0
        %1218 = vmatpush1.msra.mxu0 0.0
        %1219 = vmatprep.subr.mxu0 0.0
        %1220 = vmatpush1.msra.mxu0 0.0
        %1221 = vmatprep.subr.mxu0 0.0
        %1222 = vmatpush1.msra.mxu0 0.0
        %1223 = vmatprep.subr.mxu0 0.0
        %1224 = vmatpush1.msra.mxu0 0.0
        %1225 = vmatprep.subr.mxu0 0.0
        %1226 = vmatpush1.msra.mxu0 0.0
        %1227 = vmatprep.subr.mxu0 0.0
        %1228 = vmatpush1.msra.mxu0 0.0
        %1229 = vmatprep.subr.mxu0 0.0
        %1230 = vmatpush1.msra.mxu0 0.0
        %1231 = vmatprep.subr.mxu0 0.0
        %1232 = vmatpush1.msra.mxu0 0.0
        %1233 = vmatprep.subr.mxu0 0.0
        %1234 = vmatpush1.msra.mxu0 0.0
        %1235 = vmatprep.subr.mxu0 0.0
        %1236 = vmatpush1.msra.mxu0 0.0
        %1237 = vmatprep.subr.mxu0 0.0
        %1238 = vmatpush1.msra.mxu0 0.0
        %1239 = vmatprep.subr.mxu0 0.0
        %1240 = vmatpush1.msra.mxu0 0.0
        %1241 = vmatprep.subr.mxu0 0.0
        %1242 = vmatpush1.msra.mxu0 0.0
        %1243 = vmatprep.subr.mxu0 0.0
        %1244 = vmatpush1.msra.mxu0 0.0
        %1245 = vmatprep.subr.mxu0 0.0
        %1246 = vmatpush1.msra.mxu0 0.0
        %1247 = vmatprep.subr.mxu0 0.0
        %1248 = vmatpush1.msra.mxu0 0.0
        %1249 = vmatprep.subr.mxu0 0.0
        %1250 = vmatpush1.msra.mxu0 0.0
        %1251 = vmatprep.subr.mxu0 0.0
        %1252 = vmatpush1.msra.mxu0 0.0
        %1253 = vmatprep.subr.mxu0 0.0
        %1254 = vmatpush1.msra.mxu0 0.0
        %1255 = vmatprep.subr.mxu0 0.0
        %1256 = vmatpush1.msra.mxu0 0.0
        %1257 = vmatprep.subr.mxu0 0.0
        %1258 = vmatpush1.msra.mxu0 0.0
        %1259 = vmatprep.subr.mxu0 0.0
        %1260 = vmatpush1.msra.mxu0 0.0
        %1261 = vmatprep.subr.mxu0 0.0
        %1262 = vmatpush1.msra.mxu0 0.0
        %1263 = vmatprep.subr.mxu0 0.0
        %1264 = vmatpush1.msra.mxu0 0.0
        %1265 = vmatprep.subr.mxu0 0.0
        %1266 = vmatpush1.msra.mxu0 0.0
        %1267 = vmatprep.subr.mxu0 0.0
        %1268 = vmatpush1.msra.mxu0 0.0
        %1269 = vmatprep.mubr.f32.mxu0 0.0
        %1270 = vmatmul.mubr.f32.gmra.mrb[0].mxu0 %v1155
        %v1271 = vpop.f32.mrb[0].mxu0
        %v1272 = vadd.f32 0.0, %v1271
        %v1273 = vpop.f32.mrb[0].mxu0
        %1274 = vmatprep.mubr.f32.mxu0 0.0
        %1275 = vmatmul.mubr.f32.gmra.mrb[0].mxu0 %v1158
        %v1276 = vpop.f32.mrb[0].mxu0
        %v1277 = vadd.f32 0.0, %v1276
        %v1278 = vpop.f32.mrb[0].mxu0
        %1279 = vmatprep.mubr.f32.mxu0 0.0
        %1280 = vmatmul.mubr.f32.gmra.mrb[0].mxu0 %v1161
        %v1281 = vpop.f32.mrb[0].mxu0
        %v1282 = vadd.f32 0.0, %v1281
        %v1283 = vpop.f32.mrb[0].mxu0
        %1284 = vmatprep.mubr.f32.mxu0 0.0
        %1285 = vmatmul.mubr.f32.gmra.mrb[0].mxu0 %v1164
        %v1286 = vpop.f32.mrb[0].mxu0
        %v1287 = vadd.f32 0.0, %v1286
        %v1288 = vpop.f32.mrb[0].mxu0
        %1289 = vmatprep.mubr.f32.mxu0 0.0
        %1290 = vmatmul.mubr.f32.gmra.mrb[0].mxu0 %v1167
        %v1291 = vpop.f32.mrb[0].mxu0
        %v1292 = vadd.f32 0.0, %v1291
        %v1293 = vpop.f32.mrb[0].mxu0
        %1294 = vmatprep.mubr.f32.mxu0 0.0
        %1295 = vmatmul.mubr.f32.gmra.mrb[0].mxu0 %v1170
        %v1296 = vpop.f32.mrb[0].mxu0
        %v1297 = vadd.f32 0.0, %v1296
        %v1298 = vpop.f32.mrb[0].mxu0
        %1299 = vmatprep.mubr.f32.mxu0 0.0
        %1300 = vmatmul.mubr.f32.gmra.mrb[0].mxu0 %v1173
        %v1301 = vpop.f32.mrb[0].mxu0
        %v1302 = vadd.f32 0.0, %v1301
        %v1303 = vpop.f32.mrb[0].mxu0
        %1304 = vmatprep.mubr.f32.mxu0 0.0
        %1305 = vmatmul.mubr.f32.gmra.mrb[0].mxu0 %v1176
        %v1306 = vpop.f32.mrb[0].mxu0
        %v1307 = vadd.f32 0.0, %v1306
        %v1308 = vpop.f32.mrb[0].mxu0
        %1309 = vmatprep.mubr.f32.mxu0 0.0
        %1310 = vmatmul.mubr.f32.gmra.mrb[0].mxu0 %v1179
        %v1311 = vpop.f32.mrb[0].mxu0
        %v1312 = vadd.f32 0.0, %v1311
        %v1313 = vpop.f32.mrb[0].mxu0
        %1314 = vmatprep.mubr.f32.mxu0 0.0
        %1315 = vmatmul.mubr.f32.gmra.mrb[0].mxu0 %v1182
        %v1316 = vpop.f32.mrb[0].mxu0
        %v1317 = vadd.f32 0.0, %v1316
        %v1318 = vpop.f32.mrb[0].mxu0
        %1319 = vmatprep.mubr.f32.mxu0 0.0
        %1320 = vmatmul.mubr.f32.gmra.mrb[0].mxu0 %v1185
        %v1321 = vpop.f32.mrb[0].mxu0
        %v1322 = vadd.f32 0.0, %v1321
        %v1323 = vpop.f32.mrb[0].mxu0
        %1324 = vmatprep.mubr.f32.mxu0 0.0
        %1325 = vmatmul.mubr.f32.gmra.mrb[0].mxu0 %v1188
        %v1326 = vpop.f32.mrb[0].mxu0
        %v1327 = vadd.f32 0.0, %v1326
        %v1328 = vpop.f32.mrb[0].mxu0
        %1329 = vmatprep.mubr.f32.mxu0 0.0
        %1330 = vmatmul.mubr.f32.gmra.mrb[0].mxu0 %v1191
        %v1331 = vpop.f32.mrb[0].mxu0
        %v1332 = vadd.f32 0.0, %v1331
        %v1333 = vpop.f32.mrb[0].mxu0
        %1334 = vmatprep.mubr.f32.mxu0 0.0
        %1335 = vmatmul.mubr.f32.gmra.mrb[0].mxu0 %v1194
        %v1336 = vpop.f32.mrb[0].mxu0
        %v1337 = vadd.f32 0.0, %v1336
        %v1338 = vpop.f32.mrb[0].mxu0
        %1339 = vmatprep.mubr.f32.mxu0 0.0
        %1340 = vmatmul.mubr.f32.gmra.mrb[0].mxu0 %v1197
        %v1341 = vpop.f32.mrb[0].mxu0
        %v1342 = vadd.f32 0.0, %v1341
        %v1343 = vpop.f32.mrb[0].mxu0
        %1344 = vmatprep.mubr.f32.mxu0 0.0
        %1345 = vmatmul.mubr.f32.gmra.mrb[0].mxu0 %v1200
        %v1346 = vpop.f32.mrb[0].mxu0
        %v1347 = vadd.f32 0.0, %v1346
        %v1348 = vpop.f32.mrb[0].mxu0
        %1349 = vdwg.mxu0
        %v1351 = vsel %vm510, %v420, 0
        %v1354 = vsel %vm510, %v421, 0
        %v1357 = vsel %vm510, %v422, 0
        %v1360 = vsel %vm510, %v423, 0
        %v1363 = vsel %vm510, %v424, 0
        %v1366 = vsel %vm510, %v425, 0
        %v1369 = vsel %vm510, %v426, 0
        %v1372 = vsel %vm510, %v427, 0
        %v1375 = vsel %vm510, %v428, 0
        %v1378 = vsel %vm510, %v429, 0
        %v1381 = vsel %vm510, %v430, 0
        %v1384 = vsel %vm510, %v431, 0
        %v1387 = vsel %vm510, %v432, 0
        %v1390 = vsel %vm510, %v433, 0
        %v1393 = vsel %vm510, %v434, 0
        %v1396 = vsel %vm510, %v435, 0
        %v1399 = vsel %vm514, %v749, 0
        %1401 = vmatprep.subr.mxu0 0.0
        %1402 = vmatpush1.msra.mxu0 %v747
        %1403 = vmatprep.subr.mxu0 0.0
        %1404 = vmatpush1.msra.mxu0 %v748
        %1405 = vmatprep.subr.mxu0 0.0
        %1406 = vmatpush1.msra.mxu0 %v1399
        %1407 = vmatprep.subr.mxu0 0.0
        %1408 = vmatpush1.msra.mxu0 0.0
        %1409 = vmatprep.subr.mxu0 0.0
        %1410 = vmatpush1.msra.mxu0 0.0
        %1411 = vmatprep.subr.mxu0 0.0
        %1412 = vmatpush1.msra.mxu0 0.0
        %1413 = vmatprep.subr.mxu0 0.0
        %1414 = vmatpush1.msra.mxu0 0.0
        %1415 = vmatprep.subr.mxu0 0.0
        %1416 = vmatpush1.msra.mxu0 0.0
        %1417 = vmatprep.subr.mxu0 0.0
        %1418 = vmatpush1.msra.mxu0 0.0
        %1419 = vmatprep.subr.mxu0 0.0
        %1420 = vmatpush1.msra.mxu0 0.0
        %1421 = vmatprep.subr.mxu0 0.0
        %1422 = vmatpush1.msra.mxu0 0.0
        %1423 = vmatprep.subr.mxu0 0.0
        %1424 = vmatpush1.msra.mxu0 0.0
        %1425 = vmatprep.subr.mxu0 0.0
        %1426 = vmatpush1.msra.mxu0 0.0
        %1427 = vmatprep.subr.mxu0 0.0
        %1428 = vmatpush1.msra.mxu0 0.0
        %1429 = vmatprep.subr.mxu0 0.0
        %1430 = vmatpush1.msra.mxu0 0.0
        %1431 = vmatprep.subr.mxu0 0.0
        %1432 = vmatpush1.msra.mxu0 0.0
        %1433 = vmatprep.subr.mxu0 0.0
        %1434 = vmatpush1.msra.mxu0 0.0
        %1435 = vmatprep.subr.mxu0 0.0
        %1436 = vmatpush1.msra.mxu0 0.0
        %1437 = vmatprep.subr.mxu0 0.0
        %1438 = vmatpush1.msra.mxu0 0.0
        %1439 = vmatprep.subr.mxu0 0.0
        %1440 = vmatpush1.msra.mxu0 0.0
        %1441 = vmatprep.subr.mxu0 0.0
        %1442 = vmatpush1.msra.mxu0 0.0
        %1443 = vmatprep.subr.mxu0 0.0
        %1444 = vmatpush1.msra.mxu0 0.0
        %1445 = vmatprep.subr.mxu0 0.0
        %1446 = vmatpush1.msra.mxu0 0.0
        %1447 = vmatprep.subr.mxu0 0.0
        %1448 = vmatpush1.msra.mxu0 0.0
        %1449 = vmatprep.subr.mxu0 0.0
        %1450 = vmatpush1.msra.mxu0 0.0
        %1451 = vmatprep.subr.mxu0 0.0
        %1452 = vmatpush1.msra.mxu0 0.0
        %1453 = vmatprep.subr.mxu0 0.0
        %1454 = vmatpush1.msra.mxu0 0.0
        %1455 = vmatprep.subr.mxu0 0.0
        %1456 = vmatpush1.msra.mxu0 0.0
        %1457 = vmatprep.subr.mxu0 0.0
        %1458 = vmatpush1.msra.mxu0 0.0
        %1459 = vmatprep.subr.mxu0 0.0
        %1460 = vmatpush1.msra.mxu0 0.0
        %1461 = vmatprep.subr.mxu0 0.0
        %1462 = vmatpush1.msra.mxu0 0.0
        %1463 = vmatprep.subr.mxu0 0.0
        %1464 = vmatpush1.msra.mxu0 0.0
        %1465 = vmatprep.mubr.f32.mxu0 0.0
        %1466 = vmatmul.mubr.f32.gmra.mrb[0].mxu0 %v1351
        %v1467 = vpop.f32.mrb[0].mxu0
        %v1468 = vadd.f32 0.0, %v1467
        %v1469 = vpop.f32.mrb[0].mxu0
        %1470 = vmatprep.mubr.f32.mxu0 0.0
        %1471 = vmatmul.mubr.f32.gmra.mrb[0].mxu0 %v1354
        %v1472 = vpop.f32.mrb[0].mxu0
        %v1473 = vadd.f32 0.0, %v1472
        %v1474 = vpop.f32.mrb[0].mxu0
        %1475 = vmatprep.mubr.f32.mxu0 0.0
        %1476 = vmatmul.mubr.f32.gmra.mrb[0].mxu0 %v1357
        %v1477 = vpop.f32.mrb[0].mxu0
        %v1478 = vadd.f32 0.0, %v1477
        %v1479 = vpop.f32.mrb[0].mxu0
        %1480 = vmatprep.mubr.f32.mxu0 0.0
        %1481 = vmatmul.mubr.f32.gmra.mrb[0].mxu0 %v1360
        %v1482 = vpop.f32.mrb[0].mxu0
        %v1483 = vadd.f32 0.0, %v1482
        %v1484 = vpop.f32.mrb[0].mxu0
        %1485 = vmatprep.mubr.f32.mxu0 0.0
        %1486 = vmatmul.mubr.f32.gmra.mrb[0].mxu0 %v1363
        %v1487 = vpop.f32.mrb[0].mxu0
        %v1488 = vadd.f32 0.0, %v1487
        %v1489 = vpop.f32.mrb[0].mxu0
        %1490 = vmatprep.mubr.f32.mxu0 0.0
        %1491 = vmatmul.mubr.f32.gmra.mrb[0].mxu0 %v1366
        %v1492 = vpop.f32.mrb[0].mxu0
        %v1493 = vadd.f32 0.0, %v1492
        %v1494 = vpop.f32.mrb[0].mxu0
        %1495 = vmatprep.mubr.f32.mxu0 0.0
        %1496 = vmatmul.mubr.f32.gmra.mrb[0].mxu0 %v1369
        %v1497 = vpop.f32.mrb[0].mxu0
        %v1498 = vadd.f32 0.0, %v1497
        %v1499 = vpop.f32.mrb[0].mxu0
        %1500 = vmatprep.mubr.f32.mxu0 0.0
        %1501 = vmatmul.mubr.f32.gmra.mrb[0].mxu0 %v1372
        %v1502 = vpop.f32.mrb[0].mxu0
        %v1503 = vadd.f32 0.0, %v1502
        %v1504 = vpop.f32.mrb[0].mxu0
        %1505 = vmatprep.mubr.f32.mxu0 0.0
        %1506 = vmatmul.mubr.f32.gmra.mrb[0].mxu0 %v1375
        %v1507 = vpop.f32.mrb[0].mxu0
        %v1508 = vadd.f32 0.0, %v1507
        %v1509 = vpop.f32.mrb[0].mxu0
        %1510 = vmatprep.mubr.f32.mxu0 0.0
        %1511 = vmatmul.mubr.f32.gmra.mrb[0].mxu0 %v1378
        %v1512 = vpop.f32.mrb[0].mxu0
        %v1513 = vadd.f32 0.0, %v1512
        %v1514 = vpop.f32.mrb[0].mxu0
        %1515 = vmatprep.mubr.f32.mxu0 0.0
        %1516 = vmatmul.mubr.f32.gmra.mrb[0].mxu0 %v1381
        %v1517 = vpop.f32.mrb[0].mxu0
        %v1518 = vadd.f32 0.0, %v1517
        %v1519 = vpop.f32.mrb[0].mxu0
        %1520 = vmatprep.mubr.f32.mxu0 0.0
        %1521 = vmatmul.mubr.f32.gmra.mrb[0].mxu0 %v1384
        %v1522 = vpop.f32.mrb[0].mxu0
        %v1523 = vadd.f32 0.0, %v1522
        %v1524 = vpop.f32.mrb[0].mxu0
        %1525 = vmatprep.mubr.f32.mxu0 0.0
        %1526 = vmatmul.mubr.f32.gmra.mrb[0].mxu0 %v1387
        %v1527 = vpop.f32.mrb[0].mxu0
        %v1528 = vadd.f32 0.0, %v1527
        %v1529 = vpop.f32.mrb[0].mxu0
        %1530 = vmatprep.mubr.f32.mxu0 0.0
        %1531 = vmatmul.mubr.f32.gmra.mrb[0].mxu0 %v1390
        %v1532 = vpop.f32.mrb[0].mxu0
        %v1533 = vadd.f32 0.0, %v1532
        %v1534 = vpop.f32.mrb[0].mxu0
        %1535 = vmatprep.mubr.f32.mxu0 0.0
        %1536 = vmatmul.mubr.f32.gmra.mrb[0].mxu0 %v1393
        %v1537 = vpop.f32.mrb[0].mxu0
        %v1538 = vadd.f32 0.0, %v1537
        %v1539 = vpop.f32.mrb[0].mxu0
        %1540 = vmatprep.mubr.f32.mxu0 0.0
        %1541 = vmatmul.mubr.f32.gmra.mrb[0].mxu0 %v1396
        %v1542 = vpop.f32.mrb[0].mxu0
        %v1543 = vadd.f32 0.0, %v1542
        %v1544 = vpop.f32.mrb[0].mxu0
        %1545 = vdwg.mxu0
        %v1547 = vsel %vm510, %v436, 0
        %v1550 = vsel %vm510, %v437, 0
        %v1553 = vsel %vm510, %v438, 0
        %v1556 = vsel %vm510, %v439, 0
        %v1559 = vsel %vm510, %v440, 0
        %v1562 = vsel %vm510, %v441, 0
        %v1565 = vsel %vm510, %v442, 0
        %v1568 = vsel %vm510, %v443, 0
        %v1571 = vsel %vm510, %v444, 0
        %v1574 = vsel %vm510, %v445, 0
        %v1577 = vsel %vm510, %v446, 0
        %v1580 = vsel %vm510, %v447, 0
        %v1583 = vsel %vm510, %v448, 0
        %v1586 = vsel %vm510, %v449, 0
        %v1589 = vsel %vm510, %v450, 0
        %v1592 = vsel %vm510, %v451, 0
        %v1595 = vsel %vm514, %v752, 0
        %1597 = vmatprep.subr.mxu0 0.0
        %1598 = vmatpush1.msra.mxu0 %v750
        %1599 = vmatprep.subr.mxu0 0.0
        %1600 = vmatpush1.msra.mxu0 %v751
        %1601 = vmatprep.subr.mxu0 0.0
        %1602 = vmatpush1.msra.mxu0 %v1595
        %1603 = vmatprep.subr.mxu0 0.0
        %1604 = vmatpush1.msra.mxu0 0.0
        %1605 = vmatprep.subr.mxu0 0.0
        %1606 = vmatpush1.msra.mxu0 0.0
        %1607 = vmatprep.subr.mxu0 0.0
        %1608 = vmatpush1.msra.mxu0 0.0
        %1609 = vmatprep.subr.mxu0 0.0
        %1610 = vmatpush1.msra.mxu0 0.0
        %1611 = vmatprep.subr.mxu0 0.0
        %1612 = vmatpush1.msra.mxu0 0.0
        %1613 = vmatprep.subr.mxu0 0.0
        %1614 = vmatpush1.msra.mxu0 0.0
        %1615 = vmatprep.subr.mxu0 0.0
        %1616 = vmatpush1.msra.mxu0 0.0
        %1617 = vmatprep.subr.mxu0 0.0
        %1618 = vmatpush1.msra.mxu0 0.0
        %1619 = vmatprep.subr.mxu0 0.0
        %1620 = vmatpush1.msra.mxu0 0.0
        %1621 = vmatprep.subr.mxu0 0.0
        %1622 = vmatpush1.msra.mxu0 0.0
        %1623 = vmatprep.subr.mxu0 0.0
        %1624 = vmatpush1.msra.mxu0 0.0
        %1625 = vmatprep.subr.mxu0 0.0
        %1626 = vmatpush1.msra.mxu0 0.0
        %1627 = vmatprep.subr.mxu0 0.0
        %1628 = vmatpush1.msra.mxu0 0.0
        %1629 = vmatprep.subr.mxu0 0.0
        %1630 = vmatpush1.msra.mxu0 0.0
        %1631 = vmatprep.subr.mxu0 0.0
        %1632 = vmatpush1.msra.mxu0 0.0
        %1633 = vmatprep.subr.mxu0 0.0
        %1634 = vmatpush1.msra.mxu0 0.0
        %1635 = vmatprep.subr.mxu0 0.0
        %1636 = vmatpush1.msra.mxu0 0.0
        %1637 = vmatprep.subr.mxu0 0.0
        %1638 = vmatpush1.msra.mxu0 0.0
        %1639 = vmatprep.subr.mxu0 0.0
        %1640 = vmatpush1.msra.mxu0 0.0
        %1641 = vmatprep.subr.mxu0 0.0
        %1642 = vmatpush1.msra.mxu0 0.0
        %1643 = vmatprep.subr.mxu0 0.0
        %1644 = vmatpush1.msra.mxu0 0.0
        %1645 = vmatprep.subr.mxu0 0.0
        %1646 = vmatpush1.msra.mxu0 0.0
        %1647 = vmatprep.subr.mxu0 0.0
        %1648 = vmatpush1.msra.mxu0 0.0
        %1649 = vmatprep.subr.mxu0 0.0
        %1650 = vmatpush1.msra.mxu0 0.0
        %1651 = vmatprep.subr.mxu0 0.0
        %1652 = vmatpush1.msra.mxu0 0.0
        %1653 = vmatprep.subr.mxu0 0.0
        %1654 = vmatpush1.msra.mxu0 0.0
        %1655 = vmatprep.subr.mxu0 0.0
        %1656 = vmatpush1.msra.mxu0 0.0
        %1657 = vmatprep.subr.mxu0 0.0
        %1658 = vmatpush1.msra.mxu0 0.0
        %1659 = vmatprep.subr.mxu0 0.0
        %1660 = vmatpush1.msra.mxu0 0.0
        %1661 = vmatprep.mubr.f32.mxu0 0.0
        %1662 = vmatmul.mubr.f32.gmra.mrb[0].mxu0 %v1547
        %v1663 = vpop.f32.mrb[0].mxu0
        %v1664 = vadd.f32 0.0, %v1663
        %v1665 = vpop.f32.mrb[0].mxu0
        %1666 = vmatprep.mubr.f32.mxu0 0.0
        %1667 = vmatmul.mubr.f32.gmra.mrb[0].mxu0 %v1550
        %v1668 = vpop.f32.mrb[0].mxu0
        %v1669 = vadd.f32 0.0, %v1668
        %v1670 = vpop.f32.mrb[0].mxu0
        %1671 = vmatprep.mubr.f32.mxu0 0.0
        %1672 = vmatmul.mubr.f32.gmra.mrb[0].mxu0 %v1553
        %v1673 = vpop.f32.mrb[0].mxu0
        %v1674 = vadd.f32 0.0, %v1673
        %v1675 = vpop.f32.mrb[0].mxu0
        %1676 = vmatprep.mubr.f32.mxu0 0.0
        %1677 = vmatmul.mubr.f32.gmra.mrb[0].mxu0 %v1556
        %v1678 = vpop.f32.mrb[0].mxu0
        %v1679 = vadd.f32 0.0, %v1678
        %v1680 = vpop.f32.mrb[0].mxu0
        %1681 = vmatprep.mubr.f32.mxu0 0.0
        %1682 = vmatmul.mubr.f32.gmra.mrb[0].mxu0 %v1559
        %v1683 = vpop.f32.mrb[0].mxu0
        %v1684 = vadd.f32 0.0, %v1683
        %v1685 = vpop.f32.mrb[0].mxu0
        %1686 = vmatprep.mubr.f32.mxu0 0.0
        %1687 = vmatmul.mubr.f32.gmra.mrb[0].mxu0 %v1562
        %v1688 = vpop.f32.mrb[0].mxu0
        %v1689 = vadd.f32 0.0, %v1688
        %v1690 = vpop.f32.mrb[0].mxu0
        %1691 = vmatprep.mubr.f32.mxu0 0.0
        %1692 = vmatmul.mubr.f32.gmra.mrb[0].mxu0 %v1565
        %v1693 = vpop.f32.mrb[0].mxu0
        %v1694 = vadd.f32 0.0, %v1693
        %v1695 = vpop.f32.mrb[0].mxu0
        %1696 = vmatprep.mubr.f32.mxu0 0.0
        %1697 = vmatmul.mubr.f32.gmra.mrb[0].mxu0 %v1568
        %v1698 = vpop.f32.mrb[0].mxu0
        %v1699 = vadd.f32 0.0, %v1698
        %v1700 = vpop.f32.mrb[0].mxu0
        %1701 = vmatprep.mubr.f32.mxu0 0.0
        %1702 = vmatmul.mubr.f32.gmra.mrb[0].mxu0 %v1571
        %v1703 = vpop.f32.mrb[0].mxu0
        %v1704 = vadd.f32 0.0, %v1703
        %v1705 = vpop.f32.mrb[0].mxu0
        %1706 = vmatprep.mubr.f32.mxu0 0.0
        %1707 = vmatmul.mubr.f32.gmra.mrb[0].mxu0 %v1574
        %v1708 = vpop.f32.mrb[0].mxu0
        %v1709 = vadd.f32 0.0, %v1708
        %v1710 = vpop.f32.mrb[0].mxu0
        %1711 = vmatprep.mubr.f32.mxu0 0.0
        %1712 = vmatmul.mubr.f32.gmra.mrb[0].mxu0 %v1577
        %v1713 = vpop.f32.mrb[0].mxu0
        %v1714 = vadd.f32 0.0, %v1713
        %v1715 = vpop.f32.mrb[0].mxu0
        %1716 = vmatprep.mubr.f32.mxu0 0.0
        %1717 = vmatmul.mubr.f32.gmra.mrb[0].mxu0 %v1580
        %v1718 = vpop.f32.mrb[0].mxu0
        %v1719 = vadd.f32 0.0, %v1718
        %v1720 = vpop.f32.mrb[0].mxu0
        %1721 = vmatprep.mubr.f32.mxu0 0.0
        %1722 = vmatmul.mubr.f32.gmra.mrb[0].mxu0 %v1583
        %v1723 = vpop.f32.mrb[0].mxu0
        %v1724 = vadd.f32 0.0, %v1723
        %v1725 = vpop.f32.mrb[0].mxu0
        %1726 = vmatprep.mubr.f32.mxu0 0.0
        %1727 = vmatmul.mubr.f32.gmra.mrb[0].mxu0 %v1586
        %v1728 = vpop.f32.mrb[0].mxu0
        %v1729 = vadd.f32 0.0, %v1728
        %v1730 = vpop.f32.mrb[0].mxu0
        %1731 = vmatprep.mubr.f32.mxu0 0.0
        %1732 = vmatmul.mubr.f32.gmra.mrb[0].mxu0 %v1589
        %v1733 = vpop.f32.mrb[0].mxu0
        %v1734 = vadd.f32 0.0, %v1733
        %v1735 = vpop.f32.mrb[0].mxu0
        %1736 = vmatprep.mubr.f32.mxu0 0.0
        %1737 = vmatmul.mubr.f32.gmra.mrb[0].mxu0 %v1592
        %v1738 = vpop.f32.mrb[0].mxu0
        %v1739 = vadd.f32 0.0, %v1738
        %v1740 = vpop.f32.mrb[0].mxu0
        %1741 = vdwg.mxu0
        %v1743 = vsel %vm510, %v452, 0
        %v1746 = vsel %vm510, %v453, 0
        %v1749 = vsel %vm510, %v454, 0
        %v1752 = vsel %vm510, %v455, 0
        %v1755 = vsel %vm510, %v456, 0
        %v1758 = vsel %vm510, %v457, 0
        %v1761 = vsel %vm510, %v458, 0
        %v1764 = vsel %vm510, %v459, 0
        %v1767 = vsel %vm510, %v460, 0
        %v1770 = vsel %vm510, %v461, 0
        %v1773 = vsel %vm510, %v462, 0
        %v1776 = vsel %vm510, %v463, 0
        %v1779 = vsel %vm510, %v464, 0
        %v1782 = vsel %vm510, %v465, 0
        %v1785 = vsel %vm510, %v466, 0
        %v1788 = vsel %vm510, %v467, 0
        %v1791 = vsel %vm514, %v755, 0
        %1793 = vmatprep.subr.mxu0 0.0
        %1794 = vmatpush1.msra.mxu0 %v753
        %1795 = vmatprep.subr.mxu0 0.0
        %1796 = vmatpush1.msra.mxu0 %v754
        %1797 = vmatprep.subr.mxu0 0.0
        %1798 = vmatpush1.msra.mxu0 %v1791
        %1799 = vmatprep.subr.mxu0 0.0
        %1800 = vmatpush1.msra.mxu0 0.0
        %1801 = vmatprep.subr.mxu0 0.0
        %1802 = vmatpush1.msra.mxu0 0.0
        %1803 = vmatprep.subr.mxu0 0.0
        %1804 = vmatpush1.msra.mxu0 0.0
        %1805 = vmatprep.subr.mxu0 0.0
        %1806 = vmatpush1.msra.mxu0 0.0
        %1807 = vmatprep.subr.mxu0 0.0
        %1808 = vmatpush1.msra.mxu0 0.0
        %1809 = vmatprep.subr.mxu0 0.0
        %1810 = vmatpush1.msra.mxu0 0.0
        %1811 = vmatprep.subr.mxu0 0.0
        %1812 = vmatpush1.msra.mxu0 0.0
        %1813 = vmatprep.subr.mxu0 0.0
        %1814 = vmatpush1.msra.mxu0 0.0
        %1815 = vmatprep.subr.mxu0 0.0
        %1816 = vmatpush1.msra.mxu0 0.0
        %1817 = vmatprep.subr.mxu0 0.0
        %1818 = vmatpush1.msra.mxu0 0.0
        %1819 = vmatprep.subr.mxu0 0.0
        %1820 = vmatpush1.msra.mxu0 0.0
        %1821 = vmatprep.subr.mxu0 0.0
        %1822 = vmatpush1.msra.mxu0 0.0
        %1823 = vmatprep.subr.mxu0 0.0
        %1824 = vmatpush1.msra.mxu0 0.0
        %1825 = vmatprep.subr.mxu0 0.0
        %1826 = vmatpush1.msra.mxu0 0.0
        %1827 = vmatprep.subr.mxu0 0.0
        %1828 = vmatpush1.msra.mxu0 0.0
        %1829 = vmatprep.subr.mxu0 0.0
        %1830 = vmatpush1.msra.mxu0 0.0
        %1831 = vmatprep.subr.mxu0 0.0
        %1832 = vmatpush1.msra.mxu0 0.0
        %1833 = vmatprep.subr.mxu0 0.0
        %1834 = vmatpush1.msra.mxu0 0.0
        %1835 = vmatprep.subr.mxu0 0.0
        %1836 = vmatpush1.msra.mxu0 0.0
        %1837 = vmatprep.subr.mxu0 0.0
        %1838 = vmatpush1.msra.mxu0 0.0
        %1839 = vmatprep.subr.mxu0 0.0
        %1840 = vmatpush1.msra.mxu0 0.0
        %1841 = vmatprep.subr.mxu0 0.0
        %1842 = vmatpush1.msra.mxu0 0.0
        %1843 = vmatprep.subr.mxu0 0.0
        %1844 = vmatpush1.msra.mxu0 0.0
        %1845 = vmatprep.subr.mxu0 0.0
        %1846 = vmatpush1.msra.mxu0 0.0
        %1847 = vmatprep.subr.mxu0 0.0
        %1848 = vmatpush1.msra.mxu0 0.0
        %1849 = vmatprep.subr.mxu0 0.0
        %1850 = vmatpush1.msra.mxu0 0.0
        %1851 = vmatprep.subr.mxu0 0.0
        %1852 = vmatpush1.msra.mxu0 0.0
        %1853 = vmatprep.subr.mxu0 0.0
        %1854 = vmatpush1.msra.mxu0 0.0
        %1855 = vmatprep.subr.mxu0 0.0
        %1856 = vmatpush1.msra.mxu0 0.0
        %1857 = vmatprep.mubr.f32.mxu0 0.0
        %1858 = vmatmul.mubr.f32.gmra.mrb[0].mxu0 %v1743
        %v1859 = vpop.f32.mrb[0].mxu0
        %v1860 = vadd.f32 0.0, %v1859
        %v1861 = vpop.f32.mrb[0].mxu0
        %1862 = vmatprep.mubr.f32.mxu0 0.0
        %1863 = vmatmul.mubr.f32.gmra.mrb[0].mxu0 %v1746
        %v1864 = vpop.f32.mrb[0].mxu0
        %v1865 = vadd.f32 0.0, %v1864
        %v1866 = vpop.f32.mrb[0].mxu0
        %1867 = vmatprep.mubr.f32.mxu0 0.0
        %1868 = vmatmul.mubr.f32.gmra.mrb[0].mxu0 %v1749
        %v1869 = vpop.f32.mrb[0].mxu0
        %v1870 = vadd.f32 0.0, %v1869
        %v1871 = vpop.f32.mrb[0].mxu0
        %1872 = vmatprep.mubr.f32.mxu0 0.0
        %1873 = vmatmul.mubr.f32.gmra.mrb[0].mxu0 %v1752
        %v1874 = vpop.f32.mrb[0].mxu0
        %v1875 = vadd.f32 0.0, %v1874
        %v1876 = vpop.f32.mrb[0].mxu0
        %1877 = vmatprep.mubr.f32.mxu0 0.0
        %1878 = vmatmul.mubr.f32.gmra.mrb[0].mxu0 %v1755
        %v1879 = vpop.f32.mrb[0].mxu0
        %v1880 = vadd.f32 0.0, %v1879
        %v1881 = vpop.f32.mrb[0].mxu0
        %1882 = vmatprep.mubr.f32.mxu0 0.0
        %1883 = vmatmul.mubr.f32.gmra.mrb[0].mxu0 %v1758
        %v1884 = vpop.f32.mrb[0].mxu0
        %v1885 = vadd.f32 0.0, %v1884
        %v1886 = vpop.f32.mrb[0].mxu0
        %1887 = vmatprep.mubr.f32.mxu0 0.0
        %1888 = vmatmul.mubr.f32.gmra.mrb[0].mxu0 %v1761
        %v1889 = vpop.f32.mrb[0].mxu0
        %v1890 = vadd.f32 0.0, %v1889
        %v1891 = vpop.f32.mrb[0].mxu0
        %1892 = vmatprep.mubr.f32.mxu0 0.0
        %1893 = vmatmul.mubr.f32.gmra.mrb[0].mxu0 %v1764
        %v1894 = vpop.f32.mrb[0].mxu0
        %v1895 = vadd.f32 0.0, %v1894
        %v1896 = vpop.f32.mrb[0].mxu0
        %1897 = vmatprep.mubr.f32.mxu0 0.0
        %1898 = vmatmul.mubr.f32.gmra.mrb[0].mxu0 %v1767
        %v1899 = vpop.f32.mrb[0].mxu0
        %v1900 = vadd.f32 0.0, %v1899
        %v1901 = vpop.f32.mrb[0].mxu0
        %1902 = vmatprep.mubr.f32.mxu0 0.0
        %1903 = vmatmul.mubr.f32.gmra.mrb[0].mxu0 %v1770
        %v1904 = vpop.f32.mrb[0].mxu0
        %v1905 = vadd.f32 0.0, %v1904
        %v1906 = vpop.f32.mrb[0].mxu0
        %1907 = vmatprep.mubr.f32.mxu0 0.0
        %1908 = vmatmul.mubr.f32.gmra.mrb[0].mxu0 %v1773
        %v1909 = vpop.f32.mrb[0].mxu0
        %v1910 = vadd.f32 0.0, %v1909
        %v1911 = vpop.f32.mrb[0].mxu0
        %1912 = vmatprep.mubr.f32.mxu0 0.0
        %1913 = vmatmul.mubr.f32.gmra.mrb[0].mxu0 %v1776
        %v1914 = vpop.f32.mrb[0].mxu0
        %v1915 = vadd.f32 0.0, %v1914
        %v1916 = vpop.f32.mrb[0].mxu0
        %1917 = vmatprep.mubr.f32.mxu0 0.0
        %1918 = vmatmul.mubr.f32.gmra.mrb[0].mxu0 %v1779
        %v1919 = vpop.f32.mrb[0].mxu0
        %v1920 = vadd.f32 0.0, %v1919
        %v1921 = vpop.f32.mrb[0].mxu0
        %1922 = vmatprep.mubr.f32.mxu0 0.0
        %1923 = vmatmul.mubr.f32.gmra.mrb[0].mxu0 %v1782
        %v1924 = vpop.f32.mrb[0].mxu0
        %v1925 = vadd.f32 0.0, %v1924
        %v1926 = vpop.f32.mrb[0].mxu0
        %1927 = vmatprep.mubr.f32.mxu0 0.0
        %1928 = vmatmul.mubr.f32.gmra.mrb[0].mxu0 %v1785
        %v1929 = vpop.f32.mrb[0].mxu0
        %v1930 = vadd.f32 0.0, %v1929
        %v1931 = vpop.f32.mrb[0].mxu0
        %1932 = vmatprep.mubr.f32.mxu0 0.0
        %1933 = vmatmul.mubr.f32.gmra.mrb[0].mxu0 %v1788
        %v1934 = vpop.f32.mrb[0].mxu0
        %v1935 = vadd.f32 0.0, %v1934
        %v1936 = vpop.f32.mrb[0].mxu0
        %1937 = vdwg.mxu0
        %v1939 = vsel %vm510, %v468, 0
        %v1942 = vsel %vm510, %v469, 0
        %v1945 = vsel %vm510, %v470, 0
        %v1948 = vsel %vm510, %v471, 0
        %v1951 = vsel %vm510, %v472, 0
        %v1954 = vsel %vm510, %v473, 0
        %v1957 = vsel %vm510, %v474, 0
        %v1960 = vsel %vm510, %v475, 0
        %v1963 = vsel %vm510, %v476, 0
        %v1966 = vsel %vm510, %v477, 0
        %v1969 = vsel %vm510, %v478, 0
        %v1972 = vsel %vm510, %v479, 0
        %v1975 = vsel %vm510, %v480, 0
        %v1978 = vsel %vm510, %v481, 0
        %v1981 = vsel %vm510, %v482, 0
        %v1984 = vsel %vm510, %v483, 0
        %v1987 = vsel %vm514, %v758, 0
        %1989 = vmatprep.subr.mxu0 0.0
        %1990 = vmatpush1.msra.mxu0 %v756
        %1991 = vmatprep.subr.mxu0 0.0
        %1992 = vmatpush1.msra.mxu0 %v757
        %1993 = vmatprep.subr.mxu0 0.0
        %1994 = vmatpush1.msra.mxu0 %v1987
        %1995 = vmatprep.subr.mxu0 0.0
        %1996 = vmatpush1.msra.mxu0 0.0
        %1997 = vmatprep.subr.mxu0 0.0
        %1998 = vmatpush1.msra.mxu0 0.0
        %1999 = vmatprep.subr.mxu0 0.0
        %2000 = vmatpush1.msra.mxu0 0.0
        %2001 = vmatprep.subr.mxu0 0.0
        %2002 = vmatpush1.msra.mxu0 0.0
        %2003 = vmatprep.subr.mxu0 0.0
        %2004 = vmatpush1.msra.mxu0 0.0
        %2005 = vmatprep.subr.mxu0 0.0
        %2006 = vmatpush1.msra.mxu0 0.0
        %2007 = vmatprep.subr.mxu0 0.0
        %2008 = vmatpush1.msra.mxu0 0.0
        %2009 = vmatprep.subr.mxu0 0.0
        %2010 = vmatpush1.msra.mxu0 0.0
        %2011 = vmatprep.subr.mxu0 0.0
        %2012 = vmatpush1.msra.mxu0 0.0
        %2013 = vmatprep.subr.mxu0 0.0
        %2014 = vmatpush1.msra.mxu0 0.0
        %2015 = vmatprep.subr.mxu0 0.0
        %2016 = vmatpush1.msra.mxu0 0.0
        %2017 = vmatprep.subr.mxu0 0.0
        %2018 = vmatpush1.msra.mxu0 0.0
        %2019 = vmatprep.subr.mxu0 0.0
        %2020 = vmatpush1.msra.mxu0 0.0
        %2021 = vmatprep.subr.mxu0 0.0
        %2022 = vmatpush1.msra.mxu0 0.0
        %2023 = vmatprep.subr.mxu0 0.0
        %2024 = vmatpush1.msra.mxu0 0.0
        %2025 = vmatprep.subr.mxu0 0.0
        %2026 = vmatpush1.msra.mxu0 0.0
        %2027 = vmatprep.subr.mxu0 0.0
        %2028 = vmatpush1.msra.mxu0 0.0
        %2029 = vmatprep.subr.mxu0 0.0
        %2030 = vmatpush1.msra.mxu0 0.0
        %2031 = vmatprep.subr.mxu0 0.0
        %2032 = vmatpush1.msra.mxu0 0.0
        %2033 = vmatprep.subr.mxu0 0.0
        %2034 = vmatpush1.msra.mxu0 0.0
        %2035 = vmatprep.subr.mxu0 0.0
        %2036 = vmatpush1.msra.mxu0 0.0
        %2037 = vmatprep.subr.mxu0 0.0
        %2038 = vmatpush1.msra.mxu0 0.0
        %2039 = vmatprep.subr.mxu0 0.0
        %2040 = vmatpush1.msra.mxu0 0.0
        %2041 = vmatprep.subr.mxu0 0.0
        %2042 = vmatpush1.msra.mxu0 0.0
        %2043 = vmatprep.subr.mxu0 0.0
        %2044 = vmatpush1.msra.mxu0 0.0
        %2045 = vmatprep.subr.mxu0 0.0
        %2046 = vmatpush1.msra.mxu0 0.0
        %2047 = vmatprep.subr.mxu0 0.0
        %2048 = vmatpush1.msra.mxu0 0.0
        %2049 = vmatprep.subr.mxu0 0.0
        %2050 = vmatpush1.msra.mxu0 0.0
        %2051 = vmatprep.subr.mxu0 0.0
        %2052 = vmatpush1.msra.mxu0 0.0
        %2053 = vmatprep.mubr.f32.mxu0 0.0
        %2054 = vmatmul.mubr.f32.gmra.mrb[0].mxu0 %v1939
        %v2055 = vpop.f32.mrb[0].mxu0
        %v2056 = vadd.f32 0.0, %v2055
        %v2057 = vpop.f32.mrb[0].mxu0
        %2058 = vmatprep.mubr.f32.mxu0 0.0
        %2059 = vmatmul.mubr.f32.gmra.mrb[0].mxu0 %v1942
        %v2060 = vpop.f32.mrb[0].mxu0
        %v2061 = vadd.f32 0.0, %v2060
        %v2062 = vpop.f32.mrb[0].mxu0
        %2063 = vmatprep.mubr.f32.mxu0 0.0
        %2064 = vmatmul.mubr.f32.gmra.mrb[0].mxu0 %v1945
        %v2065 = vpop.f32.mrb[0].mxu0
        %v2066 = vadd.f32 0.0, %v2065
        %v2067 = vpop.f32.mrb[0].mxu0
        %2068 = vmatprep.mubr.f32.mxu0 0.0
        %2069 = vmatmul.mubr.f32.gmra.mrb[0].mxu0 %v1948
        %v2070 = vpop.f32.mrb[0].mxu0
        %v2071 = vadd.f32 0.0, %v2070
        %v2072 = vpop.f32.mrb[0].mxu0
        %2073 = vmatprep.mubr.f32.mxu0 0.0
        %2074 = vmatmul.mubr.f32.gmra.mrb[0].mxu0 %v1951
        %v2075 = vpop.f32.mrb[0].mxu0
        %v2076 = vadd.f32 0.0, %v2075
        %v2077 = vpop.f32.mrb[0].mxu0
        %2078 = vmatprep.mubr.f32.mxu0 0.0
        %2079 = vmatmul.mubr.f32.gmra.mrb[0].mxu0 %v1954
        %v2080 = vpop.f32.mrb[0].mxu0
        %v2081 = vadd.f32 0.0, %v2080
        %v2082 = vpop.f32.mrb[0].mxu0
        %2083 = vmatprep.mubr.f32.mxu0 0.0
        %2084 = vmatmul.mubr.f32.gmra.mrb[0].mxu0 %v1957
        %v2085 = vpop.f32.mrb[0].mxu0
        %v2086 = vadd.f32 0.0, %v2085
        %v2087 = vpop.f32.mrb[0].mxu0
        %2088 = vmatprep.mubr.f32.mxu0 0.0
        %2089 = vmatmul.mubr.f32.gmra.mrb[0].mxu0 %v1960
        %v2090 = vpop.f32.mrb[0].mxu0
        %v2091 = vadd.f32 0.0, %v2090
        %v2092 = vpop.f32.mrb[0].mxu0
        %2093 = vmatprep.mubr.f32.mxu0 0.0
        %2094 = vmatmul.mubr.f32.gmra.mrb[0].mxu0 %v1963
        %v2095 = vpop.f32.mrb[0].mxu0
        %v2096 = vadd.f32 0.0, %v2095
        %v2097 = vpop.f32.mrb[0].mxu0
        %2098 = vmatprep.mubr.f32.mxu0 0.0
        %2099 = vmatmul.mubr.f32.gmra.mrb[0].mxu0 %v1966
        %v2100 = vpop.f32.mrb[0].mxu0
        %v2101 = vadd.f32 0.0, %v2100
        %v2102 = vpop.f32.mrb[0].mxu0
        %2103 = vmatprep.mubr.f32.mxu0 0.0
        %2104 = vmatmul.mubr.f32.gmra.mrb[0].mxu0 %v1969
        %v2105 = vpop.f32.mrb[0].mxu0
        %v2106 = vadd.f32 0.0, %v2105
        %v2107 = vpop.f32.mrb[0].mxu0
        %2108 = vmatprep.mubr.f32.mxu0 0.0
        %2109 = vmatmul.mubr.f32.gmra.mrb[0].mxu0 %v1972
        %v2110 = vpop.f32.mrb[0].mxu0
        %v2111 = vadd.f32 0.0, %v2110
        %v2112 = vpop.f32.mrb[0].mxu0
        %2113 = vmatprep.mubr.f32.mxu0 0.0
        %2114 = vmatmul.mubr.f32.gmra.mrb[0].mxu0 %v1975
        %v2115 = vpop.f32.mrb[0].mxu0
        %v2116 = vadd.f32 0.0, %v2115
        %v2117 = vpop.f32.mrb[0].mxu0
        %2118 = vmatprep.mubr.f32.mxu0 0.0
        %2119 = vmatmul.mubr.f32.gmra.mrb[0].mxu0 %v1978
        %v2120 = vpop.f32.mrb[0].mxu0
        %v2121 = vadd.f32 0.0, %v2120
        %v2122 = vpop.f32.mrb[0].mxu0
        %2123 = vmatprep.mubr.f32.mxu0 0.0
        %2124 = vmatmul.mubr.f32.gmra.mrb[0].mxu0 %v1981
        %v2125 = vpop.f32.mrb[0].mxu0
        %v2126 = vadd.f32 0.0, %v2125
        %v2127 = vpop.f32.mrb[0].mxu0
        %2128 = vmatprep.mubr.f32.mxu0 0.0
        %2129 = vmatmul.mubr.f32.gmra.mrb[0].mxu0 %v1984
        %v2130 = vpop.f32.mrb[0].mxu0
        %v2131 = vadd.f32 0.0, %v2130
        %v2132 = vpop.f32.mrb[0].mxu0
        %2133 = vdwg.mxu0
        %v2135 = vsel %vm510, %v484, 0
        %v2138 = vsel %vm510, %v485, 0
        %v2141 = vsel %vm510, %v486, 0
        %v2144 = vsel %vm510, %v487, 0
        %v2147 = vsel %vm510, %v488, 0
        %v2150 = vsel %vm510, %v489, 0
        %v2153 = vsel %vm510, %v490, 0
        %v2156 = vsel %vm510, %v491, 0
        %v2159 = vsel %vm510, %v492, 0
        %v2162 = vsel %vm510, %v493, 0
        %v2165 = vsel %vm510, %v494, 0
        %v2168 = vsel %vm510, %v495, 0
        %v2171 = vsel %vm510, %v496, 0
        %v2174 = vsel %vm510, %v497, 0
        %v2177 = vsel %vm510, %v498, 0
        %v2180 = vsel %vm510, %v499, 0
        %v2183 = vsel %vm514, %v761, 0
        %2185 = vmatprep.subr.mxu0 0.0
        %2186 = vmatpush1.msra.mxu0 %v759
        %2187 = vmatprep.subr.mxu0 0.0
        %2188 = vmatpush1.msra.mxu0 %v760
        %2189 = vmatprep.subr.mxu0 0.0
        %2190 = vmatpush1.msra.mxu0 %v2183
        %2191 = vmatprep.subr.mxu0 0.0
        %2192 = vmatpush1.msra.mxu0 0.0
        %2193 = vmatprep.subr.mxu0 0.0
        %2194 = vmatpush1.msra.mxu0 0.0
        %2195 = vmatprep.subr.mxu0 0.0
        %2196 = vmatpush1.msra.mxu0 0.0
        %2197 = vmatprep.subr.mxu0 0.0
        %2198 = vmatpush1.msra.mxu0 0.0
        %2199 = vmatprep.subr.mxu0 0.0
        %2200 = vmatpush1.msra.mxu0 0.0
        %2201 = vmatprep.subr.mxu0 0.0
        %2202 = vmatpush1.msra.mxu0 0.0
        %2203 = vmatprep.subr.mxu0 0.0
        %2204 = vmatpush1.msra.mxu0 0.0
        %2205 = vmatprep.subr.mxu0 0.0
        %2206 = vmatpush1.msra.mxu0 0.0
        %2207 = vmatprep.subr.mxu0 0.0
        %2208 = vmatpush1.msra.mxu0 0.0
        %2209 = vmatprep.subr.mxu0 0.0
        %2210 = vmatpush1.msra.mxu0 0.0
        %2211 = vmatprep.subr.mxu0 0.0
        %2212 = vmatpush1.msra.mxu0 0.0
        %2213 = vmatprep.subr.mxu0 0.0
        %2214 = vmatpush1.msra.mxu0 0.0
        %2215 = vmatprep.subr.mxu0 0.0
        %2216 = vmatpush1.msra.mxu0 0.0
        %2217 = vmatprep.subr.mxu0 0.0
        %2218 = vmatpush1.msra.mxu0 0.0
        %2219 = vmatprep.subr.mxu0 0.0
        %2220 = vmatpush1.msra.mxu0 0.0
        %2221 = vmatprep.subr.mxu0 0.0
        %2222 = vmatpush1.msra.mxu0 0.0
        %2223 = vmatprep.subr.mxu0 0.0
        %2224 = vmatpush1.msra.mxu0 0.0
        %2225 = vmatprep.subr.mxu0 0.0
        %2226 = vmatpush1.msra.mxu0 0.0
        %2227 = vmatprep.subr.mxu0 0.0
        %2228 = vmatpush1.msra.mxu0 0.0
        %2229 = vmatprep.subr.mxu0 0.0
        %2230 = vmatpush1.msra.mxu0 0.0
        %2231 = vmatprep.subr.mxu0 0.0
        %2232 = vmatpush1.msra.mxu0 0.0
        %2233 = vmatprep.subr.mxu0 0.0
        %2234 = vmatpush1.msra.mxu0 0.0
        %2235 = vmatprep.subr.mxu0 0.0
        %2236 = vmatpush1.msra.mxu0 0.0
        %2237 = vmatprep.subr.mxu0 0.0
        %2238 = vmatpush1.msra.mxu0 0.0
        %2239 = vmatprep.subr.mxu0 0.0
        %2240 = vmatpush1.msra.mxu0 0.0
        %2241 = vmatprep.subr.mxu0 0.0
        %2242 = vmatpush1.msra.mxu0 0.0
        %2243 = vmatprep.subr.mxu0 0.0
        %2244 = vmatpush1.msra.mxu0 0.0
        %2245 = vmatprep.subr.mxu0 0.0
        %2246 = vmatpush1.msra.mxu0 0.0
        %2247 = vmatprep.subr.mxu0 0.0
        %2248 = vmatpush1.msra.mxu0 0.0
        %2249 = vmatprep.mubr.f32.mxu0 0.0
        %2250 = vmatmul.mubr.f32.gmra.mrb[0].mxu0 %v2135
        %v2251 = vpop.f32.mrb[0].mxu0
        %v2252 = vadd.f32 0.0, %v2251
        %v2253 = vpop.f32.mrb[0].mxu0
        %2254 = vmatprep.mubr.f32.mxu0 0.0
        %2255 = vmatmul.mubr.f32.gmra.mrb[0].mxu0 %v2138
        %v2256 = vpop.f32.mrb[0].mxu0
        %v2257 = vadd.f32 0.0, %v2256
        %v2258 = vpop.f32.mrb[0].mxu0
        %2259 = vmatprep.mubr.f32.mxu0 0.0
        %2260 = vmatmul.mubr.f32.gmra.mrb[0].mxu0 %v2141
        %v2261 = vpop.f32.mrb[0].mxu0
        %v2262 = vadd.f32 0.0, %v2261
        %v2263 = vpop.f32.mrb[0].mxu0
        %2264 = vmatprep.mubr.f32.mxu0 0.0
        %2265 = vmatmul.mubr.f32.gmra.mrb[0].mxu0 %v2144
        %v2266 = vpop.f32.mrb[0].mxu0
        %v2267 = vadd.f32 0.0, %v2266
        %v2268 = vpop.f32.mrb[0].mxu0
        %2269 = vmatprep.mubr.f32.mxu0 0.0
        %2270 = vmatmul.mubr.f32.gmra.mrb[0].mxu0 %v2147
        %v2271 = vpop.f32.mrb[0].mxu0
        %v2272 = vadd.f32 0.0, %v2271
        %v2273 = vpop.f32.mrb[0].mxu0
        %2274 = vmatprep.mubr.f32.mxu0 0.0
        %2275 = vmatmul.mubr.f32.gmra.mrb[0].mxu0 %v2150
        %v2276 = vpop.f32.mrb[0].mxu0
        %v2277 = vadd.f32 0.0, %v2276
        %v2278 = vpop.f32.mrb[0].mxu0
        %2279 = vmatprep.mubr.f32.mxu0 0.0
        %2280 = vmatmul.mubr.f32.gmra.mrb[0].mxu0 %v2153
        %v2281 = vpop.f32.mrb[0].mxu0
        %v2282 = vadd.f32 0.0, %v2281
        %v2283 = vpop.f32.mrb[0].mxu0
        %2284 = vmatprep.mubr.f32.mxu0 0.0
        %2285 = vmatmul.mubr.f32.gmra.mrb[0].mxu0 %v2156
        %v2286 = vpop.f32.mrb[0].mxu0
        %v2287 = vadd.f32 0.0, %v2286
        %v2288 = vpop.f32.mrb[0].mxu0
        %2289 = vmatprep.mubr.f32.mxu0 0.0
        %2290 = vmatmul.mubr.f32.gmra.mrb[0].mxu0 %v2159
        %v2291 = vpop.f32.mrb[0].mxu0
        %v2292 = vadd.f32 0.0, %v2291
        %v2293 = vpop.f32.mrb[0].mxu0
        %2294 = vmatprep.mubr.f32.mxu0 0.0
        %2295 = vmatmul.mubr.f32.gmra.mrb[0].mxu0 %v2162
        %v2296 = vpop.f32.mrb[0].mxu0
        %v2297 = vadd.f32 0.0, %v2296
        %v2298 = vpop.f32.mrb[0].mxu0
        %2299 = vmatprep.mubr.f32.mxu0 0.0
        %2300 = vmatmul.mubr.f32.gmra.mrb[0].mxu0 %v2165
        %v2301 = vpop.f32.mrb[0].mxu0
        %v2302 = vadd.f32 0.0, %v2301
        %v2303 = vpop.f32.mrb[0].mxu0
        %2304 = vmatprep.mubr.f32.mxu0 0.0
        %2305 = vmatmul.mubr.f32.gmra.mrb[0].mxu0 %v2168
        %v2306 = vpop.f32.mrb[0].mxu0
        %v2307 = vadd.f32 0.0, %v2306
        %v2308 = vpop.f32.mrb[0].mxu0
        %2309 = vmatprep.mubr.f32.mxu0 0.0
        %2310 = vmatmul.mubr.f32.gmra.mrb[0].mxu0 %v2171
        %v2311 = vpop.f32.mrb[0].mxu0
        %v2312 = vadd.f32 0.0, %v2311
        %v2313 = vpop.f32.mrb[0].mxu0
        %2314 = vmatprep.mubr.f32.mxu0 0.0
        %2315 = vmatmul.mubr.f32.gmra.mrb[0].mxu0 %v2174
        %v2316 = vpop.f32.mrb[0].mxu0
        %v2317 = vadd.f32 0.0, %v2316
        %v2318 = vpop.f32.mrb[0].mxu0
        %2319 = vmatprep.mubr.f32.mxu0 0.0
        %2320 = vmatmul.mubr.f32.gmra.mrb[0].mxu0 %v2177
        %v2321 = vpop.f32.mrb[0].mxu0
        %v2322 = vadd.f32 0.0, %v2321
        %v2323 = vpop.f32.mrb[0].mxu0
        %2324 = vmatprep.mubr.f32.mxu0 0.0
        %2325 = vmatmul.mubr.f32.gmra.mrb[0].mxu0 %v2180
        %v2326 = vpop.f32.mrb[0].mxu0
        %v2327 = vadd.f32 0.0, %v2326
        %v2328 = vpop.f32.mrb[0].mxu0
        %2329 = vdwg.mxu0
        %v2331 = vcombine.high %v585, %v585
        %v2333 = vunpack.c.l.s4 1966171168
        %v2334 = vunpack.c.0.s8 %v2333
        %v2335 = vlaneseq
        %v2336 = vshrl.u32 %v2335, 7
        %v2337 = vsub.s32 %v2334, %v2336
        %v2338 = vrot.slane %v585, %v2337
        %v2340 = vunpack.c.l.s4 1966171168
        %v2341 = vunpack.c.0.s8 %v2340
        %v2342 = vlaneseq
        %v2343 = vshrl.u32 %v2342, 7
        %v2344 = vsub.s32 %v2341, %v2343
        %v2345 = vrot.slane %v2331, %v2344
        %v2346 = vcombine.high %v2338, %v2338
        %v2347 = vcombine.high %v2345, %v2345
        %v2349 = vunpack.c.l.s4 1966171168
        %v2350 = vunpack.c.0.s8 %v2349
        %v2351 = vlaneseq
        %v2352 = vshrl.u32 %v2351, 7
        %v2353 = vsub.s32 %v2350, %v2352
        %v2354 = vrot.slane %v2338, %v2353
        %v2356 = vunpack.c.l.s4 1966171168
        %v2357 = vunpack.c.0.s8 %v2356
        %v2358 = vlaneseq
        %v2359 = vshrl.u32 %v2358, 7
        %v2360 = vsub.s32 %v2357, %v2359
        %v2361 = vrot.slane %v2345, %v2360
        %v2363 = vunpack.c.l.s4 1966171168
        %v2364 = vunpack.c.0.s8 %v2363
        %v2365 = vlaneseq
        %v2366 = vshrl.u32 %v2365, 7
        %v2367 = vsub.s32 %v2364, %v2366
        %v2368 = vrot.slane %v2346, %v2367
        %v2370 = vunpack.c.l.s4 1966171168
        %v2371 = vunpack.c.0.s8 %v2370
        %v2372 = vlaneseq
        %v2373 = vshrl.u32 %v2372, 7
        %v2374 = vsub.s32 %v2371, %v2373
        %v2375 = vrot.slane %v2347, %v2374
        %v2376 = vcombine.high %v2354, %v2354
        %v2377 = vcombine.high %v2361, %v2361
        %v2378 = vcombine.high %v2368, %v2368
        %v2379 = vcombine.high %v2375, %v2375
        %v2380 = vlaneseq
        %v2381 = vshrl.u32 %v2380, 7
        %v2382 = vsub.s32 0, %v2381
        %v2383 = vrot.slane %v2354, %v2382
        %v2384 = vlaneseq
        %v2385 = vshrl.u32 %v2384, 7
        %v2386 = vsub.s32 0, %v2385
        %v2387 = vrot.slane %v2368, %v2386
        %v2388 = vlaneseq
        %v2389 = vshrl.u32 %v2388, 7
        %v2390 = vsub.s32 0, %v2389
        %v2391 = vrot.slane %v2376, %v2390
        %v2392 = vlaneseq
        %v2393 = vshrl.u32 %v2392, 7
        %v2394 = vsub.s32 0, %v2393
        %v2395 = vrot.slane %v2378, %v2394
        %v2396 = vlaneseq
        %v2397 = vshrl.u32 %v2396, 7
        %v2398 = vsub.s32 0, %v2397
        %v2399 = vrot.slane %v2361, %v2398
        %v2400 = vlaneseq
        %v2401 = vshrl.u32 %v2400, 7
        %v2402 = vsub.s32 0, %v2401
        %v2403 = vrot.slane %v2375, %v2402
        %v2404 = vlaneseq
        %v2405 = vshrl.u32 %v2404, 7
        %v2406 = vsub.s32 0, %v2405
        %v2407 = vrot.slane %v2377, %v2406
        %v2408 = vlaneseq
        %v2409 = vshrl.u32 %v2408, 7
        %v2410 = vsub.s32 0, %v2409
        %v2411 = vrot.slane %v2379, %v2410
        %v2420 = vadd.f32 %v2383, %v880
        %v2421 = vadd.f32 %v2383, %v885
        %v2422 = vadd.f32 %v2383, %v890
        %v2423 = vadd.f32 %v2383, %v895
        %v2424 = vadd.f32 %v2383, %v900
        %v2425 = vadd.f32 %v2383, %v905
        %v2426 = vadd.f32 %v2383, %v910
        %v2427 = vadd.f32 %v2383, %v915
        %v2428 = vadd.f32 %v2383, %v920
        %v2429 = vadd.f32 %v2383, %v925
        %v2430 = vadd.f32 %v2383, %v930
        %v2431 = vadd.f32 %v2383, %v935
        %v2432 = vadd.f32 %v2383, %v940
        %v2433 = vadd.f32 %v2383, %v945
        %v2434 = vadd.f32 %v2383, %v950
        %v2435 = vadd.f32 %v2383, %v955
        %v2436 = vadd.f32 %v2387, %v1076
        %v2437 = vadd.f32 %v2387, %v1081
        %v2438 = vadd.f32 %v2387, %v1086
        %v2439 = vadd.f32 %v2387, %v1091
        %v2440 = vadd.f32 %v2387, %v1096
        %v2441 = vadd.f32 %v2387, %v1101
        %v2442 = vadd.f32 %v2387, %v1106
        %v2443 = vadd.f32 %v2387, %v1111
        %v2444 = vadd.f32 %v2387, %v1116
        %v2445 = vadd.f32 %v2387, %v1121
        %v2446 = vadd.f32 %v2387, %v1126
        %v2447 = vadd.f32 %v2387, %v1131
        %v2448 = vadd.f32 %v2387, %v1136
        %v2449 = vadd.f32 %v2387, %v1141
        %v2450 = vadd.f32 %v2387, %v1146
        %v2451 = vadd.f32 %v2387, %v1151
        %v2452 = vadd.f32 %v2391, %v1272
        %v2453 = vadd.f32 %v2391, %v1277
        %v2454 = vadd.f32 %v2391, %v1282
        %v2455 = vadd.f32 %v2391, %v1287
        %v2456 = vadd.f32 %v2391, %v1292
        %v2457 = vadd.f32 %v2391, %v1297
        %v2458 = vadd.f32 %v2391, %v1302
        %v2459 = vadd.f32 %v2391, %v1307
        %v2460 = vadd.f32 %v2391, %v1312
        %v2461 = vadd.f32 %v2391, %v1317
        %v2462 = vadd.f32 %v2391, %v1322
        %v2463 = vadd.f32 %v2391, %v1327
        %v2464 = vadd.f32 %v2391, %v1332
        %v2465 = vadd.f32 %v2391, %v1337
        %v2466 = vadd.f32 %v2391, %v1342
        %v2467 = vadd.f32 %v2391, %v1347
        %v2468 = vadd.f32 %v2395, %v1468
        %v2469 = vadd.f32 %v2395, %v1473
        %v2470 = vadd.f32 %v2395, %v1478
        %v2471 = vadd.f32 %v2395, %v1483
        %v2472 = vadd.f32 %v2395, %v1488
        %v2473 = vadd.f32 %v2395, %v1493
        %v2474 = vadd.f32 %v2395, %v1498
        %v2475 = vadd.f32 %v2395, %v1503
        %v2476 = vadd.f32 %v2395, %v1508
        %v2477 = vadd.f32 %v2395, %v1513
        %v2478 = vadd.f32 %v2395, %v1518
        %v2479 = vadd.f32 %v2395, %v1523
        %v2480 = vadd.f32 %v2395, %v1528
        %v2481 = vadd.f32 %v2395, %v1533
        %v2482 = vadd.f32 %v2395, %v1538
        %v2483 = vadd.f32 %v2395, %v1543
        %v2484 = vadd.f32 %v2399, %v1664
        %v2485 = vadd.f32 %v2399, %v1669
        %v2486 = vadd.f32 %v2399, %v1674
        %v2487 = vadd.f32 %v2399, %v1679
        %v2488 = vadd.f32 %v2399, %v1684
        %v2489 = vadd.f32 %v2399, %v1689
        %v2490 = vadd.f32 %v2399, %v1694
        %v2491 = vadd.f32 %v2399, %v1699
        %v2492 = vadd.f32 %v2399, %v1704
        %v2493 = vadd.f32 %v2399, %v1709
        %v2494 = vadd.f32 %v2399, %v1714
        %v2495 = vadd.f32 %v2399, %v1719
        %v2496 = vadd.f32 %v2399, %v1724
        %v2497 = vadd.f32 %v2399, %v1729
        %v2498 = vadd.f32 %v2399, %v1734
        %v2499 = vadd.f32 %v2399, %v1739
        %v2500 = vadd.f32 %v2403, %v1860
        %v2501 = vadd.f32 %v2403, %v1865
        %v2502 = vadd.f32 %v2403, %v1870
        %v2503 = vadd.f32 %v2403, %v1875
        %v2504 = vadd.f32 %v2403, %v1880
        %v2505 = vadd.f32 %v2403, %v1885
        %v2506 = vadd.f32 %v2403, %v1890
        %v2507 = vadd.f32 %v2403, %v1895
        %v2508 = vadd.f32 %v2403, %v1900
        %v2509 = vadd.f32 %v2403, %v1905
        %v2510 = vadd.f32 %v2403, %v1910
        %v2511 = vadd.f32 %v2403, %v1915
        %v2512 = vadd.f32 %v2403, %v1920
        %v2513 = vadd.f32 %v2403, %v1925
        %v2514 = vadd.f32 %v2403, %v1930
        %v2515 = vadd.f32 %v2403, %v1935
        %v2516 = vadd.f32 %v2407, %v2056
        %v2517 = vadd.f32 %v2407, %v2061
        %v2518 = vadd.f32 %v2407, %v2066
        %v2519 = vadd.f32 %v2407, %v2071
        %v2520 = vadd.f32 %v2407, %v2076
        %v2521 = vadd.f32 %v2407, %v2081
        %v2522 = vadd.f32 %v2407, %v2086
        %v2523 = vadd.f32 %v2407, %v2091
        %v2524 = vadd.f32 %v2407, %v2096
        %v2525 = vadd.f32 %v2407, %v2101
        %v2526 = vadd.f32 %v2407, %v2106
        %v2527 = vadd.f32 %v2407, %v2111
        %v2528 = vadd.f32 %v2407, %v2116
        %v2529 = vadd.f32 %v2407, %v2121
        %v2530 = vadd.f32 %v2407, %v2126
        %v2531 = vadd.f32 %v2407, %v2131
        %v2532 = vadd.f32 %v2411, %v2252
        %v2533 = vadd.f32 %v2411, %v2257
        %v2534 = vadd.f32 %v2411, %v2262
        %v2535 = vadd.f32 %v2411, %v2267
        %v2536 = vadd.f32 %v2411, %v2272
        %v2537 = vadd.f32 %v2411, %v2277
        %v2538 = vadd.f32 %v2411, %v2282
        %v2539 = vadd.f32 %v2411, %v2287
        %v2540 = vadd.f32 %v2411, %v2292
        %v2541 = vadd.f32 %v2411, %v2297
        %v2542 = vadd.f32 %v2411, %v2302
        %v2543 = vadd.f32 %v2411, %v2307
        %v2544 = vadd.f32 %v2411, %v2312
        %v2545 = vadd.f32 %v2411, %v2317
        %v2546 = vadd.f32 %v2411, %v2322
        %v2547 = vadd.f32 %v2411, %v2327
        %v2548 = vxor.u32 %v2420, 2147483648
        %v2549 = vxor.u32 %v2421, 2147483648
        %v2550 = vxor.u32 %v2422, 2147483648
        %v2551 = vxor.u32 %v2423, 2147483648
        %v2552 = vxor.u32 %v2424, 2147483648
        %v2553 = vxor.u32 %v2425, 2147483648
        %v2554 = vxor.u32 %v2426, 2147483648
        %v2555 = vxor.u32 %v2427, 2147483648
        %v2556 = vxor.u32 %v2428, 2147483648
        %v2557 = vxor.u32 %v2429, 2147483648
        %v2558 = vxor.u32 %v2430, 2147483648
        %v2559 = vxor.u32 %v2431, 2147483648
        %v2560 = vxor.u32 %v2432, 2147483648
        %v2561 = vxor.u32 %v2433, 2147483648
        %v2562 = vxor.u32 %v2434, 2147483648
        %v2563 = vxor.u32 %v2435, 2147483648
        %v2564 = vxor.u32 %v2436, 2147483648
        %v2565 = vxor.u32 %v2437, 2147483648
        %v2566 = vxor.u32 %v2438, 2147483648
        %v2567 = vxor.u32 %v2439, 2147483648
        %v2568 = vxor.u32 %v2440, 2147483648
        %v2569 = vxor.u32 %v2441, 2147483648
        %v2570 = vxor.u32 %v2442, 2147483648
        %v2571 = vxor.u32 %v2443, 2147483648
        %v2572 = vxor.u32 %v2444, 2147483648
        %v2573 = vxor.u32 %v2445, 2147483648
        %v2574 = vxor.u32 %v2446, 2147483648
        %v2575 = vxor.u32 %v2447, 2147483648
        %v2576 = vxor.u32 %v2448, 2147483648
        %v2577 = vxor.u32 %v2449, 2147483648
        %v2578 = vxor.u32 %v2450, 2147483648
        %v2579 = vxor.u32 %v2451, 2147483648
        %v2580 = vxor.u32 %v2452, 2147483648
        %v2581 = vxor.u32 %v2453, 2147483648
        %v2582 = vxor.u32 %v2454, 2147483648
        %v2583 = vxor.u32 %v2455, 2147483648
        %v2584 = vxor.u32 %v2456, 2147483648
        %v2585 = vxor.u32 %v2457, 2147483648
        %v2586 = vxor.u32 %v2458, 2147483648
        %v2587 = vxor.u32 %v2459, 2147483648
        %v2588 = vxor.u32 %v2460, 2147483648
        %v2589 = vxor.u32 %v2461, 2147483648
        %v2590 = vxor.u32 %v2462, 2147483648
        %v2591 = vxor.u32 %v2463, 2147483648
        %v2592 = vxor.u32 %v2464, 2147483648
        %v2593 = vxor.u32 %v2465, 2147483648
        %v2594 = vxor.u32 %v2466, 2147483648
        %v2595 = vxor.u32 %v2467, 2147483648
        %v2596 = vxor.u32 %v2468, 2147483648
        %v2597 = vxor.u32 %v2469, 2147483648
        %v2598 = vxor.u32 %v2470, 2147483648
        %v2599 = vxor.u32 %v2471, 2147483648
        %v2600 = vxor.u32 %v2472, 2147483648
        %v2601 = vxor.u32 %v2473, 2147483648
        %v2602 = vxor.u32 %v2474, 2147483648
        %v2603 = vxor.u32 %v2475, 2147483648
        %v2604 = vxor.u32 %v2476, 2147483648
        %v2605 = vxor.u32 %v2477, 2147483648
        %v2606 = vxor.u32 %v2478, 2147483648
        %v2607 = vxor.u32 %v2479, 2147483648
        %v2608 = vxor.u32 %v2480, 2147483648
        %v2609 = vxor.u32 %v2481, 2147483648
        %v2610 = vxor.u32 %v2482, 2147483648
        %v2611 = vxor.u32 %v2483, 2147483648
        %v2612 = vxor.u32 %v2484, 2147483648
        %v2613 = vxor.u32 %v2485, 2147483648
        %v2614 = vxor.u32 %v2486, 2147483648
        %v2615 = vxor.u32 %v2487, 2147483648
        %v2616 = vxor.u32 %v2488, 2147483648
        %v2617 = vxor.u32 %v2489, 2147483648
        %v2618 = vxor.u32 %v2490, 2147483648
        %v2619 = vxor.u32 %v2491, 2147483648
        %v2620 = vxor.u32 %v2492, 2147483648
        %v2621 = vxor.u32 %v2493, 2147483648
        %v2622 = vxor.u32 %v2494, 2147483648
        %v2623 = vxor.u32 %v2495, 2147483648
        %v2624 = vxor.u32 %v2496, 2147483648
        %v2625 = vxor.u32 %v2497, 2147483648
        %v2626 = vxor.u32 %v2498, 2147483648
        %v2627 = vxor.u32 %v2499, 2147483648
        %v2628 = vxor.u32 %v2500, 2147483648
        %v2629 = vxor.u32 %v2501, 2147483648
        %v2630 = vxor.u32 %v2502, 2147483648
        %v2631 = vxor.u32 %v2503, 2147483648
        %v2632 = vxor.u32 %v2504, 2147483648
        %v2633 = vxor.u32 %v2505, 2147483648
        %v2634 = vxor.u32 %v2506, 2147483648
        %v2635 = vxor.u32 %v2507, 2147483648
        %v2636 = vxor.u32 %v2508, 2147483648
        %v2637 = vxor.u32 %v2509, 2147483648
        %v2638 = vxor.u32 %v2510, 2147483648
        %v2639 = vxor.u32 %v2511, 2147483648
        %v2640 = vxor.u32 %v2512, 2147483648
        %v2641 = vxor.u32 %v2513, 2147483648
        %v2642 = vxor.u32 %v2514, 2147483648
        %v2643 = vxor.u32 %v2515, 2147483648
        %v2644 = vxor.u32 %v2516, 2147483648
        %v2645 = vxor.u32 %v2517, 2147483648
        %v2646 = vxor.u32 %v2518, 2147483648
        %v2647 = vxor.u32 %v2519, 2147483648
        %v2648 = vxor.u32 %v2520, 2147483648
        %v2649 = vxor.u32 %v2521, 2147483648
        %v2650 = vxor.u32 %v2522, 2147483648
        %v2651 = vxor.u32 %v2523, 2147483648
        %v2652 = vxor.u32 %v2524, 2147483648
        %v2653 = vxor.u32 %v2525, 2147483648
        %v2654 = vxor.u32 %v2526, 2147483648
        %v2655 = vxor.u32 %v2527, 2147483648
        %v2656 = vxor.u32 %v2528, 2147483648
        %v2657 = vxor.u32 %v2529, 2147483648
        %v2658 = vxor.u32 %v2530, 2147483648
        %v2659 = vxor.u32 %v2531, 2147483648
        %v2660 = vxor.u32 %v2532, 2147483648
        %v2661 = vxor.u32 %v2533, 2147483648
        %v2662 = vxor.u32 %v2534, 2147483648
        %v2663 = vxor.u32 %v2535, 2147483648
        %v2664 = vxor.u32 %v2536, 2147483648
        %v2665 = vxor.u32 %v2537, 2147483648
        %v2666 = vxor.u32 %v2538, 2147483648
        %v2667 = vxor.u32 %v2539, 2147483648
        %v2668 = vxor.u32 %v2540, 2147483648
        %v2669 = vxor.u32 %v2541, 2147483648
        %v2670 = vxor.u32 %v2542, 2147483648
        %v2671 = vxor.u32 %v2543, 2147483648
        %v2672 = vxor.u32 %v2544, 2147483648
        %v2673 = vxor.u32 %v2545, 2147483648
        %v2674 = vxor.u32 %v2546, 2147483648
        %v2675 = vxor.u32 %v2547, 2147483648
        %v2676 = vmul.f32 %v2548, 1.442695
        %v2677 = vpow.pop %v2676
        %v2678 = vmul.f32 %v2549, 1.442695
        %v2679 = vpow.pop %v2678
        %v2680 = vmul.f32 %v2550, 1.442695
        %v2681 = vpow.pop %v2680
        %v2682 = vmul.f32 %v2551, 1.442695
        %v2683 = vpow.pop %v2682
        %v2684 = vmul.f32 %v2552, 1.442695
        %v2685 = vpow.pop %v2684
        %v2686 = vmul.f32 %v2553, 1.442695
        %v2687 = vpow.pop %v2686
        %v2688 = vmul.f32 %v2554, 1.442695
        %v2689 = vpow.pop %v2688
        %v2690 = vmul.f32 %v2555, 1.442695
        %v2691 = vpow.pop %v2690
        %v2692 = vmul.f32 %v2556, 1.442695
        %v2693 = vpow.pop %v2692
        %v2694 = vmul.f32 %v2557, 1.442695
        %v2695 = vpow.pop %v2694
        %v2696 = vmul.f32 %v2558, 1.442695
        %v2697 = vpow.pop %v2696
        %v2698 = vmul.f32 %v2559, 1.442695
        %v2699 = vpow.pop %v2698
        %v2700 = vmul.f32 %v2560, 1.442695
        %v2701 = vpow.pop %v2700
        %v2702 = vmul.f32 %v2561, 1.442695
        %v2703 = vpow.pop %v2702
        %v2704 = vmul.f32 %v2562, 1.442695
        %v2705 = vpow.pop %v2704
        %v2706 = vmul.f32 %v2563, 1.442695
        %v2707 = vpow.pop %v2706
        %v2708 = vmul.f32 %v2564, 1.442695
        %v2709 = vpow.pop %v2708
        %v2710 = vmul.f32 %v2565, 1.442695
        %v2711 = vpow.pop %v2710
        %v2712 = vmul.f32 %v2566, 1.442695
        %v2713 = vpow.pop %v2712
        %v2714 = vmul.f32 %v2567, 1.442695
        %v2715 = vpow.pop %v2714
        %v2716 = vmul.f32 %v2568, 1.442695
        %v2717 = vpow.pop %v2716
        %v2718 = vmul.f32 %v2569, 1.442695
        %v2719 = vpow.pop %v2718
        %v2720 = vmul.f32 %v2570, 1.442695
        %v2721 = vpow.pop %v2720
        %v2722 = vmul.f32 %v2571, 1.442695
        %v2723 = vpow.pop %v2722
        %v2724 = vmul.f32 %v2572, 1.442695
        %v2725 = vpow.pop %v2724
        %v2726 = vmul.f32 %v2573, 1.442695
        %v2727 = vpow.pop %v2726
        %v2728 = vmul.f32 %v2574, 1.442695
        %v2729 = vpow.pop %v2728
        %v2730 = vmul.f32 %v2575, 1.442695
        %v2731 = vpow.pop %v2730
        %v2732 = vmul.f32 %v2576, 1.442695
        %v2733 = vpow.pop %v2732
        %v2734 = vmul.f32 %v2577, 1.442695
        %v2735 = vpow.pop %v2734
        %v2736 = vmul.f32 %v2578, 1.442695
        %v2737 = vpow.pop %v2736
        %v2738 = vmul.f32 %v2579, 1.442695
        %v2739 = vpow.pop %v2738
        %v2740 = vmul.f32 %v2580, 1.442695
        %v2741 = vpow.pop %v2740
        %v2742 = vmul.f32 %v2581, 1.442695
        %v2743 = vpow.pop %v2742
        %v2744 = vmul.f32 %v2582, 1.442695
        %v2745 = vpow.pop %v2744
        %v2746 = vmul.f32 %v2583, 1.442695
        %v2747 = vpow.pop %v2746
        %v2748 = vmul.f32 %v2584, 1.442695
        %v2749 = vpow.pop %v2748
        %v2750 = vmul.f32 %v2585, 1.442695
        %v2751 = vpow.pop %v2750
        %v2752 = vmul.f32 %v2586, 1.442695
        %v2753 = vpow.pop %v2752
        %v2754 = vmul.f32 %v2587, 1.442695
        %v2755 = vpow.pop %v2754
        %v2756 = vmul.f32 %v2588, 1.442695
        %v2757 = vpow.pop %v2756
        %v2758 = vmul.f32 %v2589, 1.442695
        %v2759 = vpow.pop %v2758
        %v2760 = vmul.f32 %v2590, 1.442695
        %v2761 = vpow.pop %v2760
        %v2762 = vmul.f32 %v2591, 1.442695
        %v2763 = vpow.pop %v2762
        %v2764 = vmul.f32 %v2592, 1.442695
        %v2765 = vpow.pop %v2764
        %v2766 = vmul.f32 %v2593, 1.442695
        %v2767 = vpow.pop %v2766
        %v2768 = vmul.f32 %v2594, 1.442695
        %v2769 = vpow.pop %v2768
        %v2770 = vmul.f32 %v2595, 1.442695
        %v2771 = vpow.pop %v2770
        %v2772 = vmul.f32 %v2596, 1.442695
        %v2773 = vpow.pop %v2772
        %v2774 = vmul.f32 %v2597, 1.442695
        %v2775 = vpow.pop %v2774
        %v2776 = vmul.f32 %v2598, 1.442695
        %v2777 = vpow.pop %v2776
        %v2778 = vmul.f32 %v2599, 1.442695
        %v2779 = vpow.pop %v2778
        %v2780 = vmul.f32 %v2600, 1.442695
        %v2781 = vpow.pop %v2780
        %v2782 = vmul.f32 %v2601, 1.442695
        %v2783 = vpow.pop %v2782
        %v2784 = vmul.f32 %v2602, 1.442695
        %v2785 = vpow.pop %v2784
        %v2786 = vmul.f32 %v2603, 1.442695
        %v2787 = vpow.pop %v2786
        %v2788 = vmul.f32 %v2604, 1.442695
        %v2789 = vpow.pop %v2788
        %v2790 = vmul.f32 %v2605, 1.442695
        %v2791 = vpow.pop %v2790
        %v2792 = vmul.f32 %v2606, 1.442695
        %v2793 = vpow.pop %v2792
        %v2794 = vmul.f32 %v2607, 1.442695
        %v2795 = vpow.pop %v2794
        %v2796 = vmul.f32 %v2608, 1.442695
        %v2797 = vpow.pop %v2796
        %v2798 = vmul.f32 %v2609, 1.442695
        %v2799 = vpow.pop %v2798
        %v2800 = vmul.f32 %v2610, 1.442695
        %v2801 = vpow.pop %v2800
        %v2802 = vmul.f32 %v2611, 1.442695
        %v2803 = vpow.pop %v2802
        %v2804 = vmul.f32 %v2612, 1.442695
        %v2805 = vpow.pop %v2804
        %v2806 = vmul.f32 %v2613, 1.442695
        %v2807 = vpow.pop %v2806
        %v2808 = vmul.f32 %v2614, 1.442695
        %v2809 = vpow.pop %v2808
        %v2810 = vmul.f32 %v2615, 1.442695
        %v2811 = vpow.pop %v2810
        %v2812 = vmul.f32 %v2616, 1.442695
        %v2813 = vpow.pop %v2812
        %v2814 = vmul.f32 %v2617, 1.442695
        %v2815 = vpow.pop %v2814
        %v2816 = vmul.f32 %v2618, 1.442695
        %v2817 = vpow.pop %v2816
        %v2818 = vmul.f32 %v2619, 1.442695
        %v2819 = vpow.pop %v2818
        %v2820 = vmul.f32 %v2620, 1.442695
        %v2821 = vpow.pop %v2820
        %v2822 = vmul.f32 %v2621, 1.442695
        %v2823 = vpow.pop %v2822
        %v2824 = vmul.f32 %v2622, 1.442695
        %v2825 = vpow.pop %v2824
        %v2826 = vmul.f32 %v2623, 1.442695
        %v2827 = vpow.pop %v2826
        %v2828 = vmul.f32 %v2624, 1.442695
        %v2829 = vpow.pop %v2828
        %v2830 = vmul.f32 %v2625, 1.442695
        %v2831 = vpow.pop %v2830
        %v2832 = vmul.f32 %v2626, 1.442695
        %v2833 = vpow.pop %v2832
        %v2834 = vmul.f32 %v2627, 1.442695
        %v2835 = vpow.pop %v2834
        %v2836 = vmul.f32 %v2628, 1.442695
        %v2837 = vpow.pop %v2836
        %v2838 = vmul.f32 %v2629, 1.442695
        %v2839 = vpow.pop %v2838
        %v2840 = vmul.f32 %v2630, 1.442695
        %v2841 = vpow.pop %v2840
        %v2842 = vmul.f32 %v2631, 1.442695
        %v2843 = vpow.pop %v2842
        %v2844 = vmul.f32 %v2632, 1.442695
        %v2845 = vpow.pop %v2844
        %v2846 = vmul.f32 %v2633, 1.442695
        %v2847 = vpow.pop %v2846
        %v2848 = vmul.f32 %v2634, 1.442695
        %v2849 = vpow.pop %v2848
        %v2850 = vmul.f32 %v2635, 1.442695
        %v2851 = vpow.pop %v2850
        %v2852 = vmul.f32 %v2636, 1.442695
        %v2853 = vpow.pop %v2852
        %v2854 = vmul.f32 %v2637, 1.442695
        %v2855 = vpow.pop %v2854
        %v2856 = vmul.f32 %v2638, 1.442695
        %v2857 = vpow.pop %v2856
        %v2858 = vmul.f32 %v2639, 1.442695
        %v2859 = vpow.pop %v2858
        %v2860 = vmul.f32 %v2640, 1.442695
        %v2861 = vpow.pop %v2860
        %v2862 = vmul.f32 %v2641, 1.442695
        %v2863 = vpow.pop %v2862
        %v2864 = vmul.f32 %v2642, 1.442695
        %v2865 = vpow.pop %v2864
        %v2866 = vmul.f32 %v2643, 1.442695
        %v2867 = vpow.pop %v2866
        %v2868 = vmul.f32 %v2644, 1.442695
        %v2869 = vpow.pop %v2868
        %v2870 = vmul.f32 %v2645, 1.442695
        %v2871 = vpow.pop %v2870
        %v2872 = vmul.f32 %v2646, 1.442695
        %v2873 = vpow.pop %v2872
        %v2874 = vmul.f32 %v2647, 1.442695
        %v2875 = vpow.pop %v2874
        %v2876 = vmul.f32 %v2648, 1.442695
        %v2877 = vpow.pop %v2876
        %v2878 = vmul.f32 %v2649, 1.442695
        %v2879 = vpow.pop %v2878
        %v2880 = vmul.f32 %v2650, 1.442695
        %v2881 = vpow.pop %v2880
        %v2882 = vmul.f32 %v2651, 1.442695
        %v2883 = vpow.pop %v2882
        %v2884 = vmul.f32 %v2652, 1.442695
        %v2885 = vpow.pop %v2884
        %v2886 = vmul.f32 %v2653, 1.442695
        %v2887 = vpow.pop %v2886
        %v2888 = vmul.f32 %v2654, 1.442695
        %v2889 = vpow.pop %v2888
        %v2890 = vmul.f32 %v2655, 1.442695
        %v2891 = vpow.pop %v2890
        %v2892 = vmul.f32 %v2656, 1.442695
        %v2893 = vpow.pop %v2892
        %v2894 = vmul.f32 %v2657, 1.442695
        %v2895 = vpow.pop %v2894
        %v2896 = vmul.f32 %v2658, 1.442695
        %v2897 = vpow.pop %v2896
        %v2898 = vmul.f32 %v2659, 1.442695
        %v2899 = vpow.pop %v2898
        %v2900 = vmul.f32 %v2660, 1.442695
        %v2901 = vpow.pop %v2900
        %v2902 = vmul.f32 %v2661, 1.442695
        %v2903 = vpow.pop %v2902
        %v2904 = vmul.f32 %v2662, 1.442695
        %v2905 = vpow.pop %v2904
        %v2906 = vmul.f32 %v2663, 1.442695
        %v2907 = vpow.pop %v2906
        %v2908 = vmul.f32 %v2664, 1.442695
        %v2909 = vpow.pop %v2908
        %v2910 = vmul.f32 %v2665, 1.442695
        %v2911 = vpow.pop %v2910
        %v2912 = vmul.f32 %v2666, 1.442695
        %v2913 = vpow.pop %v2912
        %v2914 = vmul.f32 %v2667, 1.442695
        %v2915 = vpow.pop %v2914
        %v2916 = vmul.f32 %v2668, 1.442695
        %v2917 = vpow.pop %v2916
        %v2918 = vmul.f32 %v2669, 1.442695
        %v2919 = vpow.pop %v2918
        %v2920 = vmul.f32 %v2670, 1.442695
        %v2921 = vpow.pop %v2920
        %v2922 = vmul.f32 %v2671, 1.442695
        %v2923 = vpow.pop %v2922
        %v2924 = vmul.f32 %v2672, 1.442695
        %v2925 = vpow.pop %v2924
        %v2926 = vmul.f32 %v2673, 1.442695
        %v2927 = vpow.pop %v2926
        %v2928 = vmul.f32 %v2674, 1.442695
        %v2929 = vpow.pop %v2928
        %v2930 = vmul.f32 %v2675, 1.442695
        %v2931 = vpow.pop %v2930
        %v2932 = vadd.f32 %v2677, 1.0
        %v2933 = vadd.f32 %v2679, 1.0
        %v2934 = vadd.f32 %v2681, 1.0
        %v2935 = vadd.f32 %v2683, 1.0
        %v2936 = vadd.f32 %v2685, 1.0
        %v2937 = vadd.f32 %v2687, 1.0
        %v2938 = vadd.f32 %v2689, 1.0
        %v2939 = vadd.f32 %v2691, 1.0
        %v2940 = vadd.f32 %v2693, 1.0
        %v2941 = vadd.f32 %v2695, 1.0
        %v2942 = vadd.f32 %v2697, 1.0
        %v2943 = vadd.f32 %v2699, 1.0
        %v2944 = vadd.f32 %v2701, 1.0
        %v2945 = vadd.f32 %v2703, 1.0
        %v2946 = vadd.f32 %v2705, 1.0
        %v2947 = vadd.f32 %v2707, 1.0
        %v2948 = vadd.f32 %v2709, 1.0
        %v2949 = vadd.f32 %v2711, 1.0
        %v2950 = vadd.f32 %v2713, 1.0
        %v2951 = vadd.f32 %v2715, 1.0
        %v2952 = vadd.f32 %v2717, 1.0
        %v2953 = vadd.f32 %v2719, 1.0
        %v2954 = vadd.f32 %v2721, 1.0
        %v2955 = vadd.f32 %v2723, 1.0
        %v2956 = vadd.f32 %v2725, 1.0
        %v2957 = vadd.f32 %v2727, 1.0
        %v2958 = vadd.f32 %v2729, 1.0
        %v2959 = vadd.f32 %v2731, 1.0
        %v2960 = vadd.f32 %v2733, 1.0
        %v2961 = vadd.f32 %v2735, 1.0
        %v2962 = vadd.f32 %v2737, 1.0
        %v2963 = vadd.f32 %v2739, 1.0
        %v2964 = vadd.f32 %v2741, 1.0
        %v2965 = vadd.f32 %v2743, 1.0
        %v2966 = vadd.f32 %v2745, 1.0
        %v2967 = vadd.f32 %v2747, 1.0
        %v2968 = vadd.f32 %v2749, 1.0
        %v2969 = vadd.f32 %v2751, 1.0
        %v2970 = vadd.f32 %v2753, 1.0
        %v2971 = vadd.f32 %v2755, 1.0
        %v2972 = vadd.f32 %v2757, 1.0
        %v2973 = vadd.f32 %v2759, 1.0
        %v2974 = vadd.f32 %v2761, 1.0
        %v2975 = vadd.f32 %v2763, 1.0
        %v2976 = vadd.f32 %v2765, 1.0
        %v2977 = vadd.f32 %v2767, 1.0
        %v2978 = vadd.f32 %v2769, 1.0
        %v2979 = vadd.f32 %v2771, 1.0
        %v2980 = vadd.f32 %v2773, 1.0
        %v2981 = vadd.f32 %v2775, 1.0
        %v2982 = vadd.f32 %v2777, 1.0
        %v2983 = vadd.f32 %v2779, 1.0
        %v2984 = vadd.f32 %v2781, 1.0
        %v2985 = vadd.f32 %v2783, 1.0
        %v2986 = vadd.f32 %v2785, 1.0
        %v2987 = vadd.f32 %v2787, 1.0
        %v2988 = vadd.f32 %v2789, 1.0
        %v2989 = vadd.f32 %v2791, 1.0
        %v2990 = vadd.f32 %v2793, 1.0
        %v2991 = vadd.f32 %v2795, 1.0
        %v2992 = vadd.f32 %v2797, 1.0
        %v2993 = vadd.f32 %v2799, 1.0
        %v2994 = vadd.f32 %v2801, 1.0
        %v2995 = vadd.f32 %v2803, 1.0
        %v2996 = vadd.f32 %v2805, 1.0
        %v2997 = vadd.f32 %v2807, 1.0
        %v2998 = vadd.f32 %v2809, 1.0
        %v2999 = vadd.f32 %v2811, 1.0
        %v3000 = vadd.f32 %v2813, 1.0
        %v3001 = vadd.f32 %v2815, 1.0
        %v3002 = vadd.f32 %v2817, 1.0
        %v3003 = vadd.f32 %v2819, 1.0
        %v3004 = vadd.f32 %v2821, 1.0
        %v3005 = vadd.f32 %v2823, 1.0
        %v3006 = vadd.f32 %v2825, 1.0
        %v3007 = vadd.f32 %v2827, 1.0
        %v3008 = vadd.f32 %v2829, 1.0
        %v3009 = vadd.f32 %v2831, 1.0
        %v3010 = vadd.f32 %v2833, 1.0
        %v3011 = vadd.f32 %v2835, 1.0
        %v3012 = vadd.f32 %v2837, 1.0
        %v3013 = vadd.f32 %v2839, 1.0
        %v3014 = vadd.f32 %v2841, 1.0
        %v3015 = vadd.f32 %v2843, 1.0
        %v3016 = vadd.f32 %v2845, 1.0
        %v3017 = vadd.f32 %v2847, 1.0
        %v3018 = vadd.f32 %v2849, 1.0
        %v3019 = vadd.f32 %v2851, 1.0
        %v3020 = vadd.f32 %v2853, 1.0
        %v3021 = vadd.f32 %v2855, 1.0
        %v3022 = vadd.f32 %v2857, 1.0
        %v3023 = vadd.f32 %v2859, 1.0
        %v3024 = vadd.f32 %v2861, 1.0
        %v3025 = vadd.f32 %v2863, 1.0
        %v3026 = vadd.f32 %v2865, 1.0
        %v3027 = vadd.f32 %v2867, 1.0
        %v3028 = vadd.f32 %v2869, 1.0
        %v3029 = vadd.f32 %v2871, 1.0
        %v3030 = vadd.f32 %v2873, 1.0
        %v3031 = vadd.f32 %v2875, 1.0
        %v3032 = vadd.f32 %v2877, 1.0
        %v3033 = vadd.f32 %v2879, 1.0
        %v3034 = vadd.f32 %v2881, 1.0
        %v3035 = vadd.f32 %v2883, 1.0
        %v3036 = vadd.f32 %v2885, 1.0
        %v3037 = vadd.f32 %v2887, 1.0
        %v3038 = vadd.f32 %v2889, 1.0
        %v3039 = vadd.f32 %v2891, 1.0
        %v3040 = vadd.f32 %v2893, 1.0
        %v3041 = vadd.f32 %v2895, 1.0
        %v3042 = vadd.f32 %v2897, 1.0
        %v3043 = vadd.f32 %v2899, 1.0
        %v3044 = vadd.f32 %v2901, 1.0
        %v3045 = vadd.f32 %v2903, 1.0
        %v3046 = vadd.f32 %v2905, 1.0
        %v3047 = vadd.f32 %v2907, 1.0
        %v3048 = vadd.f32 %v2909, 1.0
        %v3049 = vadd.f32 %v2911, 1.0
        %v3050 = vadd.f32 %v2913, 1.0
        %v3051 = vadd.f32 %v2915, 1.0
        %v3052 = vadd.f32 %v2917, 1.0
        %v3053 = vadd.f32 %v2919, 1.0
        %v3054 = vadd.f32 %v2921, 1.0
        %v3055 = vadd.f32 %v2923, 1.0
        %v3056 = vadd.f32 %v2925, 1.0
        %v3057 = vadd.f32 %v2927, 1.0
        %v3058 = vadd.f32 %v2929, 1.0
        %v3059 = vadd.f32 %v2931, 1.0
        %v3060 = vrcp.pop %v2932
        %v3061 = vmul.f32 1.0, %v3060
        %v3062 = vrcp.pop %v2933
        %v3063 = vmul.f32 1.0, %v3062
        %v3064 = vrcp.pop %v2934
        %v3065 = vmul.f32 1.0, %v3064
        %v3066 = vrcp.pop %v2935
        %v3067 = vmul.f32 1.0, %v3066
        %v3068 = vrcp.pop %v2936
        %v3069 = vmul.f32 1.0, %v3068
        %v3070 = vrcp.pop %v2937
        %v3071 = vmul.f32 1.0, %v3070
        %v3072 = vrcp.pop %v2938
        %v3073 = vmul.f32 1.0, %v3072
        %v3074 = vrcp.pop %v2939
        %v3075 = vmul.f32 1.0, %v3074
        %v3076 = vrcp.pop %v2940
        %v3077 = vmul.f32 1.0, %v3076
        %v3078 = vrcp.pop %v2941
        %v3079 = vmul.f32 1.0, %v3078
        %v3080 = vrcp.pop %v2942
        %v3081 = vmul.f32 1.0, %v3080
        %v3082 = vrcp.pop %v2943
        %v3083 = vmul.f32 1.0, %v3082
        %v3084 = vrcp.pop %v2944
        %v3085 = vmul.f32 1.0, %v3084
        %v3086 = vrcp.pop %v2945
        %v3087 = vmul.f32 1.0, %v3086
        %v3088 = vrcp.pop %v2946
        %v3089 = vmul.f32 1.0, %v3088
        %v3090 = vrcp.pop %v2947
        %v3091 = vmul.f32 1.0, %v3090
        %v3092 = vrcp.pop %v2948
        %v3093 = vmul.f32 1.0, %v3092
        %v3094 = vrcp.pop %v2949
        %v3095 = vmul.f32 1.0, %v3094
        %v3096 = vrcp.pop %v2950
        %v3097 = vmul.f32 1.0, %v3096
        %v3098 = vrcp.pop %v2951
        %v3099 = vmul.f32 1.0, %v3098
        %v3100 = vrcp.pop %v2952
        %v3101 = vmul.f32 1.0, %v3100
        %v3102 = vrcp.pop %v2953
        %v3103 = vmul.f32 1.0, %v3102
        %v3104 = vrcp.pop %v2954
        %v3105 = vmul.f32 1.0, %v3104
        %v3106 = vrcp.pop %v2955
        %v3107 = vmul.f32 1.0, %v3106
        %v3108 = vrcp.pop %v2956
        %v3109 = vmul.f32 1.0, %v3108
        %v3110 = vrcp.pop %v2957
        %v3111 = vmul.f32 1.0, %v3110
        %v3112 = vrcp.pop %v2958
        %v3113 = vmul.f32 1.0, %v3112
        %v3114 = vrcp.pop %v2959
        %v3115 = vmul.f32 1.0, %v3114
        %v3116 = vrcp.pop %v2960
        %v3117 = vmul.f32 1.0, %v3116
        %v3118 = vrcp.pop %v2961
        %v3119 = vmul.f32 1.0, %v3118
        %v3120 = vrcp.pop %v2962
        %v3121 = vmul.f32 1.0, %v3120
        %v3122 = vrcp.pop %v2963
        %v3123 = vmul.f32 1.0, %v3122
        %v3124 = vrcp.pop %v2964
        %v3125 = vmul.f32 1.0, %v3124
        %v3126 = vrcp.pop %v2965
        %v3127 = vmul.f32 1.0, %v3126
        %v3128 = vrcp.pop %v2966
        %v3129 = vmul.f32 1.0, %v3128
        %v3130 = vrcp.pop %v2967
        %v3131 = vmul.f32 1.0, %v3130
        %v3132 = vrcp.pop %v2968
        %v3133 = vmul.f32 1.0, %v3132
        %v3134 = vrcp.pop %v2969
        %v3135 = vmul.f32 1.0, %v3134
        %v3136 = vrcp.pop %v2970
        %v3137 = vmul.f32 1.0, %v3136
        %v3138 = vrcp.pop %v2971
        %v3139 = vmul.f32 1.0, %v3138
        %v3140 = vrcp.pop %v2972
        %v3141 = vmul.f32 1.0, %v3140
        %v3142 = vrcp.pop %v2973
        %v3143 = vmul.f32 1.0, %v3142
        %v3144 = vrcp.pop %v2974
        %v3145 = vmul.f32 1.0, %v3144
        %v3146 = vrcp.pop %v2975
        %v3147 = vmul.f32 1.0, %v3146
        %v3148 = vrcp.pop %v2976
        %v3149 = vmul.f32 1.0, %v3148
        %v3150 = vrcp.pop %v2977
        %v3151 = vmul.f32 1.0, %v3150
        %v3152 = vrcp.pop %v2978
        %v3153 = vmul.f32 1.0, %v3152
        %v3154 = vrcp.pop %v2979
        %v3155 = vmul.f32 1.0, %v3154
        %v3156 = vrcp.pop %v2980
        %v3157 = vmul.f32 1.0, %v3156
        %v3158 = vrcp.pop %v2981
        %v3159 = vmul.f32 1.0, %v3158
        %v3160 = vrcp.pop %v2982
        %v3161 = vmul.f32 1.0, %v3160
        %v3162 = vrcp.pop %v2983
        %v3163 = vmul.f32 1.0, %v3162
        %v3164 = vrcp.pop %v2984
        %v3165 = vmul.f32 1.0, %v3164
        %v3166 = vrcp.pop %v2985
        %v3167 = vmul.f32 1.0, %v3166
        %v3168 = vrcp.pop %v2986
        %v3169 = vmul.f32 1.0, %v3168
        %v3170 = vrcp.pop %v2987
        %v3171 = vmul.f32 1.0, %v3170
        %v3172 = vrcp.pop %v2988
        %v3173 = vmul.f32 1.0, %v3172
        %v3174 = vrcp.pop %v2989
        %v3175 = vmul.f32 1.0, %v3174
        %v3176 = vrcp.pop %v2990
        %v3177 = vmul.f32 1.0, %v3176
        %v3178 = vrcp.pop %v2991
        %v3179 = vmul.f32 1.0, %v3178
        %v3180 = vrcp.pop %v2992
        %v3181 = vmul.f32 1.0, %v3180
        %v3182 = vrcp.pop %v2993
        %v3183 = vmul.f32 1.0, %v3182
        %v3184 = vrcp.pop %v2994
        %v3185 = vmul.f32 1.0, %v3184
        %v3186 = vrcp.pop %v2995
        %v3187 = vmul.f32 1.0, %v3186
        %v3188 = vrcp.pop %v2996
        %v3189 = vmul.f32 1.0, %v3188
        %v3190 = vrcp.pop %v2997
        %v3191 = vmul.f32 1.0, %v3190
        %v3192 = vrcp.pop %v2998
        %v3193 = vmul.f32 1.0, %v3192
        %v3194 = vrcp.pop %v2999
        %v3195 = vmul.f32 1.0, %v3194
        %v3196 = vrcp.pop %v3000
        %v3197 = vmul.f32 1.0, %v3196
        %v3198 = vrcp.pop %v3001
        %v3199 = vmul.f32 1.0, %v3198
        %v3200 = vrcp.pop %v3002
        %v3201 = vmul.f32 1.0, %v3200
        %v3202 = vrcp.pop %v3003
        %v3203 = vmul.f32 1.0, %v3202
        %v3204 = vrcp.pop %v3004
        %v3205 = vmul.f32 1.0, %v3204
        %v3206 = vrcp.pop %v3005
        %v3207 = vmul.f32 1.0, %v3206
        %v3208 = vrcp.pop %v3006
        %v3209 = vmul.f32 1.0, %v3208
        %v3210 = vrcp.pop %v3007
        %v3211 = vmul.f32 1.0, %v3210
        %v3212 = vrcp.pop %v3008
        %v3213 = vmul.f32 1.0, %v3212
        %v3214 = vrcp.pop %v3009
        %v3215 = vmul.f32 1.0, %v3214
        %v3216 = vrcp.pop %v3010
        %v3217 = vmul.f32 1.0, %v3216
        %v3218 = vrcp.pop %v3011
        %v3219 = vmul.f32 1.0, %v3218
        %v3220 = vrcp.pop %v3012
        %v3221 = vmul.f32 1.0, %v3220
        %v3222 = vrcp.pop %v3013
        %v3223 = vmul.f32 1.0, %v3222
        %v3224 = vrcp.pop %v3014
        %v3225 = vmul.f32 1.0, %v3224
        %v3226 = vrcp.pop %v3015
        %v3227 = vmul.f32 1.0, %v3226
        %v3228 = vrcp.pop %v3016
        %v3229 = vmul.f32 1.0, %v3228
        %v3230 = vrcp.pop %v3017
        %v3231 = vmul.f32 1.0, %v3230
        %v3232 = vrcp.pop %v3018
        %v3233 = vmul.f32 1.0, %v3232
        %v3234 = vrcp.pop %v3019
        %v3235 = vmul.f32 1.0, %v3234
        %v3236 = vrcp.pop %v3020
        %v3237 = vmul.f32 1.0, %v3236
        %v3238 = vrcp.pop %v3021
        %v3239 = vmul.f32 1.0, %v3238
        %v3240 = vrcp.pop %v3022
        %v3241 = vmul.f32 1.0, %v3240
        %v3242 = vrcp.pop %v3023
        %v3243 = vmul.f32 1.0, %v3242
        %v3244 = vrcp.pop %v3024
        %v3245 = vmul.f32 1.0, %v3244
        %v3246 = vrcp.pop %v3025
        %v3247 = vmul.f32 1.0, %v3246
        %v3248 = vrcp.pop %v3026
        %v3249 = vmul.f32 1.0, %v3248
        %v3250 = vrcp.pop %v3027
        %v3251 = vmul.f32 1.0, %v3250
        %v3252 = vrcp.pop %v3028
        %v3253 = vmul.f32 1.0, %v3252
        %v3254 = vrcp.pop %v3029
        %v3255 = vmul.f32 1.0, %v3254
        %v3256 = vrcp.pop %v3030
        %v3257 = vmul.f32 1.0, %v3256
        %v3258 = vrcp.pop %v3031
        %v3259 = vmul.f32 1.0, %v3258
        %v3260 = vrcp.pop %v3032
        %v3261 = vmul.f32 1.0, %v3260
        %v3262 = vrcp.pop %v3033
        %v3263 = vmul.f32 1.0, %v3262
        %v3264 = vrcp.pop %v3034
        %v3265 = vmul.f32 1.0, %v3264
        %v3266 = vrcp.pop %v3035
        %v3267 = vmul.f32 1.0, %v3266
        %v3268 = vrcp.pop %v3036
        %v3269 = vmul.f32 1.0, %v3268
        %v3270 = vrcp.pop %v3037
        %v3271 = vmul.f32 1.0, %v3270
        %v3272 = vrcp.pop %v3038
        %v3273 = vmul.f32 1.0, %v3272
        %v3274 = vrcp.pop %v3039
        %v3275 = vmul.f32 1.0, %v3274
        %v3276 = vrcp.pop %v3040
        %v3277 = vmul.f32 1.0, %v3276
        %v3278 = vrcp.pop %v3041
        %v3279 = vmul.f32 1.0, %v3278
        %v3280 = vrcp.pop %v3042
        %v3281 = vmul.f32 1.0, %v3280
        %v3282 = vrcp.pop %v3043
        %v3283 = vmul.f32 1.0, %v3282
        %v3284 = vrcp.pop %v3044
        %v3285 = vmul.f32 1.0, %v3284
        %v3286 = vrcp.pop %v3045
        %v3287 = vmul.f32 1.0, %v3286
        %v3288 = vrcp.pop %v3046
        %v3289 = vmul.f32 1.0, %v3288
        %v3290 = vrcp.pop %v3047
        %v3291 = vmul.f32 1.0, %v3290
        %v3292 = vrcp.pop %v3048
        %v3293 = vmul.f32 1.0, %v3292
        %v3294 = vrcp.pop %v3049
        %v3295 = vmul.f32 1.0, %v3294
        %v3296 = vrcp.pop %v3050
        %v3297 = vmul.f32 1.0, %v3296
        %v3298 = vrcp.pop %v3051
        %v3299 = vmul.f32 1.0, %v3298
        %v3300 = vrcp.pop %v3052
        %v3301 = vmul.f32 1.0, %v3300
        %v3302 = vrcp.pop %v3053
        %v3303 = vmul.f32 1.0, %v3302
        %v3304 = vrcp.pop %v3054
        %v3305 = vmul.f32 1.0, %v3304
        %v3306 = vrcp.pop %v3055
        %v3307 = vmul.f32 1.0, %v3306
        %v3308 = vrcp.pop %v3056
        %v3309 = vmul.f32 1.0, %v3308
        %v3310 = vrcp.pop %v3057
        %v3311 = vmul.f32 1.0, %v3310
        %v3312 = vrcp.pop %v3058
        %v3313 = vmul.f32 1.0, %v3312
        %v3314 = vrcp.pop %v3059
        %v3315 = vmul.f32 1.0, %v3314
        %v3316 = vld [vmem:[%s7] sm:$0x1]
        %v3318 = vlaneseq
        %v3319 = vshrl.u32 %v3318, 7
        %v3320 = vsub.s32 0, %v3319
        %v3321 = vrot.slane %v3316, %v3320
        %v3323 = vmul.f32 %v3061, %v3321
        %v3324 = vmul.f32 %v3063, %v3321
        %v3325 = vmul.f32 %v3065, %v3321
        %v3326 = vmul.f32 %v3067, %v3321
        %v3327 = vmul.f32 %v3069, %v3321
        %v3328 = vmul.f32 %v3071, %v3321
        %v3329 = vmul.f32 %v3073, %v3321
        %v3330 = vmul.f32 %v3075, %v3321
        %v3331 = vmul.f32 %v3077, %v3321
        %v3332 = vmul.f32 %v3079, %v3321
        %v3333 = vmul.f32 %v3081, %v3321
        %v3334 = vmul.f32 %v3083, %v3321
        %v3335 = vmul.f32 %v3085, %v3321
        %v3336 = vmul.f32 %v3087, %v3321
        %v3337 = vmul.f32 %v3089, %v3321
        %v3338 = vmul.f32 %v3091, %v3321
        %v3339 = vmul.f32 %v3093, %v3321
        %v3340 = vmul.f32 %v3095, %v3321
        %v3341 = vmul.f32 %v3097, %v3321
        %v3342 = vmul.f32 %v3099, %v3321
        %v3343 = vmul.f32 %v3101, %v3321
        %v3344 = vmul.f32 %v3103, %v3321
        %v3345 = vmul.f32 %v3105, %v3321
        %v3346 = vmul.f32 %v3107, %v3321
        %v3347 = vmul.f32 %v3109, %v3321
        %v3348 = vmul.f32 %v3111, %v3321
        %v3349 = vmul.f32 %v3113, %v3321
        %v3350 = vmul.f32 %v3115, %v3321
        %v3351 = vmul.f32 %v3117, %v3321
        %v3352 = vmul.f32 %v3119, %v3321
        %v3353 = vmul.f32 %v3121, %v3321
        %v3354 = vmul.f32 %v3123, %v3321
        %v3355 = vmul.f32 %v3125, %v3321
        %v3356 = vmul.f32 %v3127, %v3321
        %v3357 = vmul.f32 %v3129, %v3321
        %v3358 = vmul.f32 %v3131, %v3321
        %v3359 = vmul.f32 %v3133, %v3321
        %v3360 = vmul.f32 %v3135, %v3321
        %v3361 = vmul.f32 %v3137, %v3321
        %v3362 = vmul.f32 %v3139, %v3321
        %v3363 = vmul.f32 %v3141, %v3321
        %v3364 = vmul.f32 %v3143, %v3321
        %v3365 = vmul.f32 %v3145, %v3321
        %v3366 = vmul.f32 %v3147, %v3321
        %v3367 = vmul.f32 %v3149, %v3321
        %v3368 = vmul.f32 %v3151, %v3321
        %v3369 = vmul.f32 %v3153, %v3321
        %v3370 = vmul.f32 %v3155, %v3321
        %v3371 = vmul.f32 %v3157, %v3321
        %v3372 = vmul.f32 %v3159, %v3321
        %v3373 = vmul.f32 %v3161, %v3321
        %v3374 = vmul.f32 %v3163, %v3321
        %v3375 = vmul.f32 %v3165, %v3321
        %v3376 = vmul.f32 %v3167, %v3321
        %v3377 = vmul.f32 %v3169, %v3321
        %v3378 = vmul.f32 %v3171, %v3321
        %v3379 = vmul.f32 %v3173, %v3321
        %v3380 = vmul.f32 %v3175, %v3321
        %v3381 = vmul.f32 %v3177, %v3321
        %v3382 = vmul.f32 %v3179, %v3321
        %v3383 = vmul.f32 %v3181, %v3321
        %v3384 = vmul.f32 %v3183, %v3321
        %v3385 = vmul.f32 %v3185, %v3321
        %v3386 = vmul.f32 %v3187, %v3321
        %v3387 = vmul.f32 %v3189, %v3321
        %v3388 = vmul.f32 %v3191, %v3321
        %v3389 = vmul.f32 %v3193, %v3321
        %v3390 = vmul.f32 %v3195, %v3321
        %v3391 = vmul.f32 %v3197, %v3321
        %v3392 = vmul.f32 %v3199, %v3321
        %v3393 = vmul.f32 %v3201, %v3321
        %v3394 = vmul.f32 %v3203, %v3321
        %v3395 = vmul.f32 %v3205, %v3321
        %v3396 = vmul.f32 %v3207, %v3321
        %v3397 = vmul.f32 %v3209, %v3321
        %v3398 = vmul.f32 %v3211, %v3321
        %v3399 = vmul.f32 %v3213, %v3321
        %v3400 = vmul.f32 %v3215, %v3321
        %v3401 = vmul.f32 %v3217, %v3321
        %v3402 = vmul.f32 %v3219, %v3321
        %v3403 = vmul.f32 %v3221, %v3321
        %v3404 = vmul.f32 %v3223, %v3321
        %v3405 = vmul.f32 %v3225, %v3321
        %v3406 = vmul.f32 %v3227, %v3321
        %v3407 = vmul.f32 %v3229, %v3321
        %v3408 = vmul.f32 %v3231, %v3321
        %v3409 = vmul.f32 %v3233, %v3321
        %v3410 = vmul.f32 %v3235, %v3321
        %v3411 = vmul.f32 %v3237, %v3321
        %v3412 = vmul.f32 %v3239, %v3321
        %v3413 = vmul.f32 %v3241, %v3321
        %v3414 = vmul.f32 %v3243, %v3321
        %v3415 = vmul.f32 %v3245, %v3321
        %v3416 = vmul.f32 %v3247, %v3321
        %v3417 = vmul.f32 %v3249, %v3321
        %v3418 = vmul.f32 %v3251, %v3321
        %v3419 = vmul.f32 %v3253, %v3321
        %v3420 = vmul.f32 %v3255, %v3321
        %v3421 = vmul.f32 %v3257, %v3321
        %v3422 = vmul.f32 %v3259, %v3321
        %v3423 = vmul.f32 %v3261, %v3321
        %v3424 = vmul.f32 %v3263, %v3321
        %v3425 = vmul.f32 %v3265, %v3321
        %v3426 = vmul.f32 %v3267, %v3321
        %v3427 = vmul.f32 %v3269, %v3321
        %v3428 = vmul.f32 %v3271, %v3321
        %v3429 = vmul.f32 %v3273, %v3321
        %v3430 = vmul.f32 %v3275, %v3321
        %v3431 = vmul.f32 %v3277, %v3321
        %v3432 = vmul.f32 %v3279, %v3321
        %v3433 = vmul.f32 %v3281, %v3321
        %v3434 = vmul.f32 %v3283, %v3321
        %v3435 = vmul.f32 %v3285, %v3321
        %v3436 = vmul.f32 %v3287, %v3321
        %v3437 = vmul.f32 %v3289, %v3321
        %v3438 = vmul.f32 %v3291, %v3321
        %v3439 = vmul.f32 %v3293, %v3321
        %v3440 = vmul.f32 %v3295, %v3321
        %v3441 = vmul.f32 %v3297, %v3321
        %v3442 = vmul.f32 %v3299, %v3321
        %v3443 = vmul.f32 %v3301, %v3321
        %v3444 = vmul.f32 %v3303, %v3321
        %v3445 = vmul.f32 %v3305, %v3321
        %v3446 = vmul.f32 %v3307, %v3321
        %v3447 = vmul.f32 %v3309, %v3321
        %v3448 = vmul.f32 %v3311, %v3321
        %v3449 = vmul.f32 %v3313, %v3321
        %v3450 = vmul.f32 %v3315, %v3321
        %vm3451 = vcmask 326656
        %v3452 = vsel %vm3451, %v3323, 0.0
        %3453 = vadd.xlane.f32.xlu0 %v3452
        %v3454 = vpop.xlane.xlu0 %3453
        %v3455 = vsel %vm3451, %v3324, 0.0
        %3456 = vadd.xlane.f32.xlu0 %v3455
        %v3457 = vpop.xlane.xlu0 %3456
        %v3458 = vsel %vm3451, %v3325, 0.0
        %3459 = vadd.xlane.f32.xlu0 %v3458
        %v3460 = vpop.xlane.xlu0 %3459
        %v3461 = vsel %vm3451, %v3326, 0.0
        %3462 = vadd.xlane.f32.xlu0 %v3461
        %v3463 = vpop.xlane.xlu0 %3462
        %v3464 = vsel %vm3451, %v3327, 0.0
        %3465 = vadd.xlane.f32.xlu0 %v3464
        %v3466 = vpop.xlane.xlu0 %3465
        %v3467 = vsel %vm3451, %v3328, 0.0
        %3468 = vadd.xlane.f32.xlu0 %v3467
        %v3469 = vpop.xlane.xlu0 %3468
        %v3470 = vsel %vm3451, %v3329, 0.0
        %3471 = vadd.xlane.f32.xlu0 %v3470
        %v3472 = vpop.xlane.xlu0 %3471
        %v3473 = vsel %vm3451, %v3330, 0.0
        %3474 = vadd.xlane.f32.xlu0 %v3473
        %v3475 = vpop.xlane.xlu0 %3474
        %v3476 = vsel %vm3451, %v3331, 0.0
        %3477 = vadd.xlane.f32.xlu0 %v3476
        %v3478 = vpop.xlane.xlu0 %3477
        %v3479 = vsel %vm3451, %v3332, 0.0
        %3480 = vadd.xlane.f32.xlu0 %v3479
        %v3481 = vpop.xlane.xlu0 %3480
        %v3482 = vsel %vm3451, %v3333, 0.0
        %3483 = vadd.xlane.f32.xlu0 %v3482
        %v3484 = vpop.xlane.xlu0 %3483
        %v3485 = vsel %vm3451, %v3334, 0.0
        %3486 = vadd.xlane.f32.xlu0 %v3485
        %v3487 = vpop.xlane.xlu0 %3486
        %v3488 = vsel %vm3451, %v3335, 0.0
        %3489 = vadd.xlane.f32.xlu0 %v3488
        %v3490 = vpop.xlane.xlu0 %3489
        %v3491 = vsel %vm3451, %v3336, 0.0
        %3492 = vadd.xlane.f32.xlu0 %v3491
        %v3493 = vpop.xlane.xlu0 %3492
        %v3494 = vsel %vm3451, %v3337, 0.0
        %3495 = vadd.xlane.f32.xlu0 %v3494
        %v3496 = vpop.xlane.xlu0 %3495
        %v3497 = vsel %vm3451, %v3338, 0.0
        %3498 = vadd.xlane.f32.xlu0 %v3497
        %v3499 = vpop.xlane.xlu0 %3498
        %v3500 = vsel %vm3451, %v3339, 0.0
        %3501 = vadd.xlane.f32.xlu0 %v3500
        %v3502 = vpop.xlane.xlu0 %3501
        %v3503 = vsel %vm3451, %v3340, 0.0
        %3504 = vadd.xlane.f32.xlu0 %v3503
        %v3505 = vpop.xlane.xlu0 %3504
        %v3506 = vsel %vm3451, %v3341, 0.0
        %3507 = vadd.xlane.f32.xlu0 %v3506
        %v3508 = vpop.xlane.xlu0 %3507
        %v3509 = vsel %vm3451, %v3342, 0.0
        %3510 = vadd.xlane.f32.xlu0 %v3509
        %v3511 = vpop.xlane.xlu0 %3510
        %v3512 = vsel %vm3451, %v3343, 0.0
        %3513 = vadd.xlane.f32.xlu0 %v3512
        %v3514 = vpop.xlane.xlu0 %3513
        %v3515 = vsel %vm3451, %v3344, 0.0
        %3516 = vadd.xlane.f32.xlu0 %v3515
        %v3517 = vpop.xlane.xlu0 %3516
        %v3518 = vsel %vm3451, %v3345, 0.0
        %3519 = vadd.xlane.f32.xlu0 %v3518
        %v3520 = vpop.xlane.xlu0 %3519
        %v3521 = vsel %vm3451, %v3346, 0.0
        %3522 = vadd.xlane.f32.xlu0 %v3521
        %v3523 = vpop.xlane.xlu0 %3522
        %v3524 = vsel %vm3451, %v3347, 0.0
        %3525 = vadd.xlane.f32.xlu0 %v3524
        %v3526 = vpop.xlane.xlu0 %3525
        %v3527 = vsel %vm3451, %v3348, 0.0
        %3528 = vadd.xlane.f32.xlu0 %v3527
        %v3529 = vpop.xlane.xlu0 %3528
        %v3530 = vsel %vm3451, %v3349, 0.0
        %3531 = vadd.xlane.f32.xlu0 %v3530
        %v3532 = vpop.xlane.xlu0 %3531
        %v3533 = vsel %vm3451, %v3350, 0.0
        %3534 = vadd.xlane.f32.xlu0 %v3533
        %v3535 = vpop.xlane.xlu0 %3534
        %v3536 = vsel %vm3451, %v3351, 0.0
        %3537 = vadd.xlane.f32.xlu0 %v3536
        %v3538 = vpop.xlane.xlu0 %3537
        %v3539 = vsel %vm3451, %v3352, 0.0
        %3540 = vadd.xlane.f32.xlu0 %v3539
        %v3541 = vpop.xlane.xlu0 %3540
        %v3542 = vsel %vm3451, %v3353, 0.0
        %3543 = vadd.xlane.f32.xlu0 %v3542
        %v3544 = vpop.xlane.xlu0 %3543
        %v3545 = vsel %vm3451, %v3354, 0.0
        %3546 = vadd.xlane.f32.xlu0 %v3545
        %v3547 = vpop.xlane.xlu0 %3546
        %v3548 = vsel %vm3451, %v3355, 0.0
        %3549 = vadd.xlane.f32.xlu0 %v3548
        %v3550 = vpop.xlane.xlu0 %3549
        %v3551 = vsel %vm3451, %v3356, 0.0
        %3552 = vadd.xlane.f32.xlu0 %v3551
        %v3553 = vpop.xlane.xlu0 %3552
        %v3554 = vsel %vm3451, %v3357, 0.0
        %3555 = vadd.xlane.f32.xlu0 %v3554
        %v3556 = vpop.xlane.xlu0 %3555
        %v3557 = vsel %vm3451, %v3358, 0.0
        %3558 = vadd.xlane.f32.xlu0 %v3557
        %v3559 = vpop.xlane.xlu0 %3558
        %v3560 = vsel %vm3451, %v3359, 0.0
        %3561 = vadd.xlane.f32.xlu0 %v3560
        %v3562 = vpop.xlane.xlu0 %3561
        %v3563 = vsel %vm3451, %v3360, 0.0
        %3564 = vadd.xlane.f32.xlu0 %v3563
        %v3565 = vpop.xlane.xlu0 %3564
        %v3566 = vsel %vm3451, %v3361, 0.0
        %3567 = vadd.xlane.f32.xlu0 %v3566
        %v3568 = vpop.xlane.xlu0 %3567
        %v3569 = vsel %vm3451, %v3362, 0.0
        %3570 = vadd.xlane.f32.xlu0 %v3569
        %v3571 = vpop.xlane.xlu0 %3570
        %v3572 = vsel %vm3451, %v3363, 0.0
        %3573 = vadd.xlane.f32.xlu0 %v3572
        %v3574 = vpop.xlane.xlu0 %3573
        %v3575 = vsel %vm3451, %v3364, 0.0
        %3576 = vadd.xlane.f32.xlu0 %v3575
        %v3577 = vpop.xlane.xlu0 %3576
        %v3578 = vsel %vm3451, %v3365, 0.0
        %3579 = vadd.xlane.f32.xlu0 %v3578
        %v3580 = vpop.xlane.xlu0 %3579
        %v3581 = vsel %vm3451, %v3366, 0.0
        %3582 = vadd.xlane.f32.xlu0 %v3581
        %v3583 = vpop.xlane.xlu0 %3582
        %v3584 = vsel %vm3451, %v3367, 0.0
        %3585 = vadd.xlane.f32.xlu0 %v3584
        %v3586 = vpop.xlane.xlu0 %3585
        %v3587 = vsel %vm3451, %v3368, 0.0
        %3588 = vadd.xlane.f32.xlu0 %v3587
        %v3589 = vpop.xlane.xlu0 %3588
        %v3590 = vsel %vm3451, %v3369, 0.0
        %3591 = vadd.xlane.f32.xlu0 %v3590
        %v3592 = vpop.xlane.xlu0 %3591
        %v3593 = vsel %vm3451, %v3370, 0.0
        %3594 = vadd.xlane.f32.xlu0 %v3593
        %v3595 = vpop.xlane.xlu0 %3594
        %v3596 = vsel %vm3451, %v3371, 0.0
        %3597 = vadd.xlane.f32.xlu0 %v3596
        %v3598 = vpop.xlane.xlu0 %3597
        %v3599 = vsel %vm3451, %v3372, 0.0
        %3600 = vadd.xlane.f32.xlu0 %v3599
        %v3601 = vpop.xlane.xlu0 %3600
        %v3602 = vsel %vm3451, %v3373, 0.0
        %3603 = vadd.xlane.f32.xlu0 %v3602
        %v3604 = vpop.xlane.xlu0 %3603
        %v3605 = vsel %vm3451, %v3374, 0.0
        %3606 = vadd.xlane.f32.xlu0 %v3605
        %v3607 = vpop.xlane.xlu0 %3606
        %v3608 = vsel %vm3451, %v3375, 0.0
        %3609 = vadd.xlane.f32.xlu0 %v3608
        %v3610 = vpop.xlane.xlu0 %3609
        %v3611 = vsel %vm3451, %v3376, 0.0
        %3612 = vadd.xlane.f32.xlu0 %v3611
        %v3613 = vpop.xlane.xlu0 %3612
        %v3614 = vsel %vm3451, %v3377, 0.0
        %3615 = vadd.xlane.f32.xlu0 %v3614
        %v3616 = vpop.xlane.xlu0 %3615
        %v3617 = vsel %vm3451, %v3378, 0.0
        %3618 = vadd.xlane.f32.xlu0 %v3617
        %v3619 = vpop.xlane.xlu0 %3618
        %v3620 = vsel %vm3451, %v3379, 0.0
        %3621 = vadd.xlane.f32.xlu0 %v3620
        %v3622 = vpop.xlane.xlu0 %3621
        %v3623 = vsel %vm3451, %v3380, 0.0
        %3624 = vadd.xlane.f32.xlu0 %v3623
        %v3625 = vpop.xlane.xlu0 %3624
        %v3626 = vsel %vm3451, %v3381, 0.0
        %3627 = vadd.xlane.f32.xlu0 %v3626
        %v3628 = vpop.xlane.xlu0 %3627
        %v3629 = vsel %vm3451, %v3382, 0.0
        %3630 = vadd.xlane.f32.xlu0 %v3629
        %v3631 = vpop.xlane.xlu0 %3630
        %v3632 = vsel %vm3451, %v3383, 0.0
        %3633 = vadd.xlane.f32.xlu0 %v3632
        %v3634 = vpop.xlane.xlu0 %3633
        %v3635 = vsel %vm3451, %v3384, 0.0
        %3636 = vadd.xlane.f32.xlu0 %v3635
        %v3637 = vpop.xlane.xlu0 %3636
        %v3638 = vsel %vm3451, %v3385, 0.0
        %3639 = vadd.xlane.f32.xlu0 %v3638
        %v3640 = vpop.xlane.xlu0 %3639
        %v3641 = vsel %vm3451, %v3386, 0.0
        %3642 = vadd.xlane.f32.xlu0 %v3641
        %v3643 = vpop.xlane.xlu0 %3642
        %v3644 = vsel %vm3451, %v3387, 0.0
        %3645 = vadd.xlane.f32.xlu0 %v3644
        %v3646 = vpop.xlane.xlu0 %3645
        %v3647 = vsel %vm3451, %v3388, 0.0
        %3648 = vadd.xlane.f32.xlu0 %v3647
        %v3649 = vpop.xlane.xlu0 %3648
        %v3650 = vsel %vm3451, %v3389, 0.0
        %3651 = vadd.xlane.f32.xlu0 %v3650
        %v3652 = vpop.xlane.xlu0 %3651
        %v3653 = vsel %vm3451, %v3390, 0.0
        %3654 = vadd.xlane.f32.xlu0 %v3653
        %v3655 = vpop.xlane.xlu0 %3654
        %v3656 = vsel %vm3451, %v3391, 0.0
        %3657 = vadd.xlane.f32.xlu0 %v3656
        %v3658 = vpop.xlane.xlu0 %3657
        %v3659 = vsel %vm3451, %v3392, 0.0
        %3660 = vadd.xlane.f32.xlu0 %v3659
        %v3661 = vpop.xlane.xlu0 %3660
        %v3662 = vsel %vm3451, %v3393, 0.0
        %3663 = vadd.xlane.f32.xlu0 %v3662
        %v3664 = vpop.xlane.xlu0 %3663
        %v3665 = vsel %vm3451, %v3394, 0.0
        %3666 = vadd.xlane.f32.xlu0 %v3665
        %v3667 = vpop.xlane.xlu0 %3666
        %v3668 = vsel %vm3451, %v3395, 0.0
        %3669 = vadd.xlane.f32.xlu0 %v3668
        %v3670 = vpop.xlane.xlu0 %3669
        %v3671 = vsel %vm3451, %v3396, 0.0
        %3672 = vadd.xlane.f32.xlu0 %v3671
        %v3673 = vpop.xlane.xlu0 %3672
        %v3674 = vsel %vm3451, %v3397, 0.0
        %3675 = vadd.xlane.f32.xlu0 %v3674
        %v3676 = vpop.xlane.xlu0 %3675
        %v3677 = vsel %vm3451, %v3398, 0.0
        %3678 = vadd.xlane.f32.xlu0 %v3677
        %v3679 = vpop.xlane.xlu0 %3678
        %v3680 = vsel %vm3451, %v3399, 0.0
        %3681 = vadd.xlane.f32.xlu0 %v3680
        %v3682 = vpop.xlane.xlu0 %3681
        %v3683 = vsel %vm3451, %v3400, 0.0
        %3684 = vadd.xlane.f32.xlu0 %v3683
        %v3685 = vpop.xlane.xlu0 %3684
        %v3686 = vsel %vm3451, %v3401, 0.0
        %3687 = vadd.xlane.f32.xlu0 %v3686
        %v3688 = vpop.xlane.xlu0 %3687
        %v3689 = vsel %vm3451, %v3402, 0.0
        %3690 = vadd.xlane.f32.xlu0 %v3689
        %v3691 = vpop.xlane.xlu0 %3690
        %v3692 = vsel %vm3451, %v3403, 0.0
        %3693 = vadd.xlane.f32.xlu0 %v3692
        %v3694 = vpop.xlane.xlu0 %3693
        %v3695 = vsel %vm3451, %v3404, 0.0
        %3696 = vadd.xlane.f32.xlu0 %v3695
        %v3697 = vpop.xlane.xlu0 %3696
        %v3698 = vsel %vm3451, %v3405, 0.0
        %3699 = vadd.xlane.f32.xlu0 %v3698
        %v3700 = vpop.xlane.xlu0 %3699
        %v3701 = vsel %vm3451, %v3406, 0.0
        %3702 = vadd.xlane.f32.xlu0 %v3701
        %v3703 = vpop.xlane.xlu0 %3702
        %v3704 = vsel %vm3451, %v3407, 0.0
        %3705 = vadd.xlane.f32.xlu0 %v3704
        %v3706 = vpop.xlane.xlu0 %3705
        %v3707 = vsel %vm3451, %v3408, 0.0
        %3708 = vadd.xlane.f32.xlu0 %v3707
        %v3709 = vpop.xlane.xlu0 %3708
        %v3710 = vsel %vm3451, %v3409, 0.0
        %3711 = vadd.xlane.f32.xlu0 %v3710
        %v3712 = vpop.xlane.xlu0 %3711
        %v3713 = vsel %vm3451, %v3410, 0.0
        %3714 = vadd.xlane.f32.xlu0 %v3713
        %v3715 = vpop.xlane.xlu0 %3714
        %v3716 = vsel %vm3451, %v3411, 0.0
        %3717 = vadd.xlane.f32.xlu0 %v3716
        %v3718 = vpop.xlane.xlu0 %3717
        %v3719 = vsel %vm3451, %v3412, 0.0
        %3720 = vadd.xlane.f32.xlu0 %v3719
        %v3721 = vpop.xlane.xlu0 %3720
        %v3722 = vsel %vm3451, %v3413, 0.0
        %3723 = vadd.xlane.f32.xlu0 %v3722
        %v3724 = vpop.xlane.xlu0 %3723
        %v3725 = vsel %vm3451, %v3414, 0.0
        %3726 = vadd.xlane.f32.xlu0 %v3725
        %v3727 = vpop.xlane.xlu0 %3726
        %v3728 = vsel %vm3451, %v3415, 0.0
        %3729 = vadd.xlane.f32.xlu0 %v3728
        %v3730 = vpop.xlane.xlu0 %3729
        %v3731 = vsel %vm3451, %v3416, 0.0
        %3732 = vadd.xlane.f32.xlu0 %v3731
        %v3733 = vpop.xlane.xlu0 %3732
        %v3734 = vsel %vm3451, %v3417, 0.0
        %3735 = vadd.xlane.f32.xlu0 %v3734
        %v3736 = vpop.xlane.xlu0 %3735
        %v3737 = vsel %vm3451, %v3418, 0.0
        %3738 = vadd.xlane.f32.xlu0 %v3737
        %v3739 = vpop.xlane.xlu0 %3738
        %v3740 = vsel %vm3451, %v3419, 0.0
        %3741 = vadd.xlane.f32.xlu0 %v3740
        %v3742 = vpop.xlane.xlu0 %3741
        %v3743 = vsel %vm3451, %v3420, 0.0
        %3744 = vadd.xlane.f32.xlu0 %v3743
        %v3745 = vpop.xlane.xlu0 %3744
        %v3746 = vsel %vm3451, %v3421, 0.0
        %3747 = vadd.xlane.f32.xlu0 %v3746
        %v3748 = vpop.xlane.xlu0 %3747
        %v3749 = vsel %vm3451, %v3422, 0.0
        %3750 = vadd.xlane.f32.xlu0 %v3749
        %v3751 = vpop.xlane.xlu0 %3750
        %v3752 = vsel %vm3451, %v3423, 0.0
        %3753 = vadd.xlane.f32.xlu0 %v3752
        %v3754 = vpop.xlane.xlu0 %3753
        %v3755 = vsel %vm3451, %v3424, 0.0
        %3756 = vadd.xlane.f32.xlu0 %v3755
        %v3757 = vpop.xlane.xlu0 %3756
        %v3758 = vsel %vm3451, %v3425, 0.0
        %3759 = vadd.xlane.f32.xlu0 %v3758
        %v3760 = vpop.xlane.xlu0 %3759
        %v3761 = vsel %vm3451, %v3426, 0.0
        %3762 = vadd.xlane.f32.xlu0 %v3761
        %v3763 = vpop.xlane.xlu0 %3762
        %v3764 = vsel %vm3451, %v3427, 0.0
        %3765 = vadd.xlane.f32.xlu0 %v3764
        %v3766 = vpop.xlane.xlu0 %3765
        %v3767 = vsel %vm3451, %v3428, 0.0
        %3768 = vadd.xlane.f32.xlu0 %v3767
        %v3769 = vpop.xlane.xlu0 %3768
        %v3770 = vsel %vm3451, %v3429, 0.0
        %3771 = vadd.xlane.f32.xlu0 %v3770
        %v3772 = vpop.xlane.xlu0 %3771
        %v3773 = vsel %vm3451, %v3430, 0.0
        %3774 = vadd.xlane.f32.xlu0 %v3773
        %v3775 = vpop.xlane.xlu0 %3774
        %v3776 = vsel %vm3451, %v3431, 0.0
        %3777 = vadd.xlane.f32.xlu0 %v3776
        %v3778 = vpop.xlane.xlu0 %3777
        %v3779 = vsel %vm3451, %v3432, 0.0
        %3780 = vadd.xlane.f32.xlu0 %v3779
        %v3781 = vpop.xlane.xlu0 %3780
        %v3782 = vsel %vm3451, %v3433, 0.0
        %3783 = vadd.xlane.f32.xlu0 %v3782
        %v3784 = vpop.xlane.xlu0 %3783
        %v3785 = vsel %vm3451, %v3434, 0.0
        %3786 = vadd.xlane.f32.xlu0 %v3785
        %v3787 = vpop.xlane.xlu0 %3786
        %v3788 = vsel %vm3451, %v3435, 0.0
        %3789 = vadd.xlane.f32.xlu0 %v3788
        %v3790 = vpop.xlane.xlu0 %3789
        %v3791 = vsel %vm3451, %v3436, 0.0
        %3792 = vadd.xlane.f32.xlu0 %v3791
        %v3793 = vpop.xlane.xlu0 %3792
        %v3794 = vsel %vm3451, %v3437, 0.0
        %3795 = vadd.xlane.f32.xlu0 %v3794
        %v3796 = vpop.xlane.xlu0 %3795
        %v3797 = vsel %vm3451, %v3438, 0.0
        %3798 = vadd.xlane.f32.xlu0 %v3797
        %v3799 = vpop.xlane.xlu0 %3798
        %v3800 = vsel %vm3451, %v3439, 0.0
        %3801 = vadd.xlane.f32.xlu0 %v3800
        %v3802 = vpop.xlane.xlu0 %3801
        %v3803 = vsel %vm3451, %v3440, 0.0
        %3804 = vadd.xlane.f32.xlu0 %v3803
        %v3805 = vpop.xlane.xlu0 %3804
        %v3806 = vsel %vm3451, %v3441, 0.0
        %3807 = vadd.xlane.f32.xlu0 %v3806
        %v3808 = vpop.xlane.xlu0 %3807
        %v3809 = vsel %vm3451, %v3442, 0.0
        %3810 = vadd.xlane.f32.xlu0 %v3809
        %v3811 = vpop.xlane.xlu0 %3810
        %v3812 = vsel %vm3451, %v3443, 0.0
        %3813 = vadd.xlane.f32.xlu0 %v3812
        %v3814 = vpop.xlane.xlu0 %3813
        %v3815 = vsel %vm3451, %v3444, 0.0
        %3816 = vadd.xlane.f32.xlu0 %v3815
        %v3817 = vpop.xlane.xlu0 %3816
        %v3818 = vsel %vm3451, %v3445, 0.0
        %3819 = vadd.xlane.f32.xlu0 %v3818
        %v3820 = vpop.xlane.xlu0 %3819
        %v3821 = vsel %vm3451, %v3446, 0.0
        %3822 = vadd.xlane.f32.xlu0 %v3821
        %v3823 = vpop.xlane.xlu0 %3822
        %v3824 = vsel %vm3451, %v3447, 0.0
        %3825 = vadd.xlane.f32.xlu0 %v3824
        %v3826 = vpop.xlane.xlu0 %3825
        %v3827 = vsel %vm3451, %v3448, 0.0
        %3828 = vadd.xlane.f32.xlu0 %v3827
        %v3829 = vpop.xlane.xlu0 %3828
        %v3830 = vsel %vm3451, %v3449, 0.0
        %3831 = vadd.xlane.f32.xlu0 %v3830
        %v3832 = vpop.xlane.xlu0 %3831
        %v3833 = vsel %vm3451, %v3450, 0.0
        %3834 = vadd.xlane.f32.xlu0 %v3833
        %v3835 = vpop.xlane.xlu0 %3834
        %s3836 = sld [smem:[#allocation2]]
        %v3837 = vstv %s3836
        %v3838 = vadd.f32 %v3454, %v3837
        %v3839 = vadd.f32 %v3457, %v3837
        %v3840 = vadd.f32 %v3460, %v3837
        %v3841 = vadd.f32 %v3463, %v3837
        %v3842 = vadd.f32 %v3466, %v3837
        %v3843 = vadd.f32 %v3469, %v3837
        %v3844 = vadd.f32 %v3472, %v3837
        %v3845 = vadd.f32 %v3475, %v3837
        %v3846 = vadd.f32 %v3478, %v3837
        %v3847 = vadd.f32 %v3481, %v3837
        %v3848 = vadd.f32 %v3484, %v3837
        %v3849 = vadd.f32 %v3487, %v3837
        %v3850 = vadd.f32 %v3490, %v3837
        %v3851 = vadd.f32 %v3493, %v3837
        %v3852 = vadd.f32 %v3496, %v3837
        %v3853 = vadd.f32 %v3499, %v3837
        %v3854 = vadd.f32 %v3502, %v3837
        %v3855 = vadd.f32 %v3505, %v3837
        %v3856 = vadd.f32 %v3508, %v3837
        %v3857 = vadd.f32 %v3511, %v3837
        %v3858 = vadd.f32 %v3514, %v3837
        %v3859 = vadd.f32 %v3517, %v3837
        %v3860 = vadd.f32 %v3520, %v3837
        %v3861 = vadd.f32 %v3523, %v3837
        %v3862 = vadd.f32 %v3526, %v3837
        %v3863 = vadd.f32 %v3529, %v3837
        %v3864 = vadd.f32 %v3532, %v3837
        %v3865 = vadd.f32 %v3535, %v3837
        %v3866 = vadd.f32 %v3538, %v3837
        %v3867 = vadd.f32 %v3541, %v3837
        %v3868 = vadd.f32 %v3544, %v3837
        %v3869 = vadd.f32 %v3547, %v3837
        %v3870 = vadd.f32 %v3550, %v3837
        %v3871 = vadd.f32 %v3553, %v3837
        %v3872 = vadd.f32 %v3556, %v3837
        %v3873 = vadd.f32 %v3559, %v3837
        %v3874 = vadd.f32 %v3562, %v3837
        %v3875 = vadd.f32 %v3565, %v3837
        %v3876 = vadd.f32 %v3568, %v3837
        %v3877 = vadd.f32 %v3571, %v3837
        %v3878 = vadd.f32 %v3574, %v3837
        %v3879 = vadd.f32 %v3577, %v3837
        %v3880 = vadd.f32 %v3580, %v3837
        %v3881 = vadd.f32 %v3583, %v3837
        %v3882 = vadd.f32 %v3586, %v3837
        %v3883 = vadd.f32 %v3589, %v3837
        %v3884 = vadd.f32 %v3592, %v3837
        %v3885 = vadd.f32 %v3595, %v3837
        %v3886 = vadd.f32 %v3598, %v3837
        %v3887 = vadd.f32 %v3601, %v3837
        %v3888 = vadd.f32 %v3604, %v3837
        %v3889 = vadd.f32 %v3607, %v3837
        %v3890 = vadd.f32 %v3610, %v3837
        %v3891 = vadd.f32 %v3613, %v3837
        %v3892 = vadd.f32 %v3616, %v3837
        %v3893 = vadd.f32 %v3619, %v3837
        %v3894 = vadd.f32 %v3622, %v3837
        %v3895 = vadd.f32 %v3625, %v3837
        %v3896 = vadd.f32 %v3628, %v3837
        %v3897 = vadd.f32 %v3631, %v3837
        %v3898 = vadd.f32 %v3634, %v3837
        %v3899 = vadd.f32 %v3637, %v3837
        %v3900 = vadd.f32 %v3640, %v3837
        %v3901 = vadd.f32 %v3643, %v3837
        %v3902 = vadd.f32 %v3646, %v3837
        %v3903 = vadd.f32 %v3649, %v3837
        %v3904 = vadd.f32 %v3652, %v3837
        %v3905 = vadd.f32 %v3655, %v3837
        %v3906 = vadd.f32 %v3658, %v3837
        %v3907 = vadd.f32 %v3661, %v3837
        %v3908 = vadd.f32 %v3664, %v3837
        %v3909 = vadd.f32 %v3667, %v3837
        %v3910 = vadd.f32 %v3670, %v3837
        %v3911 = vadd.f32 %v3673, %v3837
        %v3912 = vadd.f32 %v3676, %v3837
        %v3913 = vadd.f32 %v3679, %v3837
        %v3914 = vadd.f32 %v3682, %v3837
        %v3915 = vadd.f32 %v3685, %v3837
        %v3916 = vadd.f32 %v3688, %v3837
        %v3917 = vadd.f32 %v3691, %v3837
        %v3918 = vadd.f32 %v3694, %v3837
        %v3919 = vadd.f32 %v3697, %v3837
        %v3920 = vadd.f32 %v3700, %v3837
        %v3921 = vadd.f32 %v3703, %v3837
        %v3922 = vadd.f32 %v3706, %v3837
        %v3923 = vadd.f32 %v3709, %v3837
        %v3924 = vadd.f32 %v3712, %v3837
        %v3925 = vadd.f32 %v3715, %v3837
        %v3926 = vadd.f32 %v3718, %v3837
        %v3927 = vadd.f32 %v3721, %v3837
        %v3928 = vadd.f32 %v3724, %v3837
        %v3929 = vadd.f32 %v3727, %v3837
        %v3930 = vadd.f32 %v3730, %v3837
        %v3931 = vadd.f32 %v3733, %v3837
        %v3932 = vadd.f32 %v3736, %v3837
        %v3933 = vadd.f32 %v3739, %v3837
        %v3934 = vadd.f32 %v3742, %v3837
        %v3935 = vadd.f32 %v3745, %v3837
        %v3936 = vadd.f32 %v3748, %v3837
        %v3937 = vadd.f32 %v3751, %v3837
        %v3938 = vadd.f32 %v3754, %v3837
        %v3939 = vadd.f32 %v3757, %v3837
        %v3940 = vadd.f32 %v3760, %v3837
        %v3941 = vadd.f32 %v3763, %v3837
        %v3942 = vadd.f32 %v3766, %v3837
        %v3943 = vadd.f32 %v3769, %v3837
        %v3944 = vadd.f32 %v3772, %v3837
        %v3945 = vadd.f32 %v3775, %v3837
        %v3946 = vadd.f32 %v3778, %v3837
        %v3947 = vadd.f32 %v3781, %v3837
        %v3948 = vadd.f32 %v3784, %v3837
        %v3949 = vadd.f32 %v3787, %v3837
        %v3950 = vadd.f32 %v3790, %v3837
        %v3951 = vadd.f32 %v3793, %v3837
        %v3952 = vadd.f32 %v3796, %v3837
        %v3953 = vadd.f32 %v3799, %v3837
        %v3954 = vadd.f32 %v3802, %v3837
        %v3955 = vadd.f32 %v3805, %v3837
        %v3956 = vadd.f32 %v3808, %v3837
        %v3957 = vadd.f32 %v3811, %v3837
        %v3958 = vadd.f32 %v3814, %v3837
        %v3959 = vadd.f32 %v3817, %v3837
        %v3960 = vadd.f32 %v3820, %v3837
        %v3961 = vadd.f32 %v3823, %v3837
        %v3962 = vadd.f32 %v3826, %v3837
        %v3963 = vadd.f32 %v3829, %v3837
        %v3964 = vadd.f32 %v3832, %v3837
        %v3965 = vadd.f32 %v3835, %v3837
        %v3966 = vlaneseq
        %v3967 = vand.u32 %v3966, 127
        %v3968 = vld [vmem:[%s370] sm:$0xff]
        %3969 = vset.pattern.permute.xlu0 0
        %3970 = vperm.xlu0 %3969, %v3968
        %v3971 = vpop.permute.xlu0 %3970
        %vm3972 = vcmp.ge.s32.totalorder %v3967, %v3971
        %v4101 = vlaneseq
        %v4102 = vshrl.u32 %v4101, 7
        %v4103 = vsub.s32 %v3967, %v4102
        %v4104 = vrot.slane %v3838, %v4103
        %v4105 = vadd.s32 %v3967, 4294967288
        %v4106 = vlaneseq
        %v4107 = vshrl.u32 %v4106, 7
        %v4108 = vsub.s32 %v4105, %v4107
        %v4109 = vrot.slane %v3839, %v4108
        %vm4110 = vcmask 130112
        %v4111 = vsel %vm4110, %v4109, %v4104
        %v4112 = vadd.s32 %v3967, 4294967280
        %v4113 = vlaneseq
        %v4114 = vshrl.u32 %v4113, 7
        %v4115 = vsub.s32 %v4112, %v4114
        %v4116 = vrot.slane %v3840, %v4115
        %vm4117 = vcmask 195712
        %v4118 = vsel %vm4117, %v4116, %v4111
        %v4119 = vadd.s32 %v3967, 4294967272
        %v4120 = vlaneseq
        %v4121 = vshrl.u32 %v4120, 7
        %v4122 = vsub.s32 %v4119, %v4121
        %v4123 = vrot.slane %v3841, %v4122
        %vm4124 = vcmask 261312
        %v4125 = vsel %vm4124, %v4123, %v4118
        %v4126 = vadd.s32 %v3967, 4294967264
        %v4127 = vlaneseq
        %v4128 = vshrl.u32 %v4127, 7
        %v4129 = vsub.s32 %v4126, %v4128
        %v4130 = vrot.slane %v3842, %v4129
        %vm4131 = vcmask 326912
        %v4132 = vsel %vm4131, %v4130, %v4125
        %v4133 = vadd.s32 %v3967, 4294967256
        %v4134 = vlaneseq
        %v4135 = vshrl.u32 %v4134, 7
        %v4136 = vsub.s32 %v4133, %v4135
        %v4137 = vrot.slane %v3843, %v4136
        %vm4138 = vcmask 392512
        %v4139 = vsel %vm4138, %v4137, %v4132
        %v4140 = vadd.s32 %v3967, 4294967248
        %v4141 = vlaneseq
        %v4142 = vshrl.u32 %v4141, 7
        %v4143 = vsub.s32 %v4140, %v4142
        %v4144 = vrot.slane %v3844, %v4143
        %vm4145 = vcmask 458112
        %v4146 = vsel %vm4145, %v4144, %v4139
        %v4147 = vadd.s32 %v3967, 4294967240
        %v4148 = vlaneseq
        %v4149 = vshrl.u32 %v4148, 7
        %v4150 = vsub.s32 %v4147, %v4149
        %v4151 = vrot.slane %v3845, %v4150
        %vm4152 = vcmask 523712
        %v4153 = vsel %vm4152, %v4151, %v4146
        %v4154 = vadd.s32 %v3967, 4294967232
        %v4155 = vlaneseq
        %v4156 = vshrl.u32 %v4155, 7
        %v4157 = vsub.s32 %v4154, %v4156
        %v4158 = vrot.slane %v3846, %v4157
        %vm4159 = vcmask 589312
        %v4160 = vsel %vm4159, %v4158, %v4153
        %v4161 = vadd.s32 %v3967, 4294967224
        %v4162 = vlaneseq
        %v4163 = vshrl.u32 %v4162, 7
        %v4164 = vsub.s32 %v4161, %v4163
        %v4165 = vrot.slane %v3847, %v4164
        %vm4166 = vcmask 654912
        %v4167 = vsel %vm4166, %v4165, %v4160
        %v4168 = vadd.s32 %v3967, 4294967216
        %v4169 = vlaneseq
        %v4170 = vshrl.u32 %v4169, 7
        %v4171 = vsub.s32 %v4168, %v4170
        %v4172 = vrot.slane %v3848, %v4171
        %vm4173 = vcmask 720512
        %v4174 = vsel %vm4173, %v4172, %v4167
        %v4175 = vadd.s32 %v3967, 4294967208
        %v4176 = vlaneseq
        %v4177 = vshrl.u32 %v4176, 7
        %v4178 = vsub.s32 %v4175, %v4177
        %v4179 = vrot.slane %v3849, %v4178
        %vm4180 = vcmask 786112
        %v4181 = vsel %vm4180, %v4179, %v4174
        %v4182 = vadd.s32 %v3967, 4294967200
        %v4183 = vlaneseq
        %v4184 = vshrl.u32 %v4183, 7
        %v4185 = vsub.s32 %v4182, %v4184
        %v4186 = vrot.slane %v3850, %v4185
        %vm4187 = vcmask 851712
        %v4188 = vsel %vm4187, %v4186, %v4181
        %v4189 = vadd.s32 %v3967, 4294967192
        %v4190 = vlaneseq
        %v4191 = vshrl.u32 %v4190, 7
        %v4192 = vsub.s32 %v4189, %v4191
        %v4193 = vrot.slane %v3851, %v4192
        %vm4194 = vcmask 917312
        %v4195 = vsel %vm4194, %v4193, %v4188
        %v4196 = vadd.s32 %v3967, 4294967184
        %v4197 = vlaneseq
        %v4198 = vshrl.u32 %v4197, 7
        %v4199 = vsub.s32 %v4196, %v4198
        %v4200 = vrot.slane %v3852, %v4199
        %vm4201 = vcmask 982912
        %v4202 = vsel %vm4201, %v4200, %v4195
        %v4203 = vadd.s32 %v3967, 4294967176
        %v4204 = vlaneseq
        %v4205 = vshrl.u32 %v4204, 7
        %v4206 = vsub.s32 %v4203, %v4205
        %v4207 = vrot.slane %v3853, %v4206
        %vm4208 = vcmask 1048512
        %v4209 = vsel %vm4208, %v4207, %v4202
        %v4210 = vlaneseq
        %v4211 = vshrl.u32 %v4210, 7
        %v4212 = vsub.s32 %v3967, %v4211
        %v4213 = vrot.slane %v3854, %v4212
        %v4214 = vlaneseq
        %v4215 = vshrl.u32 %v4214, 7
        %v4216 = vsub.s32 %v4105, %v4215
        %v4217 = vrot.slane %v3855, %v4216
        %v4218 = vsel %vm4110, %v4217, %v4213
        %v4219 = vlaneseq
        %v4220 = vshrl.u32 %v4219, 7
        %v4221 = vsub.s32 %v4112, %v4220
        %v4222 = vrot.slane %v3856, %v4221
        %v4223 = vsel %vm4117, %v4222, %v4218
        %v4224 = vlaneseq
        %v4225 = vshrl.u32 %v4224, 7
        %v4226 = vsub.s32 %v4119, %v4225
        %v4227 = vrot.slane %v3857, %v4226
        %v4228 = vsel %vm4124, %v4227, %v4223
        %v4229 = vlaneseq
        %v4230 = vshrl.u32 %v4229, 7
        %v4231 = vsub.s32 %v4126, %v4230
        %v4232 = vrot.slane %v3858, %v4231
        %v4233 = vsel %vm4131, %v4232, %v4228
        %v4234 = vlaneseq
        %v4235 = vshrl.u32 %v4234, 7
        %v4236 = vsub.s32 %v4133, %v4235
        %v4237 = vrot.slane %v3859, %v4236
        %v4238 = vsel %vm4138, %v4237, %v4233
        %v4239 = vlaneseq
        %v4240 = vshrl.u32 %v4239, 7
        %v4241 = vsub.s32 %v4140, %v4240
        %v4242 = vrot.slane %v3860, %v4241
        %v4243 = vsel %vm4145, %v4242, %v4238
        %v4244 = vlaneseq
        %v4245 = vshrl.u32 %v4244, 7
        %v4246 = vsub.s32 %v4147, %v4245
        %v4247 = vrot.slane %v3861, %v4246
        %v4248 = vsel %vm4152, %v4247, %v4243
        %v4249 = vlaneseq
        %v4250 = vshrl.u32 %v4249, 7
        %v4251 = vsub.s32 %v4154, %v4250
        %v4252 = vrot.slane %v3862, %v4251
        %v4253 = vsel %vm4159, %v4252, %v4248
        %v4254 = vlaneseq
        %v4255 = vshrl.u32 %v4254, 7
        %v4256 = vsub.s32 %v4161, %v4255
        %v4257 = vrot.slane %v3863, %v4256
        %v4258 = vsel %vm4166, %v4257, %v4253
        %v4259 = vlaneseq
        %v4260 = vshrl.u32 %v4259, 7
        %v4261 = vsub.s32 %v4168, %v4260
        %v4262 = vrot.slane %v3864, %v4261
        %v4263 = vsel %vm4173, %v4262, %v4258
        %v4264 = vlaneseq
        %v4265 = vshrl.u32 %v4264, 7
        %v4266 = vsub.s32 %v4175, %v4265
        %v4267 = vrot.slane %v3865, %v4266
        %v4268 = vsel %vm4180, %v4267, %v4263
        %v4269 = vlaneseq
        %v4270 = vshrl.u32 %v4269, 7
        %v4271 = vsub.s32 %v4182, %v4270
        %v4272 = vrot.slane %v3866, %v4271
        %v4273 = vsel %vm4187, %v4272, %v4268
        %v4274 = vlaneseq
        %v4275 = vshrl.u32 %v4274, 7
        %v4276 = vsub.s32 %v4189, %v4275
        %v4277 = vrot.slane %v3867, %v4276
        %v4278 = vsel %vm4194, %v4277, %v4273
        %v4279 = vlaneseq
        %v4280 = vshrl.u32 %v4279, 7
        %v4281 = vsub.s32 %v4196, %v4280
        %v4282 = vrot.slane %v3868, %v4281
        %v4283 = vsel %vm4201, %v4282, %v4278
        %v4284 = vlaneseq
        %v4285 = vshrl.u32 %v4284, 7
        %v4286 = vsub.s32 %v4203, %v4285
        %v4287 = vrot.slane %v3869, %v4286
        %v4288 = vsel %vm4208, %v4287, %v4283
        %v4289 = vlaneseq
        %v4290 = vshrl.u32 %v4289, 7
        %v4291 = vsub.s32 %v3967, %v4290
        %v4292 = vrot.slane %v3870, %v4291
        %v4293 = vlaneseq
        %v4294 = vshrl.u32 %v4293, 7
        %v4295 = vsub.s32 %v4105, %v4294
        %v4296 = vrot.slane %v3871, %v4295
        %v4297 = vsel %vm4110, %v4296, %v4292
        %v4298 = vlaneseq
        %v4299 = vshrl.u32 %v4298, 7
        %v4300 = vsub.s32 %v4112, %v4299
        %v4301 = vrot.slane %v3872, %v4300
        %v4302 = vsel %vm4117, %v4301, %v4297
        %v4303 = vlaneseq
        %v4304 = vshrl.u32 %v4303, 7
        %v4305 = vsub.s32 %v4119, %v4304
        %v4306 = vrot.slane %v3873, %v4305
        %v4307 = vsel %vm4124, %v4306, %v4302
        %v4308 = vlaneseq
        %v4309 = vshrl.u32 %v4308, 7
        %v4310 = vsub.s32 %v4126, %v4309
        %v4311 = vrot.slane %v3874, %v4310
        %v4312 = vsel %vm4131, %v4311, %v4307
        %v4313 = vlaneseq
        %v4314 = vshrl.u32 %v4313, 7
        %v4315 = vsub.s32 %v4133, %v4314
        %v4316 = vrot.slane %v3875, %v4315
        %v4317 = vsel %vm4138, %v4316, %v4312
        %v4318 = vlaneseq
        %v4319 = vshrl.u32 %v4318, 7
        %v4320 = vsub.s32 %v4140, %v4319
        %v4321 = vrot.slane %v3876, %v4320
        %v4322 = vsel %vm4145, %v4321, %v4317
        %v4323 = vlaneseq
        %v4324 = vshrl.u32 %v4323, 7
        %v4325 = vsub.s32 %v4147, %v4324
        %v4326 = vrot.slane %v3877, %v4325
        %v4327 = vsel %vm4152, %v4326, %v4322
        %v4328 = vlaneseq
        %v4329 = vshrl.u32 %v4328, 7
        %v4330 = vsub.s32 %v4154, %v4329
        %v4331 = vrot.slane %v3878, %v4330
        %v4332 = vsel %vm4159, %v4331, %v4327
        %v4333 = vlaneseq
        %v4334 = vshrl.u32 %v4333, 7
        %v4335 = vsub.s32 %v4161, %v4334
        %v4336 = vrot.slane %v3879, %v4335
        %v4337 = vsel %vm4166, %v4336, %v4332
        %v4338 = vlaneseq
        %v4339 = vshrl.u32 %v4338, 7
        %v4340 = vsub.s32 %v4168, %v4339
        %v4341 = vrot.slane %v3880, %v4340
        %v4342 = vsel %vm4173, %v4341, %v4337
        %v4343 = vlaneseq
        %v4344 = vshrl.u32 %v4343, 7
        %v4345 = vsub.s32 %v4175, %v4344
        %v4346 = vrot.slane %v3881, %v4345
        %v4347 = vsel %vm4180, %v4346, %v4342
        %v4348 = vlaneseq
        %v4349 = vshrl.u32 %v4348, 7
        %v4350 = vsub.s32 %v4182, %v4349
        %v4351 = vrot.slane %v3882, %v4350
        %v4352 = vsel %vm4187, %v4351, %v4347
        %v4353 = vlaneseq
        %v4354 = vshrl.u32 %v4353, 7
        %v4355 = vsub.s32 %v4189, %v4354
        %v4356 = vrot.slane %v3883, %v4355
        %v4357 = vsel %vm4194, %v4356, %v4352
        %v4358 = vlaneseq
        %v4359 = vshrl.u32 %v4358, 7
        %v4360 = vsub.s32 %v4196, %v4359
        %v4361 = vrot.slane %v3884, %v4360
        %v4362 = vsel %vm4201, %v4361, %v4357
        %v4363 = vlaneseq
        %v4364 = vshrl.u32 %v4363, 7
        %v4365 = vsub.s32 %v4203, %v4364
        %v4366 = vrot.slane %v3885, %v4365
        %v4367 = vsel %vm4208, %v4366, %v4362
        %v4368 = vlaneseq
        %v4369 = vshrl.u32 %v4368, 7
        %v4370 = vsub.s32 %v3967, %v4369
        %v4371 = vrot.slane %v3886, %v4370
        %v4372 = vlaneseq
        %v4373 = vshrl.u32 %v4372, 7
        %v4374 = vsub.s32 %v4105, %v4373
        %v4375 = vrot.slane %v3887, %v4374
        %v4376 = vsel %vm4110, %v4375, %v4371
        %v4377 = vlaneseq
        %v4378 = vshrl.u32 %v4377, 7
        %v4379 = vsub.s32 %v4112, %v4378
        %v4380 = vrot.slane %v3888, %v4379
        %v4381 = vsel %vm4117, %v4380, %v4376
        %v4382 = vlaneseq
        %v4383 = vshrl.u32 %v4382, 7
        %v4384 = vsub.s32 %v4119, %v4383
        %v4385 = vrot.slane %v3889, %v4384
        %v4386 = vsel %vm4124, %v4385, %v4381
        %v4387 = vlaneseq
        %v4388 = vshrl.u32 %v4387, 7
        %v4389 = vsub.s32 %v4126, %v4388
        %v4390 = vrot.slane %v3890, %v4389
        %v4391 = vsel %vm4131, %v4390, %v4386
        %v4392 = vlaneseq
        %v4393 = vshrl.u32 %v4392, 7
        %v4394 = vsub.s32 %v4133, %v4393
        %v4395 = vrot.slane %v3891, %v4394
        %v4396 = vsel %vm4138, %v4395, %v4391
        %v4397 = vlaneseq
        %v4398 = vshrl.u32 %v4397, 7
        %v4399 = vsub.s32 %v4140, %v4398
        %v4400 = vrot.slane %v3892, %v4399
        %v4401 = vsel %vm4145, %v4400, %v4396
        %v4402 = vlaneseq
        %v4403 = vshrl.u32 %v4402, 7
        %v4404 = vsub.s32 %v4147, %v4403
        %v4405 = vrot.slane %v3893, %v4404
        %v4406 = vsel %vm4152, %v4405, %v4401
        %v4407 = vlaneseq
        %v4408 = vshrl.u32 %v4407, 7
        %v4409 = vsub.s32 %v4154, %v4408
        %v4410 = vrot.slane %v3894, %v4409
        %v4411 = vsel %vm4159, %v4410, %v4406
        %v4412 = vlaneseq
        %v4413 = vshrl.u32 %v4412, 7
        %v4414 = vsub.s32 %v4161, %v4413
        %v4415 = vrot.slane %v3895, %v4414
        %v4416 = vsel %vm4166, %v4415, %v4411
        %v4417 = vlaneseq
        %v4418 = vshrl.u32 %v4417, 7
        %v4419 = vsub.s32 %v4168, %v4418
        %v4420 = vrot.slane %v3896, %v4419
        %v4421 = vsel %vm4173, %v4420, %v4416
        %v4422 = vlaneseq
        %v4423 = vshrl.u32 %v4422, 7
        %v4424 = vsub.s32 %v4175, %v4423
        %v4425 = vrot.slane %v3897, %v4424
        %v4426 = vsel %vm4180, %v4425, %v4421
        %v4427 = vlaneseq
        %v4428 = vshrl.u32 %v4427, 7
        %v4429 = vsub.s32 %v4182, %v4428
        %v4430 = vrot.slane %v3898, %v4429
        %v4431 = vsel %vm4187, %v4430, %v4426
        %v4432 = vlaneseq
        %v4433 = vshrl.u32 %v4432, 7
        %v4434 = vsub.s32 %v4189, %v4433
        %v4435 = vrot.slane %v3899, %v4434
        %v4436 = vsel %vm4194, %v4435, %v4431
        %v4437 = vlaneseq
        %v4438 = vshrl.u32 %v4437, 7
        %v4439 = vsub.s32 %v4196, %v4438
        %v4440 = vrot.slane %v3900, %v4439
        %v4441 = vsel %vm4201, %v4440, %v4436
        %v4442 = vlaneseq
        %v4443 = vshrl.u32 %v4442, 7
        %v4444 = vsub.s32 %v4203, %v4443
        %v4445 = vrot.slane %v3901, %v4444
        %v4446 = vsel %vm4208, %v4445, %v4441
        %v4447 = vlaneseq
        %v4448 = vshrl.u32 %v4447, 7
        %v4449 = vsub.s32 %v3967, %v4448
        %v4450 = vrot.slane %v3902, %v4449
        %v4451 = vlaneseq
        %v4452 = vshrl.u32 %v4451, 7
        %v4453 = vsub.s32 %v4105, %v4452
        %v4454 = vrot.slane %v3903, %v4453
        %v4455 = vsel %vm4110, %v4454, %v4450
        %v4456 = vlaneseq
        %v4457 = vshrl.u32 %v4456, 7
        %v4458 = vsub.s32 %v4112, %v4457
        %v4459 = vrot.slane %v3904, %v4458
        %v4460 = vsel %vm4117, %v4459, %v4455
        %v4461 = vlaneseq
        %v4462 = vshrl.u32 %v4461, 7
        %v4463 = vsub.s32 %v4119, %v4462
        %v4464 = vrot.slane %v3905, %v4463
        %v4465 = vsel %vm4124, %v4464, %v4460
        %v4466 = vlaneseq
        %v4467 = vshrl.u32 %v4466, 7
        %v4468 = vsub.s32 %v4126, %v4467
        %v4469 = vrot.slane %v3906, %v4468
        %v4470 = vsel %vm4131, %v4469, %v4465
        %v4471 = vlaneseq
        %v4472 = vshrl.u32 %v4471, 7
        %v4473 = vsub.s32 %v4133, %v4472
        %v4474 = vrot.slane %v3907, %v4473
        %v4475 = vsel %vm4138, %v4474, %v4470
        %v4476 = vlaneseq
        %v4477 = vshrl.u32 %v4476, 7
        %v4478 = vsub.s32 %v4140, %v4477
        %v4479 = vrot.slane %v3908, %v4478
        %v4480 = vsel %vm4145, %v4479, %v4475
        %v4481 = vlaneseq
        %v4482 = vshrl.u32 %v4481, 7
        %v4483 = vsub.s32 %v4147, %v4482
        %v4484 = vrot.slane %v3909, %v4483
        %v4485 = vsel %vm4152, %v4484, %v4480
        %v4486 = vlaneseq
        %v4487 = vshrl.u32 %v4486, 7
        %v4488 = vsub.s32 %v4154, %v4487
        %v4489 = vrot.slane %v3910, %v4488
        %v4490 = vsel %vm4159, %v4489, %v4485
        %v4491 = vlaneseq
        %v4492 = vshrl.u32 %v4491, 7
        %v4493 = vsub.s32 %v4161, %v4492
        %v4494 = vrot.slane %v3911, %v4493
        %v4495 = vsel %vm4166, %v4494, %v4490
        %v4496 = vlaneseq
        %v4497 = vshrl.u32 %v4496, 7
        %v4498 = vsub.s32 %v4168, %v4497
        %v4499 = vrot.slane %v3912, %v4498
        %v4500 = vsel %vm4173, %v4499, %v4495
        %v4501 = vlaneseq
        %v4502 = vshrl.u32 %v4501, 7
        %v4503 = vsub.s32 %v4175, %v4502
        %v4504 = vrot.slane %v3913, %v4503
        %v4505 = vsel %vm4180, %v4504, %v4500
        %v4506 = vlaneseq
        %v4507 = vshrl.u32 %v4506, 7
        %v4508 = vsub.s32 %v4182, %v4507
        %v4509 = vrot.slane %v3914, %v4508
        %v4510 = vsel %vm4187, %v4509, %v4505
        %v4511 = vlaneseq
        %v4512 = vshrl.u32 %v4511, 7
        %v4513 = vsub.s32 %v4189, %v4512
        %v4514 = vrot.slane %v3915, %v4513
        %v4515 = vsel %vm4194, %v4514, %v4510
        %v4516 = vlaneseq
        %v4517 = vshrl.u32 %v4516, 7
        %v4518 = vsub.s32 %v4196, %v4517
        %v4519 = vrot.slane %v3916, %v4518
        %v4520 = vsel %vm4201, %v4519, %v4515
        %v4521 = vlaneseq
        %v4522 = vshrl.u32 %v4521, 7
        %v4523 = vsub.s32 %v4203, %v4522
        %v4524 = vrot.slane %v3917, %v4523
        %v4525 = vsel %vm4208, %v4524, %v4520
        %v4526 = vlaneseq
        %v4527 = vshrl.u32 %v4526, 7
        %v4528 = vsub.s32 %v3967, %v4527
        %v4529 = vrot.slane %v3918, %v4528
        %v4530 = vlaneseq
        %v4531 = vshrl.u32 %v4530, 7
        %v4532 = vsub.s32 %v4105, %v4531
        %v4533 = vrot.slane %v3919, %v4532
        %v4534 = vsel %vm4110, %v4533, %v4529
        %v4535 = vlaneseq
        %v4536 = vshrl.u32 %v4535, 7
        %v4537 = vsub.s32 %v4112, %v4536
        %v4538 = vrot.slane %v3920, %v4537
        %v4539 = vsel %vm4117, %v4538, %v4534
        %v4540 = vlaneseq
        %v4541 = vshrl.u32 %v4540, 7
        %v4542 = vsub.s32 %v4119, %v4541
        %v4543 = vrot.slane %v3921, %v4542
        %v4544 = vsel %vm4124, %v4543, %v4539
        %v4545 = vlaneseq
        %v4546 = vshrl.u32 %v4545, 7
        %v4547 = vsub.s32 %v4126, %v4546
        %v4548 = vrot.slane %v3922, %v4547
        %v4549 = vsel %vm4131, %v4548, %v4544
        %v4550 = vlaneseq
        %v4551 = vshrl.u32 %v4550, 7
        %v4552 = vsub.s32 %v4133, %v4551
        %v4553 = vrot.slane %v3923, %v4552
        %v4554 = vsel %vm4138, %v4553, %v4549
        %v4555 = vlaneseq
        %v4556 = vshrl.u32 %v4555, 7
        %v4557 = vsub.s32 %v4140, %v4556
        %v4558 = vrot.slane %v3924, %v4557
        %v4559 = vsel %vm4145, %v4558, %v4554
        %v4560 = vlaneseq
        %v4561 = vshrl.u32 %v4560, 7
        %v4562 = vsub.s32 %v4147, %v4561
        %v4563 = vrot.slane %v3925, %v4562
        %v4564 = vsel %vm4152, %v4563, %v4559
        %v4565 = vlaneseq
        %v4566 = vshrl.u32 %v4565, 7
        %v4567 = vsub.s32 %v4154, %v4566
        %v4568 = vrot.slane %v3926, %v4567
        %v4569 = vsel %vm4159, %v4568, %v4564
        %v4570 = vlaneseq
        %v4571 = vshrl.u32 %v4570, 7
        %v4572 = vsub.s32 %v4161, %v4571
        %v4573 = vrot.slane %v3927, %v4572
        %v4574 = vsel %vm4166, %v4573, %v4569
        %v4575 = vlaneseq
        %v4576 = vshrl.u32 %v4575, 7
        %v4577 = vsub.s32 %v4168, %v4576
        %v4578 = vrot.slane %v3928, %v4577
        %v4579 = vsel %vm4173, %v4578, %v4574
        %v4580 = vlaneseq
        %v4581 = vshrl.u32 %v4580, 7
        %v4582 = vsub.s32 %v4175, %v4581
        %v4583 = vrot.slane %v3929, %v4582
        %v4584 = vsel %vm4180, %v4583, %v4579
        %v4585 = vlaneseq
        %v4586 = vshrl.u32 %v4585, 7
        %v4587 = vsub.s32 %v4182, %v4586
        %v4588 = vrot.slane %v3930, %v4587
        %v4589 = vsel %vm4187, %v4588, %v4584
        %v4590 = vlaneseq
        %v4591 = vshrl.u32 %v4590, 7
        %v4592 = vsub.s32 %v4189, %v4591
        %v4593 = vrot.slane %v3931, %v4592
        %v4594 = vsel %vm4194, %v4593, %v4589
        %v4595 = vlaneseq
        %v4596 = vshrl.u32 %v4595, 7
        %v4597 = vsub.s32 %v4196, %v4596
        %v4598 = vrot.slane %v3932, %v4597
        %v4599 = vsel %vm4201, %v4598, %v4594
        %v4600 = vlaneseq
        %v4601 = vshrl.u32 %v4600, 7
        %v4602 = vsub.s32 %v4203, %v4601
        %v4603 = vrot.slane %v3933, %v4602
        %v4604 = vsel %vm4208, %v4603, %v4599
        %v4605 = vlaneseq
        %v4606 = vshrl.u32 %v4605, 7
        %v4607 = vsub.s32 %v3967, %v4606
        %v4608 = vrot.slane %v3934, %v4607
        %v4609 = vlaneseq
        %v4610 = vshrl.u32 %v4609, 7
        %v4611 = vsub.s32 %v4105, %v4610
        %v4612 = vrot.slane %v3935, %v4611
        %v4613 = vsel %vm4110, %v4612, %v4608
        %v4614 = vlaneseq
        %v4615 = vshrl.u32 %v4614, 7
        %v4616 = vsub.s32 %v4112, %v4615
        %v4617 = vrot.slane %v3936, %v4616
        %v4618 = vsel %vm4117, %v4617, %v4613
        %v4619 = vlaneseq
        %v4620 = vshrl.u32 %v4619, 7
        %v4621 = vsub.s32 %v4119, %v4620
        %v4622 = vrot.slane %v3937, %v4621
        %v4623 = vsel %vm4124, %v4622, %v4618
        %v4624 = vlaneseq
        %v4625 = vshrl.u32 %v4624, 7
        %v4626 = vsub.s32 %v4126, %v4625
        %v4627 = vrot.slane %v3938, %v4626
        %v4628 = vsel %vm4131, %v4627, %v4623
        %v4629 = vlaneseq
        %v4630 = vshrl.u32 %v4629, 7
        %v4631 = vsub.s32 %v4133, %v4630
        %v4632 = vrot.slane %v3939, %v4631
        %v4633 = vsel %vm4138, %v4632, %v4628
        %v4634 = vlaneseq
        %v4635 = vshrl.u32 %v4634, 7
        %v4636 = vsub.s32 %v4140, %v4635
        %v4637 = vrot.slane %v3940, %v4636
        %v4638 = vsel %vm4145, %v4637, %v4633
        %v4639 = vlaneseq
        %v4640 = vshrl.u32 %v4639, 7
        %v4641 = vsub.s32 %v4147, %v4640
        %v4642 = vrot.slane %v3941, %v4641
        %v4643 = vsel %vm4152, %v4642, %v4638
        %v4644 = vlaneseq
        %v4645 = vshrl.u32 %v4644, 7
        %v4646 = vsub.s32 %v4154, %v4645
        %v4647 = vrot.slane %v3942, %v4646
        %v4648 = vsel %vm4159, %v4647, %v4643
        %v4649 = vlaneseq
        %v4650 = vshrl.u32 %v4649, 7
        %v4651 = vsub.s32 %v4161, %v4650
        %v4652 = vrot.slane %v3943, %v4651
        %v4653 = vsel %vm4166, %v4652, %v4648
        %v4654 = vlaneseq
        %v4655 = vshrl.u32 %v4654, 7
        %v4656 = vsub.s32 %v4168, %v4655
        %v4657 = vrot.slane %v3944, %v4656
        %v4658 = vsel %vm4173, %v4657, %v4653
        %v4659 = vlaneseq
        %v4660 = vshrl.u32 %v4659, 7
        %v4661 = vsub.s32 %v4175, %v4660
        %v4662 = vrot.slane %v3945, %v4661
        %v4663 = vsel %vm4180, %v4662, %v4658
        %v4664 = vlaneseq
        %v4665 = vshrl.u32 %v4664, 7
        %v4666 = vsub.s32 %v4182, %v4665
        %v4667 = vrot.slane %v3946, %v4666
        %v4668 = vsel %vm4187, %v4667, %v4663
        %v4669 = vlaneseq
        %v4670 = vshrl.u32 %v4669, 7
        %v4671 = vsub.s32 %v4189, %v4670
        %v4672 = vrot.slane %v3947, %v4671
        %v4673 = vsel %vm4194, %v4672, %v4668
        %v4674 = vlaneseq
        %v4675 = vshrl.u32 %v4674, 7
        %v4676 = vsub.s32 %v4196, %v4675
        %v4677 = vrot.slane %v3948, %v4676
        %v4678 = vsel %vm4201, %v4677, %v4673
        %v4679 = vlaneseq
        %v4680 = vshrl.u32 %v4679, 7
        %v4681 = vsub.s32 %v4203, %v4680
        %v4682 = vrot.slane %v3949, %v4681
        %v4683 = vsel %vm4208, %v4682, %v4678
        %v4684 = vlaneseq
        %v4685 = vshrl.u32 %v4684, 7
        %v4686 = vsub.s32 %v3967, %v4685
        %v4687 = vrot.slane %v3950, %v4686
        %v4688 = vlaneseq
        %v4689 = vshrl.u32 %v4688, 7
        %v4690 = vsub.s32 %v4105, %v4689
        %v4691 = vrot.slane %v3951, %v4690
        %v4692 = vsel %vm4110, %v4691, %v4687
        %v4693 = vlaneseq
        %v4694 = vshrl.u32 %v4693, 7
        %v4695 = vsub.s32 %v4112, %v4694
        %v4696 = vrot.slane %v3952, %v4695
        %v4697 = vsel %vm4117, %v4696, %v4692
        %v4698 = vlaneseq
        %v4699 = vshrl.u32 %v4698, 7
        %v4700 = vsub.s32 %v4119, %v4699
        %v4701 = vrot.slane %v3953, %v4700
        %v4702 = vsel %vm4124, %v4701, %v4697
        %v4703 = vlaneseq
        %v4704 = vshrl.u32 %v4703, 7
        %v4705 = vsub.s32 %v4126, %v4704
        %v4706 = vrot.slane %v3954, %v4705
        %v4707 = vsel %vm4131, %v4706, %v4702
        %v4708 = vlaneseq
        %v4709 = vshrl.u32 %v4708, 7
        %v4710 = vsub.s32 %v4133, %v4709
        %v4711 = vrot.slane %v3955, %v4710
        %v4712 = vsel %vm4138, %v4711, %v4707
        %v4713 = vlaneseq
        %v4714 = vshrl.u32 %v4713, 7
        %v4715 = vsub.s32 %v4140, %v4714
        %v4716 = vrot.slane %v3956, %v4715
        %v4717 = vsel %vm4145, %v4716, %v4712
        %v4718 = vlaneseq
        %v4719 = vshrl.u32 %v4718, 7
        %v4720 = vsub.s32 %v4147, %v4719
        %v4721 = vrot.slane %v3957, %v4720
        %v4722 = vsel %vm4152, %v4721, %v4717
        %v4723 = vlaneseq
        %v4724 = vshrl.u32 %v4723, 7
        %v4725 = vsub.s32 %v4154, %v4724
        %v4726 = vrot.slane %v3958, %v4725
        %v4727 = vsel %vm4159, %v4726, %v4722
        %v4728 = vlaneseq
        %v4729 = vshrl.u32 %v4728, 7
        %v4730 = vsub.s32 %v4161, %v4729
        %v4731 = vrot.slane %v3959, %v4730
        %v4732 = vsel %vm4166, %v4731, %v4727
        %v4733 = vlaneseq
        %v4734 = vshrl.u32 %v4733, 7
        %v4735 = vsub.s32 %v4168, %v4734
        %v4736 = vrot.slane %v3960, %v4735
        %v4737 = vsel %vm4173, %v4736, %v4732
        %v4738 = vlaneseq
        %v4739 = vshrl.u32 %v4738, 7
        %v4740 = vsub.s32 %v4175, %v4739
        %v4741 = vrot.slane %v3961, %v4740
        %v4742 = vsel %vm4180, %v4741, %v4737
        %v4743 = vlaneseq
        %v4744 = vshrl.u32 %v4743, 7
        %v4745 = vsub.s32 %v4182, %v4744
        %v4746 = vrot.slane %v3962, %v4745
        %v4747 = vsel %vm4187, %v4746, %v4742
        %v4748 = vlaneseq
        %v4749 = vshrl.u32 %v4748, 7
        %v4750 = vsub.s32 %v4189, %v4749
        %v4751 = vrot.slane %v3963, %v4750
        %v4752 = vsel %vm4194, %v4751, %v4747
        %v4753 = vlaneseq
        %v4754 = vshrl.u32 %v4753, 7
        %v4755 = vsub.s32 %v4196, %v4754
        %v4756 = vrot.slane %v3964, %v4755
        %v4757 = vsel %vm4201, %v4756, %v4752
        %v4758 = vlaneseq
        %v4759 = vshrl.u32 %v4758, 7
        %v4760 = vsub.s32 %v4203, %v4759
        %v4761 = vrot.slane %v3965, %v4760
        %v4762 = vsel %vm4208, %v4761, %v4757
        %vm4763 = vcmask 1041409
        %v4764 = vsel %vm4763, %v4288, %v4209
        %vm4765 = vcmask 1042434
        %v4766 = vsel %vm4765, %v4367, %v4764
        %vm4767 = vcmask 1043459
        %v4768 = vsel %vm4767, %v4446, %v4766
        %vm4769 = vcmask 1044484
        %v4770 = vsel %vm4769, %v4525, %v4768
        %vm4771 = vcmask 1045509
        %v4772 = vsel %vm4771, %v4604, %v4770
        %vm4773 = vcmask 1046534
        %v4774 = vsel %vm4773, %v4683, %v4772
        %vm4775 = vcmask 1047559
        %v4776 = vsel %vm4775, %v4762, %v4774
        %v4778 = vsel %vm3972, 0.0, %v4776
        %4779 = vst [vmem:[%s355] sm:$0xff] %v4778
        %s4780 = sand.u32 %s236, 1
        %s4781 = scalar_lea.sflag [#allocation4], %s4780
        %s4782 = sand.u32 %s236, 1
        %s4783 = smul.addr %s4782, 8
        %s4784 = scalar_lea.vmem [#allocation3], %s4783
        // Predicated region
        $region57: #{tpu_custom_call.1} parent=55 // pred_check
          %p4785 = pneg %p246
        $region58: #{tpu_custom_call.1} parent=55 // pred_check_branch
          %4787 = sbr.rel (%p4785) target = $region60
        $region59: #{tpu_custom_call.1} parent=55 // pred_region
          %s4789 = ssub.s32 128, 128
          %4790 = vsyncadd %s4781, %s4789
          %s4791 = smul.addr %s24, 128
          %s4792 = scalar_lea.hbm %s9, %s4791
          %s4794 = sshll.u32 %s4784, 4
          %s4795 = int_to_ptr.vmem [resolvable:$true] %s4794
          %4797 = dma.vmem_to_hbm [thread:$0]  %s4795, 128, %s4792, %s4781
        $region60: #{tpu_custom_call.1} parent=55 // pred_fallthru
          _
      $region56: #{tpu_custom_call.1} parent=5 // pred_fallthru
        _
      %p4798 = scmp.le.s32.totalorder 2, %s19
      // Predicated region
      $region61: #{tpu_custom_call.1} parent=5 // pred_check
        %p4799 = pneg %p4798
      $region62: #{tpu_custom_call.1} parent=5 // pred_check_branch
        %4801 = sbr.rel (%p4799) target = $region64
      $region63: #{tpu_custom_call.1} parent=5 // pred_region
        %s4802 = ssub.s32 %s19, 2
        // Predicated region
        $region65: #{tpu_custom_call.1} parent=63 // pred_check
          %p4803 = pneg %p252
        $region66: #{tpu_custom_call.1} parent=63 // pred_check_branch
          %4805 = sbr.rel (%p4803) target = $region68
        $region67: #{tpu_custom_call.1} parent=63 // pred_region
          %s4806 = sand.u32 %s237, 1
          %s4807 = scalar_lea.sflag [#allocation4], %s4806
          %s4808 = sand.u32 %s237, 1
          %s4809 = smul.addr %s4808, 8
          %s4810 = scalar_lea.vmem [#allocation3], %s4809
          %4811 = dma.done %s4807, 128
        $region68: #{tpu_custom_call.1} parent=63 // pred_fallthru
          _
      $region64: #{tpu_custom_call.1} parent=5 // pred_fallthru
        _
    $region6: #{tpu_custom_call.1} parent=1 // loop_footer
      %s23 = sadd.s32 1, %s19
    $region7: #{tpu_custom_call.1} parent=1 // loop_footer_branch
      %18 = sbr.rel target = $region3
    $region8: #{tpu_custom_call.1} parent=1 // loop_exit
      _
    %4812 = vsyncpa [#allocation4], 1
    %s4813 = scalar_lea.sflag [#allocation4], 1
    %4814 = vsyncpa %s4813, 1

</llo_original>
